<compile_context>
chip_gen: v7x
topology: tpu7x:2x2x1
jax: 0.10.0
libtpu: 0.0.40
codegen_flags: <defaults>
</compile_context>

<pallas_src>
import functools

import jax
import jax.numpy as jnp
from jax.experimental import pallas as pl
from jax.experimental.pallas import tpu as pltpu


def _round_up(x, m):
    return (x + m - 1) // m * m


def _conv_bn_relu_kernel(a_ref, w_ref, shift_ref, o_ref, acc_ref, win_ref=None, *,
                         ksize, wr, tm, tm_win):
    # a_ref:     (1, A_rows, Cin)    bf16  flattened padded image (+halo rows), resident per n
    # w_ref:     (KH*KW, Cin, Coutp) bf16  BN scale folded in, single-buffered
    # shift_ref: (1, Coutp)          f32   beta - mean*scale
    # o_ref:     (1, tm, Coutp)      bf16  this tile's stride-1 conv rows
    # acc_ref:   (tm, Coutp)         f32   accumulator scratch
    # win_ref:   (tm_win, Cin)       bf16  this tile's input window (tile rows + halo)
    KH, KW = ksize
    base = pl.multiple_of(pl.program_id(1) * tm, 16)      # 16-row (bf16 sublane) aligned

    if KH == 1 and KW == 1:                               # 1x1 conv: no halo, no staging
        a_t = a_ref[0, pl.ds(base, tm), :]
        acc_ref[...] = jnp.dot(a_t, w_ref[0], preferred_element_type=jnp.float32)
    else:
        # Stage the bf16 window for this tile once (aligned dynamic start, no dtype
        # conversion).  Every tap read below is a *static* slice of this scratch; the
        # kh*wr part of each offset is 16-row aligned, only the kw remainder needs a
        # sublane relayout (XLU slot).
        win_ref[...] = a_ref[0, pl.ds(base, tm_win), :]
        for kh in range(KH):
            for kw in range(KW):
                t = kh * KW + kw
                off = kh * wr + kw
                a_t = win_ref[off:off + tm, :]
                part = jnp.dot(a_t, w_ref[t], preferred_element_type=jnp.float32)
                if t == 0:
                    acc_ref[...] = part
                else:
                    acc_ref[...] += part

    # Fused BN shift + ReLU epilogue; emit lane-dense bf16 (halves HBM writeback).
    o_ref[0] = jnp.maximum(acc_ref[...] + shift_ref[...], 0.0).astype(o_ref.dtype)


def _pick_vmem_limit_bytes():
    """~3/4 of physical VMEM, capped: ~48 MiB on v7x, ~96 MiB on v5e/v6e."""
    cap = 64 * 1024 * 1024
    try:
        info = pltpu.get_tpu_info()
        cap = int(getattr(info, "vmem_capacity_bytes", cap) or cap)
    except Exception:
        pass
    return int(min(cap * 3 // 4, 100 * 1024 * 1024))


def basic_conv2d(x_nchw, conv_w, bn_gamma, bn_beta, bn_mean, bn_var, *,
                 stride=1, padding=0, eps=1e-3, tile_rows=512):
    """Forward of BasicConv2d (eval-mode BN).  x_nchw: (N,Cin,H,W); conv_w: (Cout,Cin,KH,KW).

    Returns bf16 NCHW activations (the kernel epilogue emits the activation dtype)."""
    N, Cin, H, W = x_nchw.shape
    Cout, _, KH, KW = conv_w.shape
    Hp, Wp = H + 2 * padding, W + 2 * padding
    Wr = _round_up(Wp, 16)                    # row pitch padded to bf16 sublane granule
    Ho1, Wo1 = Hp - KH + 1, Wp - KW + 1       # stride-1 output extent over the padded grid
    Ho = (Hp - KH) // stride + 1
    Wo = (Wp - KW) // stride + 1

    Coutp = _round_up(Cout, 128)              # lane-dense output -> unmasked stores
    Mv_total = Ho1 * Wr                       # stride-1 output rows (flattened, pitch Wr)
    tm = _round_up(min(tile_rows, Mv_total), 16)
    T = pl.cdiv(Mv_total, tm)                 # output-row tiles per image
    Mv_pad = T * tm
    halo = (KH - 1) * Wr + (KW - 1)
    tm_win = _round_up(tm + halo, 16)         # staged window rows per tile
    A_rows = Mv_pad - tm + tm_win             # input rows shipped per image (>= Hp*Wr)

    # --- host glue: NCHW -> NHWC, conv zero-pad (+ pitch pad), flatten spatial, bf16 ---
    x = jnp.transpose(x_nchw, (0, 2, 3, 1))                                   # (N,H,W,Cin)
    xp = jnp.pad(x, ((0, 0), (padding, padding), (padding, Wr - Wp + padding), (0, 0)))
    a = xp.reshape(N, Hp * Wr, Cin)
    a = jnp.pad(a, ((0, 0), (0, A_rows - Hp * Wr), (0, 0))).astype(jnp.bfloat16)

    # --- fold BN (eval mode) into the weight; keep only a per-channel shift ---
    scale = bn_gamma / jnp.sqrt(bn_var + eps)                                 # (Cout,)
    shift = bn_beta - bn_mean * scale                                         # (Cout,)
    w = jnp.transpose(conv_w, (2, 3, 1, 0)) * scale                           # (KH,KW,Cin,Cout)
    w = jnp.pad(w, ((0, 0), (0, 0), (0, 0), (0, Coutp - Cout)))
    w = w.reshape(KH * KW, Cin, Coutp).astype(jnp.bfloat16)
    shift_p = jnp.pad(shift, (0, Coutp - Cout)).reshape(1, Coutp).astype(jnp.float32)

    kernel = functools.partial(_conv_bn_relu_kernel, ksize=(KH, KW), wr=Wr, tm=tm,
                               tm_win=tm_win)

    scratch_shapes = [pltpu.VMEM((tm, Coutp), jnp.float32)]
    if not (KH == 1 and KW == 1):
        scratch_shapes.append(pltpu.VMEM((tm_win, Cin), jnp.bfloat16))

    flops = 2 * N * Mv_pad * Cin * Coutp * KH * KW
    bytes_accessed = int(a.size * 2 + w.size * 2 + shift_p.size * 4
                         + N * Mv_pad * Coutp * 2)

    def run(single_buffer_weights):
        # Grid-invariant weight/shift: a single VMEM buffer is enough (v7x VMEM relief).
        inv_kw = {"pipeline_mode": pl.Buffered(1)} if single_buffer_weights else {}
        grid_spec = pltpu.PrefetchScalarGridSpec(
            num_scalar_prefetch=0,
            grid=(N, T),                       # images x output-row tiles, both independent
            in_specs=[
                # whole padded image resident per n (DMA'd once, reused across row tiles)
                pl.BlockSpec((1, A_rows, Cin), lambda n, t: (n, 0, 0)),
                pl.BlockSpec((KH * KW, Cin, Coutp), lambda n, t: (0, 0, 0), **inv_kw),
                pl.BlockSpec((1, Coutp), lambda n, t: (0, 0), **inv_kw),
            ],
            out_specs=pl.BlockSpec((1, tm, Coutp), lambda n, t: (n, t, 0)),
            scratch_shapes=scratch_shapes,
        )
        out = pl.pallas_call(
            kernel,
            out_shape=jax.ShapeDtypeStruct((N, Mv_pad, Coutp), jnp.bfloat16),
            grid_spec=grid_spec,
            compiler_params=pltpu.CompilerParams(
                dimension_semantics=("parallel", "parallel"),
                vmem_limit_bytes=_pick_vmem_limit_bytes()),
            cost_estimate=pl.CostEstimate(
                flops=flops, transcendentals=0, bytes_accessed=bytes_accessed),
        )(a, w, shift_p)
        return jax.block_until_ready(out)

    try:
        out = run(single_buffer_weights=True)
    except Exception:   # older JAX without BlockSpec(pipeline_mode=...): default buffering
        out = run(single_buffer_weights=False)

    # Valid rows are r = ho1*Wr + wo with wo < Wo1; subsample by stride, drop Cout padding.
    out = out[:, :Ho1 * Wr, :].reshape(N, Ho1, Wr, Coutp)
    out = out[:, 0:stride * Ho:stride, 0:stride * Wo:stride, :Cout]
    return jnp.transpose(out, (0, 3, 1, 2))                   # -> NCHW (bf16)


def _reference(x_nchw, conv_w, bn_gamma, bn_beta, bn_mean, bn_var, *,
               stride=1, padding=0, eps=1e-3, quantize_bf16=False):
    scale = bn_gamma / jnp.sqrt(bn_var + eps)
    shift = bn_beta - bn_mean * scale
    w = conv_w * scale[:, None, None, None]                   # fold scale like the kernel
    x = x_nchw
    if quantize_bf16:                                         # mimic the kernel's bf16 feeds
        x = x.astype(jnp.bfloat16).astype(jnp.float32)
        w = w.astype(jnp.bfloat16).astype(jnp.float32)
    y = jax.lax.conv_general_dilated(
        x, w, window_strides=(stride, stride),
        padding=[(padding, padding), (padding, padding)],
        dimension_numbers=("NCHW", "OIHW", "NCHW"),
        precision=jax.lax.Precision.HIGHEST)
    y = jnp.maximum(y + shift[None, :, None, None], 0.0)
    if quantize_bf16:
        y = y.astype(jnp.bfloat16).astype(jnp.float32)        # mirror the kernel's bf16 store
    return y


if __name__ == "__main__":
    key = jax.random.PRNGKey(0)
    k0, k1, k2, k3, k4, k5 = jax.random.split(key, 6)

    # BasicConv2d(in_channels=4, out_channels=8, kernel_size=3, padding=1)
    N, Cin, H, W = 2, 4, 16, 16
    Cout, KH, KW = 8, 3, 3

    x = jax.random.normal(k0, (N, Cin, H, W), jnp.float32)
    conv_w = 0.1 * jax.random.normal(k1, (Cout, Cin, KH, KW), jnp.float32)
    bn_gamma = 1.0 + 0.1 * jax.random.normal(k2, (Cout,), jnp.float32)
    bn_beta = 0.1 * jax.random.normal(k3, (Cout,), jnp.float32)
    bn_mean = 0.05 * jax.random.normal(k4, (Cout,), jnp.float32)
    bn_var = jnp.abs(1.0 + 0.1 * jax.random.normal(k5, (Cout,), jnp.float32))

    # tile_rows=128 -> 4 row tiles per image -> grid (2, 4): exercises the pipelined
    # row-tiling path at this small size (512-1024 rows is the production sweet spot).
    out = basic_conv2d(x, conv_w, bn_gamma, bn_beta, bn_mean, bn_var,
                       stride=1, padding=1, tile_rows=128)
    out = jax.block_until_ready(out)
    assert out.shape == (N, Cout, H, W), out.shape
    out_f32 = out.astype(jnp.float32)

    # Tight check: reference on bf16-quantized operands with a bf16-rounded output (only
    # accumulation-order / final-rounding differences remain) -> validates conv indexing,
    # tap staging, BN fold and ReLU.
    ref_q = _reference(x, conv_w, bn_gamma, bn_beta, bn_mean, bn_var,
                       stride=1, padding=1, quantize_bf16=True)
    err_q = float(jnp.max(jnp.abs(out_f32 - ref_q)))
    assert jnp.allclose(out_f32, ref_q, atol=2e-2, rtol=2e-2), err_q

    # Loose check vs full-f32 reference: bounded by bf16 rounding of inputs/weights/output.
    ref = _reference(x, conv_w, bn_gamma, bn_beta, bn_mean, bn_var,
                     stride=1, padding=1, quantize_bf16=False)
    err = float(jnp.max(jnp.abs(out_f32 - ref)))
    assert jnp.allclose(out_f32, ref, atol=5e-2, rtol=5e-2), err

    print("KERNEL_OK")
</pallas_src>

<mosaic_0001>
module attributes {stable_mosaic.version = 11 : i64} {
  func.func @_conv_bn_relu_kernel(%arg0: i32, %arg1: i32, %arg2: memref<1x592x4xbf16, #tpu.memory_space<vmem>>, %arg3: memref<9x4x128xbf16, #tpu.memory_space<vmem>>, %arg4: memref<1x128xf32, #tpu.memory_space<vmem>>, %arg5: memref<1x128x128xbf16, #tpu.memory_space<vmem>>, %arg6: memref<128x128xf32, #tpu.memory_space<vmem>>, %arg7: memref<208x4xbf16, #tpu.memory_space<vmem>>) attributes {dimension_semantics = [#tpu.dimension_semantics<parallel>, #tpu.dimension_semantics<parallel>], iteration_bounds = array<i64: 2, 4>, scalar_prefetch = 0 : i64, scratch_operands = 2 : i64, tpu.core_type = #tpu.core_type<tc>, window_params = [{transform_indices = @transform_0, window_bounds = array<i64: 1, 592, 4>}, {pipeline_mode = #tpu.pipeline_mode<synchronous>, transform_indices = @transform_1, window_bounds = array<i64: 9, 4, 128>}, {pipeline_mode = #tpu.pipeline_mode<synchronous>, transform_indices = @transform_2, window_bounds = array<i64: 1, 128>}, {transform_indices = @transform_3, window_bounds = array<i64: 1, 128, 128>}]} {
    %c128_i32 = arith.constant 128 : i32
    %0 = arith.muli %arg1, %c128_i32 : i32
    %1 = tpu.assume_multiple %0, 16 : i32
    %c0 = arith.constant 0 : index
    %2 = arith.index_cast %1 : i32 to index
    %c0_0 = arith.constant 0 : index
    %3 = vector.load %arg2[%c0, %2, %c0_0] : memref<1x592x4xbf16, #tpu.memory_space<vmem>>, vector<1x208x4xbf16>
    %4 = vector.shape_cast %3 : vector<1x208x4xbf16> to vector<208x4xbf16>
    %c0_1 = arith.constant 0 : index
    %c0_2 = arith.constant 0 : index
    %5 = vector.load %arg7[%c0_1, %c0_2] : memref<208x4xbf16, #tpu.memory_space<vmem>>, vector<208x4xbf16>
    tpu.vector_store %arg7[%c0_1, %c0_2], %4 {strides = array<i32>} : memref<208x4xbf16, #tpu.memory_space<vmem>>, vector<208x4xbf16>,
    %c0_3 = arith.constant 0 : index
    %c0_4 = arith.constant 0 : index
    %6 = vector.load %arg7[%c0_3, %c0_4] : memref<208x4xbf16, #tpu.memory_space<vmem>>, vector<128x4xbf16>
    %c0_5 = arith.constant 0 : index
    %c0_6 = arith.constant 0 : index
    %c0_7 = arith.constant 0 : index
    %7 = vector.load %arg3[%c0_5, %c0_6, %c0_7] : memref<9x4x128xbf16, #tpu.memory_space<vmem>>, vector<1x4x128xbf16>
    %8 = vector.shape_cast %7 : vector<1x4x128xbf16> to vector<4x128xbf16>
    %cst = arith.constant dense<0.000000e+00> : vector<128x128xf32>
    %9 = tpu.matmul %6, %8, %cst {dimension_numbers = #tpu.dot_dimension_numbers<[1], [0], [0], [1], [0, 0, 1, 1], [], []>} : vector<128x4xbf16>, vector<4x128xbf16>, vector<128x128xf32> -> vector<128x128xf32>
    %c0_8 = arith.constant 0 : index
    %c0_9 = arith.constant 0 : index
    %10 = vector.load %arg6[%c0_8, %c0_9] : memref<128x128xf32, #tpu.memory_space<vmem>>, vector<128x128xf32>
    tpu.vector_store %arg6[%c0_8, %c0_9], %9 {strides = array<i32>} : memref<128x128xf32, #tpu.memory_space<vmem>>, vector<128x128xf32>,
    %c1 = arith.constant 1 : index
    %c0_10 = arith.constant 0 : index
    %11 = vector.load %arg7[%c1, %c0_10] : memref<208x4xbf16, #tpu.memory_space<vmem>>, vector<128x4xbf16>
    %c1_11 = arith.constant 1 : index
    %c0_12 = arith.constant 0 : index
    %c0_13 = arith.constant 0 : index
    %12 = vector.load %arg3[%c1_11, %c0_12, %c0_13] : memref<9x4x128xbf16, #tpu.memory_space<vmem>>, vector<1x4x128xbf16>
    %13 = vector.shape_cast %12 : vector<1x4x128xbf16> to vector<4x128xbf16>
    %cst_14 = arith.constant dense<0.000000e+00> : vector<128x128xf32>
    %14 = tpu.matmul %11, %13, %cst_14 {dimension_numbers = #tpu.dot_dimension_numbers<[1], [0], [0], [1], [0, 0, 1, 1], [], []>} : vector<128x4xbf16>, vector<4x128xbf16>, vector<128x128xf32> -> vector<128x128xf32>
    %c0_15 = arith.constant 0 : index
    %c0_16 = arith.constant 0 : index
    %15 = vector.load %arg6[%c0_15, %c0_16] : memref<128x128xf32, #tpu.memory_space<vmem>>, vector<128x128xf32>
    %16 = arith.addf %15, %14 : vector<128x128xf32>
    %c0_17 = arith.constant 0 : index
    %c0_18 = arith.constant 0 : index
    %17 = vector.load %arg6[%c0_17, %c0_18] : memref<128x128xf32, #tpu.memory_space<vmem>>, vector<128x128xf32>
    tpu.vector_store %arg6[%c0_17, %c0_18], %16 {strides = array<i32>} : memref<128x128xf32, #tpu.memory_space<vmem>>, vector<128x128xf32>,
    %c2 = arith.constant 2 : index
    %c0_19 = arith.constant 0 : index
    %18 = vector.load %arg7[%c2, %c0_19] : memref<208x4xbf16, #tpu.memory_space<vmem>>, vector<128x4xbf16>
    %c2_20 = arith.constant 2 : index
    %c0_21 = arith.constant 0 : index
    %c0_22 = arith.constant 0 : index
    %19 = vector.load %arg3[%c2_20, %c0_21, %c0_22] : memref<9x4x128xbf16, #tpu.memory_space<vmem>>, vector<1x4x128xbf16>
    %20 = vector.shape_cast %19 : vector<1x4x128xbf16> to vector<4x128xbf16>
    %cst_23 = arith.constant dense<0.000000e+00> : vector<128x128xf32>
    %21 = tpu.matmul %18, %20, %cst_23 {dimension_numbers = #tpu.dot_dimension_numbers<[1], [0], [0], [1], [0, 0, 1, 1], [], []>} : vector<128x4xbf16>, vector<4x128xbf16>, vector<128x128xf32> -> vector<128x128xf32>
    %c0_24 = arith.constant 0 : index
    %c0_25 = arith.constant 0 : index
    %22 = vector.load %arg6[%c0_24, %c0_25] : memref<128x128xf32, #tpu.memory_space<vmem>>, vector<128x128xf32>
    %23 = arith.addf %22, %21 : vector<128x128xf32>
    %c0_26 = arith.constant 0 : index
    %c0_27 = arith.constant 0 : index
    %24 = vector.load %arg6[%c0_26, %c0_27] : memref<128x128xf32, #tpu.memory_space<vmem>>, vector<128x128xf32>
    tpu.vector_store %arg6[%c0_26, %c0_27], %23 {strides = array<i32>} : memref<128x128xf32, #tpu.memory_space<vmem>>, vector<128x128xf32>,
    %c32 = arith.constant 32 : index
    %c0_28 = arith.constant 0 : index
    %25 = vector.load %arg7[%c32, %c0_28] : memref<208x4xbf16, #tpu.memory_space<vmem>>, vector<128x4xbf16>
    %c3 = arith.constant 3 : index
    %c0_29 = arith.constant 0 : index
    %c0_30 = arith.constant 0 : index
    %26 = vector.load %arg3[%c3, %c0_29, %c0_30] : memref<9x4x128xbf16, #tpu.memory_space<vmem>>, vector<1x4x128xbf16>
    %27 = vector.shape_cast %26 : vector<1x4x128xbf16> to vector<4x128xbf16>
    %cst_31 = arith.constant dense<0.000000e+00> : vector<128x128xf32>
    %28 = tpu.matmul %25, %27, %cst_31 {dimension_numbers = #tpu.dot_dimension_numbers<[1], [0], [0], [1], [0, 0, 1, 1], [], []>} : vector<128x4xbf16>, vector<4x128xbf16>, vector<128x128xf32> -> vector<128x128xf32>
    %c0_32 = arith.constant 0 : index
    %c0_33 = arith.constant 0 : index
    %29 = vector.load %arg6[%c0_32, %c0_33] : memref<128x128xf32, #tpu.memory_space<vmem>>, vector<128x128xf32>
    %30 = arith.addf %29, %28 : vector<128x128xf32>
    %c0_34 = arith.constant 0 : index
    %c0_35 = arith.constant 0 : index
    %31 = vector.load %arg6[%c0_34, %c0_35] : memref<128x128xf32, #tpu.memory_space<vmem>>, vector<128x128xf32>
    tpu.vector_store %arg6[%c0_34, %c0_35], %30 {strides = array<i32>} : memref<128x128xf32, #tpu.memory_space<vmem>>, vector<128x128xf32>,
    %c33 = arith.constant 33 : index
    %c0_36 = arith.constant 0 : index
    %32 = vector.load %arg7[%c33, %c0_36] : memref<208x4xbf16, #tpu.memory_space<vmem>>, vector<128x4xbf16>
    %c4 = arith.constant 4 : index
    %c0_37 = arith.constant 0 : index
    %c0_38 = arith.constant 0 : index
    %33 = vector.load %arg3[%c4, %c0_37, %c0_38] : memref<9x4x128xbf16, #tpu.memory_space<vmem>>, vector<1x4x128xbf16>
    %34 = vector.shape_cast %33 : vector<1x4x128xbf16> to vector<4x128xbf16>
    %cst_39 = arith.constant dense<0.000000e+00> : vector<128x128xf32>
    %35 = tpu.matmul %32, %34, %cst_39 {dimension_numbers = #tpu.dot_dimension_numbers<[1], [0], [0], [1], [0, 0, 1, 1], [], []>} : vector<128x4xbf16>, vector<4x128xbf16>, vector<128x128xf32> -> vector<128x128xf32>
    %c0_40 = arith.constant 0 : index
    %c0_41 = arith.constant 0 : index
    %36 = vector.load %arg6[%c0_40, %c0_41] : memref<128x128xf32, #tpu.memory_space<vmem>>, vector<128x128xf32>
    %37 = arith.addf %36, %35 : vector<128x128xf32>
    %c0_42 = arith.constant 0 : index
    %c0_43 = arith.constant 0 : index
    %38 = vector.load %arg6[%c0_42, %c0_43] : memref<128x128xf32, #tpu.memory_space<vmem>>, vector<128x128xf32>
    tpu.vector_store %arg6[%c0_42, %c0_43], %37 {strides = array<i32>} : memref<128x128xf32, #tpu.memory_space<vmem>>, vector<128x128xf32>,
    %c34 = arith.constant 34 : index
    %c0_44 = arith.constant 0 : index
    %39 = vector.load %arg7[%c34, %c0_44] : memref<208x4xbf16, #tpu.memory_space<vmem>>, vector<128x4xbf16>
    %c5 = arith.constant 5 : index
    %c0_45 = arith.constant 0 : index
    %c0_46 = arith.constant 0 : index
    %40 = vector.load %arg3[%c5, %c0_45, %c0_46] : memref<9x4x128xbf16, #tpu.memory_space<vmem>>, vector<1x4x128xbf16>
    %41 = vector.shape_cast %40 : vector<1x4x128xbf16> to vector<4x128xbf16>
    %cst_47 = arith.constant dense<0.000000e+00> : vector<128x128xf32>
    %42 = tpu.matmul %39, %41, %cst_47 {dimension_numbers = #tpu.dot_dimension_numbers<[1], [0], [0], [1], [0, 0, 1, 1], [], []>} : vector<128x4xbf16>, vector<4x128xbf16>, vector<128x128xf32> -> vector<128x128xf32>
    %c0_48 = arith.constant 0 : index
    %c0_49 = arith.constant 0 : index
    %43 = vector.load %arg6[%c0_48, %c0_49] : memref<128x128xf32, #tpu.memory_space<vmem>>, vector<128x128xf32>
    %44 = arith.addf %43, %42 : vector<128x128xf32>
    %c0_50 = arith.constant 0 : index
    %c0_51 = arith.constant 0 : index
    %45 = vector.load %arg6[%c0_50, %c0_51] : memref<128x128xf32, #tpu.memory_space<vmem>>, vector<128x128xf32>
    tpu.vector_store %arg6[%c0_50, %c0_51], %44 {strides = array<i32>} : memref<128x128xf32, #tpu.memory_space<vmem>>, vector<128x128xf32>,
    %c64 = arith.constant 64 : index
    %c0_52 = arith.constant 0 : index
    %46 = vector.load %arg7[%c64, %c0_52] : memref<208x4xbf16, #tpu.memory_space<vmem>>, vector<128x4xbf16>
    %c6 = arith.constant 6 : index
    %c0_53 = arith.constant 0 : index
    %c0_54 = arith.constant 0 : index
    %47 = vector.load %arg3[%c6, %c0_53, %c0_54] : memref<9x4x128xbf16, #tpu.memory_space<vmem>>, vector<1x4x128xbf16>
    %48 = vector.shape_cast %47 : vector<1x4x128xbf16> to vector<4x128xbf16>
    %cst_55 = arith.constant dense<0.000000e+00> : vector<128x128xf32>
    %49 = tpu.matmul %46, %48, %cst_55 {dimension_numbers = #tpu.dot_dimension_numbers<[1], [0], [0], [1], [0, 0, 1, 1], [], []>} : vector<128x4xbf16>, vector<4x128xbf16>, vector<128x128xf32> -> vector<128x128xf32>
    %c0_56 = arith.constant 0 : index
    %c0_57 = arith.constant 0 : index
    %50 = vector.load %arg6[%c0_56, %c0_57] : memref<128x128xf32, #tpu.memory_space<vmem>>, vector<128x128xf32>
    %51 = arith.addf %50, %49 : vector<128x128xf32>
    %c0_58 = arith.constant 0 : index
    %c0_59 = arith.constant 0 : index
    %52 = vector.load %arg6[%c0_58, %c0_59] : memref<128x128xf32, #tpu.memory_space<vmem>>, vector<128x128xf32>
    tpu.vector_store %arg6[%c0_58, %c0_59], %51 {strides = array<i32>} : memref<128x128xf32, #tpu.memory_space<vmem>>, vector<128x128xf32>,
    %c65 = arith.constant 65 : index
    %c0_60 = arith.constant 0 : index
    %53 = vector.load %arg7[%c65, %c0_60] : memref<208x4xbf16, #tpu.memory_space<vmem>>, vector<128x4xbf16>
    %c7 = arith.constant 7 : index
    %c0_61 = arith.constant 0 : index
    %c0_62 = arith.constant 0 : index
    %54 = vector.load %arg3[%c7, %c0_61, %c0_62] : memref<9x4x128xbf16, #tpu.memory_space<vmem>>, vector<1x4x128xbf16>
    %55 = vector.shape_cast %54 : vector<1x4x128xbf16> to vector<4x128xbf16>
    %cst_63 = arith.constant dense<0.000000e+00> : vector<128x128xf32>
    %56 = tpu.matmul %53, %55, %cst_63 {dimension_numbers = #tpu.dot_dimension_numbers<[1], [0], [0], [1], [0, 0, 1, 1], [], []>} : vector<128x4xbf16>, vector<4x128xbf16>, vector<128x128xf32> -> vector<128x128xf32>
    %c0_64 = arith.constant 0 : index
    %c0_65 = arith.constant 0 : index
    %57 = vector.load %arg6[%c0_64, %c0_65] : memref<128x128xf32, #tpu.memory_space<vmem>>, vector<128x128xf32>
    %58 = arith.addf %57, %56 : vector<128x128xf32>
    %c0_66 = arith.constant 0 : index
    %c0_67 = arith.constant 0 : index
    %59 = vector.load %arg6[%c0_66, %c0_67] : memref<128x128xf32, #tpu.memory_space<vmem>>, vector<128x128xf32>
    tpu.vector_store %arg6[%c0_66, %c0_67], %58 {strides = array<i32>} : memref<128x128xf32, #tpu.memory_space<vmem>>, vector<128x128xf32>,
    %c66 = arith.constant 66 : index
    %c0_68 = arith.constant 0 : index
    %60 = vector.load %arg7[%c66, %c0_68] : memref<208x4xbf16, #tpu.memory_space<vmem>>, vector<128x4xbf16>
    %c8 = arith.constant 8 : index
    %c0_69 = arith.constant 0 : index
    %c0_70 = arith.constant 0 : index
    %61 = vector.load %arg3[%c8, %c0_69, %c0_70] : memref<9x4x128xbf16, #tpu.memory_space<vmem>>, vector<1x4x128xbf16>
    %62 = vector.shape_cast %61 : vector<1x4x128xbf16> to vector<4x128xbf16>
    %cst_71 = arith.constant dense<0.000000e+00> : vector<128x128xf32>
    %63 = tpu.matmul %60, %62, %cst_71 {dimension_numbers = #tpu.dot_dimension_numbers<[1], [0], [0], [1], [0, 0, 1, 1], [], []>} : vector<128x4xbf16>, vector<4x128xbf16>, vector<128x128xf32> -> vector<128x128xf32>
    %c0_72 = arith.constant 0 : index
    %c0_73 = arith.constant 0 : index
    %64 = vector.load %arg6[%c0_72, %c0_73] : memref<128x128xf32, #tpu.memory_space<vmem>>, vector<128x128xf32>
    %65 = arith.addf %64, %63 : vector<128x128xf32>
    %c0_74 = arith.constant 0 : index
    %c0_75 = arith.constant 0 : index
    %66 = vector.load %arg6[%c0_74, %c0_75] : memref<128x128xf32, #tpu.memory_space<vmem>>, vector<128x128xf32>
    tpu.vector_store %arg6[%c0_74, %c0_75], %65 {strides = array<i32>} : memref<128x128xf32, #tpu.memory_space<vmem>>, vector<128x128xf32>,
    %c0_76 = arith.constant 0 : index
    %c0_77 = arith.constant 0 : index
    %67 = vector.load %arg6[%c0_76, %c0_77] : memref<128x128xf32, #tpu.memory_space<vmem>>, vector<128x128xf32>
    %c0_78 = arith.constant 0 : index
    %c0_79 = arith.constant 0 : index
    %68 = vector.load %arg4[%c0_78, %c0_79] : memref<1x128xf32, #tpu.memory_space<vmem>>, vector<1x128xf32>
    %69 = vector.broadcast %68 : vector<1x128xf32> to vector<128x128xf32>
    %70 = arith.addf %67, %69 : vector<128x128xf32>
    %cst_80 = arith.constant 0.000000e+00 : f32
    %71 = vector.broadcast %cst_80 : f32 to vector<128x128xf32>
    %72 = arith.maximumf %70, %71 : vector<128x128xf32>
    %73 = arith.truncf %72 : vector<128x128xf32> to vector<128x128xbf16>
    %c0_81 = arith.constant 0 : index
    %c0_82 = arith.constant 0 : index
    %c0_83 = arith.constant 0 : index
    %74 = vector.load %arg5[%c0_81, %c0_82, %c0_83] : memref<1x128x128xbf16, #tpu.memory_space<vmem>>, vector<1x128x128xbf16>
    %75 = vector.shape_cast %74 : vector<1x128x128xbf16> to vector<128x128xbf16>
    %76 = vector.shape_cast %73 : vector<128x128xbf16> to vector<1x128x128xbf16>
    tpu.vector_store %arg5[%c0_81, %c0_82, %c0_83], %76 {strides = array<i32>} : memref<1x128x128xbf16, #tpu.memory_space<vmem>>, vector<1x128x128xbf16>,
    return
  }
  func.func @transform_0(%arg0: i32, %arg1: i32) -> (i32, i32, i32) {
    %c0_i32 = arith.constant 0 : i32
    %c0_i32_0 = arith.constant 0 : i32
    %c0_i32_1 = arith.constant 0 : i32
    return %arg0, %c0_i32, %c0_i32_0 : i32, i32, i32
  }
  func.func @transform_1(%arg0: i32, %arg1: i32) -> (i32, i32, i32) {
    %c0_i32 = arith.constant 0 : i32
    %c0_i32_0 = arith.constant 0 : i32
    %c0_i32_1 = arith.constant 0 : i32
    %c0_i32_2 = arith.constant 0 : i32
    return %c0_i32, %c0_i32_0, %c0_i32_1 : i32, i32, i32
  }
  func.func @transform_2(%arg0: i32, %arg1: i32) -> (i32, i32) {
    %c0_i32 = arith.constant 0 : i32
    %c0_i32_0 = arith.constant 0 : i32
    %c0_i32_1 = arith.constant 0 : i32
    return %c0_i32, %c0_i32_0 : i32, i32
  }
  func.func @transform_3(%arg0: i32, %arg1: i32) -> (i32, i32, i32) {
    %c0_i32 = arith.constant 0 : i32
    %c0_i32_0 = arith.constant 0 : i32
    return %arg0, %arg1, %c0_i32 : i32, i32, i32
  }
}

module attributes {stable_mosaic.version = 11 : i64} {
  func.func @_conv_bn_relu_kernel(%arg0: i32, %arg1: i32, %arg2: memref<1x592x4xbf16, #tpu.memory_space<vmem>>, %arg3: memref<9x4x128xbf16, #tpu.memory_space<vmem>>, %arg4: memref<1x128xf32, #tpu.memory_space<vmem>>, %arg5: memref<1x128x128xbf16, #tpu.memory_space<vmem>>, %arg6: memref<128x128xf32, #tpu.memory_space<vmem>>, %arg7: memref<208x4xbf16, #tpu.memory_space<vmem>>) attributes {dimension_semantics = [#tpu.dimension_semantics<parallel>, #tpu.dimension_semantics<parallel>], iteration_bounds = array<i64: 2, 4>, scalar_prefetch = 0 : i64, scratch_operands = 2 : i64, tpu.core_type = #tpu.core_type<tc>, window_params = [{transform_indices = @transform_0, window_bounds = array<i64: 1, 592, 4>}, {pipeline_mode = #tpu.pipeline_mode<synchronous>, transform_indices = @transform_1, window_bounds = array<i64: 9, 4, 128>}, {pipeline_mode = #tpu.pipeline_mode<synchronous>, transform_indices = @transform_2, window_bounds = array<i64: 1, 128>}, {transform_indices = @transform_3, window_bounds = array<i64: 1, 128, 128>}]} {
    %c128_i32 = arith.constant 128 : i32
    %0 = arith.muli %arg1, %c128_i32 : i32
    %1 = tpu.assume_multiple %0, 16 : i32
    %c0 = arith.constant 0 : index
    %2 = arith.index_cast %1 : i32 to index
    %c0_0 = arith.constant 0 : index
    %3 = vector.load %arg2[%c0, %2, %c0_0] : memref<1x592x4xbf16, #tpu.memory_space<vmem>>, vector<1x208x4xbf16>
    %4 = vector.shape_cast %3 : vector<1x208x4xbf16> to vector<208x4xbf16>
    %c0_1 = arith.constant 0 : index
    %c0_2 = arith.constant 0 : index
    %5 = vector.load %arg7[%c0_1, %c0_2] : memref<208x4xbf16, #tpu.memory_space<vmem>>, vector<208x4xbf16>
    tpu.vector_store %arg7[%c0_1, %c0_2], %4 {strides = array<i32>} : memref<208x4xbf16, #tpu.memory_space<vmem>>, vector<208x4xbf16>,
    %c0_3 = arith.constant 0 : index
    %c0_4 = arith.constant 0 : index
    %6 = vector.load %arg7[%c0_3, %c0_4] : memref<208x4xbf16, #tpu.memory_space<vmem>>, vector<128x4xbf16>
    %c0_5 = arith.constant 0 : index
    %c0_6 = arith.constant 0 : index
    %c0_7 = arith.constant 0 : index
    %7 = vector.load %arg3[%c0_5, %c0_6, %c0_7] : memref<9x4x128xbf16, #tpu.memory_space<vmem>>, vector<1x4x128xbf16>
    %8 = vector.shape_cast %7 : vector<1x4x128xbf16> to vector<4x128xbf16>
    %cst = arith.constant dense<0.000000e+00> : vector<128x128xf32>
    %9 = tpu.matmul %6, %8, %cst {dimension_numbers = #tpu.dot_dimension_numbers<[1], [0], [0], [1], [0, 0, 1, 1], [], []>} : vector<128x4xbf16>, vector<4x128xbf16>, vector<128x128xf32> -> vector<128x128xf32>
    %c0_8 = arith.constant 0 : index
    %c0_9 = arith.constant 0 : index
    %10 = vector.load %arg6[%c0_8, %c0_9] : memref<128x128xf32, #tpu.memory_space<vmem>>, vector<128x128xf32>
    tpu.vector_store %arg6[%c0_8, %c0_9], %9 {strides = array<i32>} : memref<128x128xf32, #tpu.memory_space<vmem>>, vector<128x128xf32>,
    %c1 = arith.constant 1 : index
    %c0_10 = arith.constant 0 : index
    %11 = vector.load %arg7[%c1, %c0_10] : memref<208x4xbf16, #tpu.memory_space<vmem>>, vector<128x4xbf16>
    %c1_11 = arith.constant 1 : index
    %c0_12 = arith.constant 0 : index
    %c0_13 = arith.constant 0 : index
    %12 = vector.load %arg3[%c1_11, %c0_12, %c0_13] : memref<9x4x128xbf16, #tpu.memory_space<vmem>>, vector<1x4x128xbf16>
    %13 = vector.shape_cast %12 : vector<1x4x128xbf16> to vector<4x128xbf16>
    %cst_14 = arith.constant dense<0.000000e+00> : vector<128x128xf32>
    %14 = tpu.matmul %11, %13, %cst_14 {dimension_numbers = #tpu.dot_dimension_numbers<[1], [0], [0], [1], [0, 0, 1, 1], [], []>} : vector<128x4xbf16>, vector<4x128xbf16>, vector<128x128xf32> -> vector<128x128xf32>
    %c0_15 = arith.constant 0 : index
    %c0_16 = arith.constant 0 : index
    %15 = vector.load %arg6[%c0_15, %c0_16] : memref<128x128xf32, #tpu.memory_space<vmem>>, vector<128x128xf32>
    %16 = arith.addf %15, %14 : vector<128x128xf32>
    %c0_17 = arith.constant 0 : index
    %c0_18 = arith.constant 0 : index
    %17 = vector.load %arg6[%c0_17, %c0_18] : memref<128x128xf32, #tpu.memory_space<vmem>>, vector<128x128xf32>
    tpu.vector_store %arg6[%c0_17, %c0_18], %16 {strides = array<i32>} : memref<128x128xf32, #tpu.memory_space<vmem>>, vector<128x128xf32>,
    %c2 = arith.constant 2 : index
    %c0_19 = arith.constant 0 : index
    %18 = vector.load %arg7[%c2, %c0_19] : memref<208x4xbf16, #tpu.memory_space<vmem>>, vector<128x4xbf16>
    %c2_20 = arith.constant 2 : index
    %c0_21 = arith.constant 0 : index
    %c0_22 = arith.constant 0 : index
    %19 = vector.load %arg3[%c2_20, %c0_21, %c0_22] : memref<9x4x128xbf16, #tpu.memory_space<vmem>>, vector<1x4x128xbf16>
    %20 = vector.shape_cast %19 : vector<1x4x128xbf16> to vector<4x128xbf16>
    %cst_23 = arith.constant dense<0.000000e+00> : vector<128x128xf32>
    %21 = tpu.matmul %18, %20, %cst_23 {dimension_numbers = #tpu.dot_dimension_numbers<[1], [0], [0], [1], [0, 0, 1, 1], [], []>} : vector<128x4xbf16>, vector<4x128xbf16>, vector<128x128xf32> -> vector<128x128xf32>
    %c0_24 = arith.constant 0 : index
    %c0_25 = arith.constant 0 : index
    %22 = vector.load %arg6[%c0_24, %c0_25] : memref<128x128xf32, #tpu.memory_space<vmem>>, vector<128x128xf32>
    %23 = arith.addf %22, %21 : vector<128x128xf32>
    %c0_26 = arith.constant 0 : index
    %c0_27 = arith.constant 0 : index
    %24 = vector.load %arg6[%c0_26, %c0_27] : memref<128x128xf32, #tpu.memory_space<vmem>>, vector<128x128xf32>
    tpu.vector_store %arg6[%c0_26, %c0_27], %23 {strides = array<i32>} : memref<128x128xf32, #tpu.memory_space<vmem>>, vector<128x128xf32>,
    %c32 = arith.constant 32 : index
    %c0_28 = arith.constant 0 : index
    %25 = vector.load %arg7[%c32, %c0_28] : memref<208x4xbf16, #tpu.memory_space<vmem>>, vector<128x4xbf16>
    %c3 = arith.constant 3 : index
    %c0_29 = arith.constant 0 : index
    %c0_30 = arith.constant 0 : index
    %26 = vector.load %arg3[%c3, %c0_29, %c0_30] : memref<9x4x128xbf16, #tpu.memory_space<vmem>>, vector<1x4x128xbf16>
    %27 = vector.shape_cast %26 : vector<1x4x128xbf16> to vector<4x128xbf16>
    %cst_31 = arith.constant dense<0.000000e+00> : vector<128x128xf32>
    %28 = tpu.matmul %25, %27, %cst_31 {dimension_numbers = #tpu.dot_dimension_numbers<[1], [0], [0], [1], [0, 0, 1, 1], [], []>} : vector<128x4xbf16>, vector<4x128xbf16>, vector<128x128xf32> -> vector<128x128xf32>
    %c0_32 = arith.constant 0 : index
    %c0_33 = arith.constant 0 : index
    %29 = vector.load %arg6[%c0_32, %c0_33] : memref<128x128xf32, #tpu.memory_space<vmem>>, vector<128x128xf32>
    %30 = arith.addf %29, %28 : vector<128x128xf32>
    %c0_34 = arith.constant 0 : index
    %c0_35 = arith.constant 0 : index
    %31 = vector.load %arg6[%c0_34, %c0_35] : memref<128x128xf32, #tpu.memory_space<vmem>>, vector<128x128xf32>
    tpu.vector_store %arg6[%c0_34, %c0_35], %30 {strides = array<i32>} : memref<128x128xf32, #tpu.memory_space<vmem>>, vector<128x128xf32>,
    %c33 = arith.constant 33 : index
    %c0_36 = arith.constant 0 : index
    %32 = vector.load %arg7[%c33, %c0_36] : memref<208x4xbf16, #tpu.memory_space<vmem>>, vector<128x4xbf16>
    %c4 = arith.constant 4 : index
    %c0_37 = arith.constant 0 : index
    %c0_38 = arith.constant 0 : index
    %33 = vector.load %arg3[%c4, %c0_37, %c0_38] : memref<9x4x128xbf16, #tpu.memory_space<vmem>>, vector<1x4x128xbf16>
    %34 = vector.shape_cast %33 : vector<1x4x128xbf16> to vector<4x128xbf16>
    %cst_39 = arith.constant dense<0.000000e+00> : vector<128x128xf32>
    %35 = tpu.matmul %32, %34, %cst_39 {dimension_numbers = #tpu.dot_dimension_numbers<[1], [0], [0], [1], [0, 0, 1, 1], [], []>} : vector<128x4xbf16>, vector<4x128xbf16>, vector<128x128xf32> -> vector<128x128xf32>
    %c0_40 = arith.constant 0 : index
    %c0_41 = arith.constant 0 : index
    %36 = vector.load %arg6[%c0_40, %c0_41] : memref<128x128xf32, #tpu.memory_space<vmem>>, vector<128x128xf32>
    %37 = arith.addf %36, %35 : vector<128x128xf32>
    %c0_42 = arith.constant 0 : index
    %c0_43 = arith.constant 0 : index
    %38 = vector.load %arg6[%c0_42, %c0_43] : memref<128x128xf32, #tpu.memory_space<vmem>>, vector<128x128xf32>
    tpu.vector_store %arg6[%c0_42, %c0_43], %37 {strides = array<i32>} : memref<128x128xf32, #tpu.memory_space<vmem>>, vector<128x128xf32>,
    %c34 = arith.constant 34 : index
    %c0_44 = arith.constant 0 : index
    %39 = vector.load %arg7[%c34, %c0_44] : memref<208x4xbf16, #tpu.memory_space<vmem>>, vector<128x4xbf16>
    %c5 = arith.constant 5 : index
    %c0_45 = arith.constant 0 : index
    %c0_46 = arith.constant 0 : index
    %40 = vector.load %arg3[%c5, %c0_45, %c0_46] : memref<9x4x128xbf16, #tpu.memory_space<vmem>>, vector<1x4x128xbf16>
    %41 = vector.shape_cast %40 : vector<1x4x128xbf16> to vector<4x128xbf16>
    %cst_47 = arith.constant dense<0.000000e+00> : vector<128x128xf32>
    %42 = tpu.matmul %39, %41, %cst_47 {dimension_numbers = #tpu.dot_dimension_numbers<[1], [0], [0], [1], [0, 0, 1, 1], [], []>} : vector<128x4xbf16>, vector<4x128xbf16>, vector<128x128xf32> -> vector<128x128xf32>
    %c0_48 = arith.constant 0 : index
    %c0_49 = arith.constant 0 : index
    %43 = vector.load %arg6[%c0_48, %c0_49] : memref<128x128xf32, #tpu.memory_space<vmem>>, vector<128x128xf32>
    %44 = arith.addf %43, %42 : vector<128x128xf32>
    %c0_50 = arith.constant 0 : index
    %c0_51 = arith.constant 0 : index
    %45 = vector.load %arg6[%c0_50, %c0_51] : memref<128x128xf32, #tpu.memory_space<vmem>>, vector<128x128xf32>
    tpu.vector_store %arg6[%c0_50, %c0_51], %44 {strides = array<i32>} : memref<128x128xf32, #tpu.memory_space<vmem>>, vector<128x128xf32>,
    %c64 = arith.constant 64 : index
    %c0_52 = arith.constant 0 : index
    %46 = vector.load %arg7[%c64, %c0_52] : memref<208x4xbf16, #tpu.memory_space<vmem>>, vector<128x4xbf16>
    %c6 = arith.constant 6 : index
    %c0_53 = arith.constant 0 : index
    %c0_54 = arith.constant 0 : index
    %47 = vector.load %arg3[%c6, %c0_53, %c0_54] : memref<9x4x128xbf16, #tpu.memory_space<vmem>>, vector<1x4x128xbf16>
    %48 = vector.shape_cast %47 : vector<1x4x128xbf16> to vector<4x128xbf16>
    %cst_55 = arith.constant dense<0.000000e+00> : vector<128x128xf32>
    %49 = tpu.matmul %46, %48, %cst_55 {dimension_numbers = #tpu.dot_dimension_numbers<[1], [0], [0], [1], [0, 0, 1, 1], [], []>} : vector<128x4xbf16>, vector<4x128xbf16>, vector<128x128xf32> -> vector<128x128xf32>
    %c0_56 = arith.constant 0 : index
    %c0_57 = arith.constant 0 : index
    %50 = vector.load %arg6[%c0_56, %c0_57] : memref<128x128xf32, #tpu.memory_space<vmem>>, vector<128x128xf32>
    %51 = arith.addf %50, %49 : vector<128x128xf32>
    %c0_58 = arith.constant 0 : index
    %c0_59 = arith.constant 0 : index
    %52 = vector.load %arg6[%c0_58, %c0_59] : memref<128x128xf32, #tpu.memory_space<vmem>>, vector<128x128xf32>
    tpu.vector_store %arg6[%c0_58, %c0_59], %51 {strides = array<i32>} : memref<128x128xf32, #tpu.memory_space<vmem>>, vector<128x128xf32>,
    %c65 = arith.constant 65 : index
    %c0_60 = arith.constant 0 : index
    %53 = vector.load %arg7[%c65, %c0_60] : memref<208x4xbf16, #tpu.memory_space<vmem>>, vector<128x4xbf16>
    %c7 = arith.constant 7 : index
    %c0_61 = arith.constant 0 : index
    %c0_62 = arith.constant 0 : index
    %54 = vector.load %arg3[%c7, %c0_61, %c0_62] : memref<9x4x128xbf16, #tpu.memory_space<vmem>>, vector<1x4x128xbf16>
    %55 = vector.shape_cast %54 : vector<1x4x128xbf16> to vector<4x128xbf16>
    %cst_63 = arith.constant dense<0.000000e+00> : vector<128x128xf32>
    %56 = tpu.matmul %53, %55, %cst_63 {dimension_numbers = #tpu.dot_dimension_numbers<[1], [0], [0], [1], [0, 0, 1, 1], [], []>} : vector<128x4xbf16>, vector<4x128xbf16>, vector<128x128xf32> -> vector<128x128xf32>
    %c0_64 = arith.constant 0 : index
    %c0_65 = arith.constant 0 : index
    %57 = vector.load %arg6[%c0_64, %c0_65] : memref<128x128xf32, #tpu.memory_space<vmem>>, vector<128x128xf32>
    %58 = arith.addf %57, %56 : vector<128x128xf32>
    %c0_66 = arith.constant 0 : index
    %c0_67 = arith.constant 0 : index
    %59 = vector.load %arg6[%c0_66, %c0_67] : memref<128x128xf32, #tpu.memory_space<vmem>>, vector<128x128xf32>
    tpu.vector_store %arg6[%c0_66, %c0_67], %58 {strides = array<i32>} : memref<128x128xf32, #tpu.memory_space<vmem>>, vector<128x128xf32>,
    %c66 = arith.constant 66 : index
    %c0_68 = arith.constant 0 : index
    %60 = vector.load %arg7[%c66, %c0_68] : memref<208x4xbf16, #tpu.memory_space<vmem>>, vector<128x4xbf16>
    %c8 = arith.constant 8 : index
    %c0_69 = arith.constant 0 : index
    %c0_70 = arith.constant 0 : index
    %61 = vector.load %arg3[%c8, %c0_69, %c0_70] : memref<9x4x128xbf16, #tpu.memory_space<vmem>>, vector<1x4x128xbf16>
    %62 = vector.shape_cast %61 : vector<1x4x128xbf16> to vector<4x128xbf16>
    %cst_71 = arith.constant dense<0.000000e+00> : vector<128x128xf32>
    %63 = tpu.matmul %60, %62, %cst_71 {dimension_numbers = #tpu.dot_dimension_numbers<[1], [0], [0], [1], [0, 0, 1, 1], [], []>} : vector<128x4xbf16>, vector<4x128xbf16>, vector<128x128xf32> -> vector<128x128xf32>
    %c0_72 = arith.constant 0 : index
    %c0_73 = arith.constant 0 : index
    %64 = vector.load %arg6[%c0_72, %c0_73] : memref<128x128xf32, #tpu.memory_space<vmem>>, vector<128x128xf32>
    %65 = arith.addf %64, %63 : vector<128x128xf32>
    %c0_74 = arith.constant 0 : index
    %c0_75 = arith.constant 0 : index
    %66 = vector.load %arg6[%c0_74, %c0_75] : memref<128x128xf32, #tpu.memory_space<vmem>>, vector<128x128xf32>
    tpu.vector_store %arg6[%c0_74, %c0_75], %65 {strides = array<i32>} : memref<128x128xf32, #tpu.memory_space<vmem>>, vector<128x128xf32>,
    %c0_76 = arith.constant 0 : index
    %c0_77 = arith.constant 0 : index
    %67 = vector.load %arg6[%c0_76, %c0_77] : memref<128x128xf32, #tpu.memory_space<vmem>>, vector<128x128xf32>
    %c0_78 = arith.constant 0 : index
    %c0_79 = arith.constant 0 : index
    %68 = vector.load %arg4[%c0_78, %c0_79] : memref<1x128xf32, #tpu.memory_space<vmem>>, vector<1x128xf32>
    %69 = vector.broadcast %68 : vector<1x128xf32> to vector<128x128xf32>
    %70 = arith.addf %67, %69 : vector<128x128xf32>
    %cst_80 = arith.constant 0.000000e+00 : f32
    %71 = vector.broadcast %cst_80 : f32 to vector<128x128xf32>
    %72 = arith.maximumf %70, %71 : vector<128x128xf32>
    %73 = arith.truncf %72 : vector<128x128xf32> to vector<128x128xbf16>
    %c0_81 = arith.constant 0 : index
    %c0_82 = arith.constant 0 : index
    %c0_83 = arith.constant 0 : index
    %74 = vector.load %arg5[%c0_81, %c0_82, %c0_83] : memref<1x128x128xbf16, #tpu.memory_space<vmem>>, vector<1x128x128xbf16>
    %75 = vector.shape_cast %74 : vector<1x128x128xbf16> to vector<128x128xbf16>
    %76 = vector.shape_cast %73 : vector<128x128xbf16> to vector<1x128x128xbf16>
    tpu.vector_store %arg5[%c0_81, %c0_82, %c0_83], %76 {strides = array<i32>} : memref<1x128x128xbf16, #tpu.memory_space<vmem>>, vector<1x128x128xbf16>,
    return
  }
  func.func @transform_0(%arg0: i32, %arg1: i32) -> (i32, i32, i32) {
    %c0_i32 = arith.constant 0 : i32
    %c0_i32_0 = arith.constant 0 : i32
    %c0_i32_1 = arith.constant 0 : i32
    return %arg0, %c0_i32, %c0_i32_0 : i32, i32, i32
  }
  func.func @transform_1(%arg0: i32, %arg1: i32) -> (i32, i32, i32) {
    %c0_i32 = arith.constant 0 : i32
    %c0_i32_0 = arith.constant 0 : i32
    %c0_i32_1 = arith.constant 0 : i32
    %c0_i32_2 = arith.constant 0 : i32
    return %c0_i32, %c0_i32_0, %c0_i32_1 : i32, i32, i32
  }
  func.func @transform_2(%arg0: i32, %arg1: i32) -> (i32, i32) {
    %c0_i32 = arith.constant 0 : i32
    %c0_i32_0 = arith.constant 0 : i32
    %c0_i32_1 = arith.constant 0 : i32
    return %c0_i32, %c0_i32_0 : i32, i32
  }
  func.func @transform_3(%arg0: i32, %arg1: i32) -> (i32, i32, i32) {
    %c0_i32 = arith.constant 0 : i32
    %c0_i32_0 = arith.constant 0 : i32
    return %arg0, %arg1, %c0_i32 : i32, i32, i32
  }
}

</mosaic_0001>

<llo_original>
// kernel: tpu_custom_call.1
$region0: #{tpu_custom_call.1}
  #allocation0 [shape = 'u32[]', space=smem, size = 0x4, offset = 0x4, fixed_abs, tag = 'smem constant byte address 0x4 - core index']
  #allocation1 [shape = 'u32[144,128]{1,0:T(1,128)}', space=vmem, size = 0x12000, scoped, tag = 'internal scratch']
  #allocation2 [shape = 'f32[128,128]{1,0:T(8,128)}', space=vmem, size = 0x10000, scoped, tag = 'scratch operand']
  #allocation3 [shape = 'bf16[208,4]{1,0:T(16,128)(2,1)}', space=vmem, size = 0xd000, scoped, tag = 'scratch operand']
  %s0 = inlined_call_operand.vmem [shape: bf16[2,592,4], index: 0, kind: input, shape index: {}]
  %s1 = inlined_call_operand.vmem [shape: bf16[9,4,128], index: 1, kind: input, shape index: {}]
  %s2 = inlined_call_operand.vmem [shape: f32[1,128], index: 2, kind: input, shape index: {}]
  %s3 = inlined_call_operand.hbm [shape: bf16[2,512,128], index: 3, kind: output, shape index: {}]
  %s4 = sld [smem:[#allocation0]]
  $region45: #{tpu_custom_call.1} parent=0
    _
  %s6 = ssub.s32 1, %s4
  %s7 = scalar_select 0, %s6, %s4
  $region1: #{tpu_custom_call.1} parent=0
    #allocation4 [shape = 'u8[65536]{0}', space=vmem, size = 0x10000, scoped, tag = 'output window, operand 0']
    #allocation5 [shape = 's32[2]{0}', space=sflag, size = 0x8, scoped, tag = 'scoped memory for tpu_custom_call.1']
    %8 = vsyncpa [#allocation5], 0
    %s9 = scalar_lea.sflag [#allocation5], 1
    %10 = vsyncpa %s9, 0
    loop: start=0, step=1, limit=10
    $region2: #{tpu_custom_call.1} parent=1 // loop_pre_header
      _
    $region3: #{tpu_custom_call.1} parent=1 // loop_header
      %s12 = sphi 0, %s16
      %p13 = scmp.ge.s32.totalorder %s12, 10
      %s19 = sphi 0, %s31
      %s20 = sphi 0, %s27
      %s21 = sphi 0, %s19
      %s22 = sphi 0, %s20
      %s23 = sphi 0, %s21
      %s24 = sphi 0, %s22
      %s34 = sphi 0, %s36
      %s37 = sphi 0, %s34
      %s38 = sphi 0, %s37
      %s54 = sphi 0, %s38
      %s58 = sphi 0, %s58
      %s60 = sphi 0, %s58
      %s61 = sphi 0, %s60
      %s75 = sphi 0, %s61
      %s79 = sphi 0, %s79
      %s81 = sphi 0, %s79
      %s82 = sphi 0, %s81
      %s96 = sphi 0, %s82
      %s104 = sphi 0, %s106
      %s107 = sphi 0, %s104
      %s108 = sphi 0, %s107
      %s124 = sphi 0, %s108
    $region4: #{tpu_custom_call.1} parent=1 // loop_header_branch
      %15 = sbr.rel (%p13) target = $region8
    $region5: #{tpu_custom_call.1} parent=1 // loop_body
      %s17 = ssub.s32 %s12, 1
      %s18 = ssub.s32 %s12, 2
      %s25 = sadd.s32 1, %s20
      %p26 = scmp.ge.s32.totalorder %s25, 4
      %s27 = scalar_select %p26, 0, %s25
      %s28 = sadd.s32 1, %s19
      %s29 = scalar_select %p26, %s28, %s19
      %p30 = scmp.ge.s32.totalorder %s29, 2
      %s31 = scalar_select %p30, 0, %s29
      %s32 = ssub.s32 %s19, %s31
      %p33 = scmp.eq.s32.totalorder %s32, 0
      %s35 = sadd.s32 %s34, 1
      %s36 = scalar_select %p33, %s34, %s35
      %p39 = pneg %p33
      %p40 = scmp.eq.s32.totalorder %s12, 7
      %p41 = por %p39, %p40
      %p42 = scmp.ne.s32.totalorder %s34, %s37
      %p43 = scmp.eq.s32.totalorder %s12, 0
      %p44 = por %p42, %p43
      %p45 = scmp.ne.s32.totalorder %s34, %s37
      %p46 = scmp.eq.s32.totalorder %s17, 7
      %p47 = por %p45, %p46
      %p48 = scmp.ne.s32.totalorder %s37, %s38
      %p49 = scmp.eq.s32.totalorder %s17, 0
      %p50 = por %p48, %p49
      %p51 = scmp.ne.s32.totalorder %s37, %s38
      %p52 = scmp.eq.s32.totalorder %s18, 7
      %p53 = por %p51, %p52
      %p55 = scmp.ne.s32.totalorder %s38, %s54
      %p56 = scmp.eq.s32.totalorder %s18, 0
      %p57 = por %p55, %p56
      %s59 = sadd.s32 %s58, 1
      %p62 = scmp.eq.s32.totalorder %s12, 7
      %p63 = scmp.ne.s32.totalorder %s58, %s60
      %p64 = scmp.eq.s32.totalorder %s12, 0
      %p65 = por %p63, %p64
      %p66 = scmp.ne.s32.totalorder %s58, %s60
      %p67 = scmp.eq.s32.totalorder %s17, 7
      %p68 = por %p66, %p67
      %p69 = scmp.ne.s32.totalorder %s60, %s61
      %p70 = scmp.eq.s32.totalorder %s17, 0
      %p71 = por %p69, %p70
      %p72 = scmp.ne.s32.totalorder %s60, %s61
      %p73 = scmp.eq.s32.totalorder %s18, 7
      %p74 = por %p72, %p73
      %p76 = scmp.ne.s32.totalorder %s61, %s75
      %p77 = scmp.eq.s32.totalorder %s18, 0
      %p78 = por %p76, %p77
      %s80 = sadd.s32 %s79, 1
      %p83 = scmp.eq.s32.totalorder %s12, 7
      %p84 = scmp.ne.s32.totalorder %s79, %s81
      %p85 = scmp.eq.s32.totalorder %s12, 0
      %p86 = por %p84, %p85
      %p87 = scmp.ne.s32.totalorder %s79, %s81
      %p88 = scmp.eq.s32.totalorder %s17, 7
      %p89 = por %p87, %p88
      %p90 = scmp.ne.s32.totalorder %s81, %s82
      %p91 = scmp.eq.s32.totalorder %s17, 0
      %p92 = por %p90, %p91
      %p93 = scmp.ne.s32.totalorder %s81, %s82
      %p94 = scmp.eq.s32.totalorder %s18, 7
      %p95 = por %p93, %p94
      %p97 = scmp.ne.s32.totalorder %s82, %s96
      %p98 = scmp.eq.s32.totalorder %s18, 0
      %p99 = por %p97, %p98
      %s100 = ssub.s32 %s19, %s31
      %s101 = ssub.s32 %s20, %s27
      %s102 = sor.u32 %s100, %s101
      %p103 = scmp.eq.s32.totalorder %s102, 0
      %s105 = sadd.s32 %s104, 1
      %s106 = scalar_select %p103, %s104, %s105
      %p109 = pneg %p103
      %p110 = scmp.eq.s32.totalorder %s12, 7
      %p111 = por %p109, %p110
      %p112 = scmp.ne.s32.totalorder %s104, %s107
      %p113 = scmp.eq.s32.totalorder %s12, 0
      %p114 = por %p112, %p113
      %p115 = scmp.ne.s32.totalorder %s104, %s107
      %p116 = scmp.eq.s32.totalorder %s17, 7
      %p117 = por %p115, %p116
      %p118 = scmp.ne.s32.totalorder %s107, %s108
      %p119 = scmp.eq.s32.totalorder %s17, 0
      %p120 = por %p118, %p119
      %p121 = scmp.ne.s32.totalorder %s107, %s108
      %p122 = scmp.eq.s32.totalorder %s18, 7
      %p123 = por %p121, %p122
      %p125 = scmp.ne.s32.totalorder %s108, %s124
      %p126 = scmp.eq.s32.totalorder %s18, 0
      %p127 = por %p125, %p126
      %p128 = scmp.le.s32.totalorder 1, %s12
      %p129 = scmp.lt.s32.totalorder %s12, 9
      %p130 = pnand %p128, %p129
      %p131 = pneg %p130
      // Predicated region
      $region9: #{tpu_custom_call.1} parent=5 // pred_check
        _
      $region10: #{tpu_custom_call.1} parent=5 // pred_check_branch
        %133 = sbr.rel (%p130) target = $region12
      $region11: #{tpu_custom_call.1} parent=5 // pred_region
        %s134 = ssub.s32 %s12, 1
        // Predicated region
        $region13: #{tpu_custom_call.1} parent=11 // pred_check
          %p135 = pneg %p71
        $region14: #{tpu_custom_call.1} parent=11 // pred_check_branch
          %137 = sbr.rel (%p135) target = $region16
        $region15: #{tpu_custom_call.1} parent=11 // pred_region
          _
        $region16: #{tpu_custom_call.1} parent=11 // pred_fallthru
          _
        // Predicated region
        $region17: #{tpu_custom_call.1} parent=11 // pred_check
          %p138 = pneg %p92
        $region18: #{tpu_custom_call.1} parent=11 // pred_check_branch
          %140 = sbr.rel (%p138) target = $region20
        $region19: #{tpu_custom_call.1} parent=11 // pred_region
          _
        $region20: #{tpu_custom_call.1} parent=11 // pred_fallthru
          _
      $region12: #{tpu_custom_call.1} parent=5 // pred_fallthru
        _
      %p141 = scmp.lt.s32.totalorder %s12, 8
      // Predicated region
      $region21: #{tpu_custom_call.1} parent=5 // pred_check
        %p142 = pneg %p141
      $region22: #{tpu_custom_call.1} parent=5 // pred_check_branch
        %144 = sbr.rel (%p142) target = $region24
      $region23: #{tpu_custom_call.1} parent=5 // pred_region
        // Predicated region
        $region25: #{tpu_custom_call.1} parent=23 // pred_check
          %p145 = pneg %p44
        $region26: #{tpu_custom_call.1} parent=23 // pred_check_branch
          %147 = sbr.rel (%p145) target = $region28
        $region27: #{tpu_custom_call.1} parent=23 // pred_region
          %p148 = scmp.lt.s32.totalorder %s19, 1
          %s149 = scalar_select %p148, %s19, 1
          %s150 = smul.addr %s149, 74
          %s151 = smul.addr %s150, 4
          %s152 = scalar_lea.vmem %s0, %s151
        $region28: #{tpu_custom_call.1} parent=23 // pred_fallthru
          _
      $region24: #{tpu_custom_call.1} parent=5 // pred_fallthru
        _
      %p153 = scmp.le.s32.totalorder 1, %s12
      %p154 = scmp.lt.s32.totalorder %s12, 9
      %p155 = pnand %p153, %p154
      %p156 = pneg %p155
      // Predicated region
      $region29: #{tpu_custom_call.1} parent=5 // pred_check
        _
      $region30: #{tpu_custom_call.1} parent=5 // pred_check_branch
        %158 = sbr.rel (%p155) target = $region32
      $region31: #{tpu_custom_call.1} parent=5 // pred_region
        %s159 = ssub.s32 %s12, 1
        %p160 = scmp.lt.s32.totalorder %s21, 1
        %s161 = scalar_select %p160, %s21, 1
        %s162 = smul.addr %s161, 74
        %s163 = smul.addr %s162, 4
        %s164 = scalar_lea.vmem %s0, %s163
        %p165 = pneg %p50
        %p166 = pneg %p47
        %p167 = pneg %p71
        %p168 = pneg %p68
        %p169 = pneg %p92
        %p170 = pneg %p89
        %p171 = pneg %p120
        %p172 = pneg %p117
        %s173 = sand.u32 %s107, 1
        %s174 = scalar_lea.sflag [#allocation5], %s173
        %s175 = sand.u32 %s107, 1
        %s176 = smul.addr %s175, 64
        %s177 = scalar_lea.vmem [#allocation4], %s176
        %p178 = scmp.lt.s32.totalorder %s21, 1
        %s179 = scalar_select %p178, %s21, 1
        %s180 = smul.addr %s179, 74
        %s181 = smul.addr %s180, 4
        %s182 = scalar_lea.vmem %s0, %s181
        %s183 = smul.u32 16, %s22
        %s185 = smul.u32 %s22, 128
        %s186 = sshra.s32 %s185, 3
        %s187 = sand.u32 %s185, 7
        %s188 = smul.addr %s186, 4
        %s189 = scalar_lea.vmem %s182, %s188
        %v190 = vld [vmem:[%s189] sm:$0xf]
        %v191 = vld [vmem:[%s189 + $0x4] sm:$0xf]
        %v192 = vld [vmem:[%s189 + $0x8] sm:$0xf]
        %v193 = vld [vmem:[%s189 + $0xc] sm:$0xf]
        %v194 = vld [vmem:[%s189 + $0x10] sm:$0xf]
        %v195 = vld [vmem:[%s189 + $0x14] sm:$0xf]
        %v196 = vld [vmem:[%s189 + $0x18] sm:$0xf]
        %v197 = vld [vmem:[%s189 + $0x1c] sm:$0xf]
        %v198 = vld [vmem:[%s189 + $0x20] sm:$0xf]
        %v199 = vld [vmem:[%s189 + $0x24] sm:$0xf]
        %v200 = vld [vmem:[%s189 + $0x28] sm:$0xf]
        %v201 = vld [vmem:[%s189 + $0x2c] sm:$0xf]
        %v202 = vld [vmem:[%s189 + $0x30] sm:$0xf]
        %v203 = vld [vmem:[%s189 + $0x34] sm:$0xf]
        %v204 = vld [vmem:[%s189 + $0x38] sm:$0xf]
        %v205 = vld [vmem:[%s189 + $0x3c] sm:$0xf]
        %v206 = vld [vmem:[%s189 + $0x40] sm:$0xf]
        %v207 = vld [vmem:[%s189 + $0x44] sm:$0xf]
        %v208 = vld [vmem:[%s189 + $0x48] sm:$0xf]
        %v209 = vld [vmem:[%s189 + $0x4c] sm:$0xf]
        %v210 = vld [vmem:[%s189 + $0x50] sm:$0xf]
        %v211 = vld [vmem:[%s189 + $0x54] sm:$0xf]
        %v212 = vld [vmem:[%s189 + $0x58] sm:$0xf]
        %v213 = vld [vmem:[%s189 + $0x5c] sm:$0xf]
        %v214 = vld [vmem:[%s189 + $0x60] sm:$0xf]
        %v215 = vld [vmem:[%s189 + $0x64] sm:$0xf]
        %v242 = vunpack.c.l.b16 %v190
        %v243 = vunpack.c.l.b16 %v191
        %v244 = vunpack.c.l.b16 %v192
        %v245 = vunpack.c.l.b16 %v193
        %v246 = vunpack.c.l.b16 %v194
        %v247 = vunpack.c.l.b16 %v195
        %v248 = vunpack.c.l.b16 %v196
        %v249 = vunpack.c.l.b16 %v197
        %v250 = vunpack.c.l.b16 %v198
        %v251 = vunpack.c.l.b16 %v199
        %v252 = vunpack.c.l.b16 %v200
        %v253 = vunpack.c.l.b16 %v201
        %v254 = vunpack.c.l.b16 %v202
        %v255 = vunpack.c.l.b16 %v203
        %v256 = vunpack.c.l.b16 %v204
        %v257 = vunpack.c.l.b16 %v205
        %v258 = vunpack.c.l.b16 %v206
        %v259 = vunpack.c.l.b16 %v207
        %v260 = vunpack.c.l.b16 %v208
        %v261 = vunpack.c.l.b16 %v209
        %v262 = vunpack.c.l.b16 %v210
        %v263 = vunpack.c.l.b16 %v211
        %v264 = vunpack.c.l.b16 %v212
        %v265 = vunpack.c.l.b16 %v213
        %v266 = vunpack.c.l.b16 %v214
        %v267 = vunpack.c.l.b16 %v215
        %v268 = vpack.c.b16 %v243, %v242
        %v269 = vpack.c.b16 %v245, %v244
        %v270 = vpack.c.b16 %v247, %v246
        %v271 = vpack.c.b16 %v249, %v248
        %v272 = vpack.c.b16 %v251, %v250
        %v273 = vpack.c.b16 %v253, %v252
        %v274 = vpack.c.b16 %v255, %v254
        %v275 = vpack.c.b16 %v257, %v256
        %v276 = vpack.c.b16 %v259, %v258
        %v277 = vpack.c.b16 %v261, %v260
        %v278 = vpack.c.b16 %v263, %v262
        %v279 = vpack.c.b16 %v265, %v264
        %v280 = vpack.c.b16 %v267, %v266
        %vm294 = vcmask 31744
        %295 = vst.msk [vmem:[#allocation3] sm:$0xff] %vm294, %v268
        %296 = vst.msk [vmem:[#allocation3 + $0x8] sm:$0xff] %vm294, %v269
        %297 = vst.msk [vmem:[#allocation3 + $0x10] sm:$0xff] %vm294, %v270
        %298 = vst.msk [vmem:[#allocation3 + $0x18] sm:$0xff] %vm294, %v271
        %299 = vst.msk [vmem:[#allocation3 + $0x20] sm:$0xff] %vm294, %v272
        %300 = vst.msk [vmem:[#allocation3 + $0x28] sm:$0xff] %vm294, %v273
        %301 = vst.msk [vmem:[#allocation3 + $0x30] sm:$0xff] %vm294, %v274
        %302 = vst.msk [vmem:[#allocation3 + $0x38] sm:$0xff] %vm294, %v275
        %303 = vst.msk [vmem:[#allocation3 + $0x40] sm:$0xff] %vm294, %v276
        %304 = vst.msk [vmem:[#allocation3 + $0x48] sm:$0xff] %vm294, %v277
        %305 = vst.msk [vmem:[#allocation3 + $0x50] sm:$0xff] %vm294, %v278
        %306 = vst.msk [vmem:[#allocation3 + $0x58] sm:$0xff] %vm294, %v279
        %307 = vst.msk [vmem:[#allocation3 + $0x60] sm:$0xff] %vm294, %v280
        %v308 = vld [vmem:[#allocation3] sm:$0xff]
        %v309 = vld [vmem:[#allocation3 + $0x8] sm:$0xff]
        %v310 = vld [vmem:[#allocation3 + $0x10] sm:$0xff]
        %v311 = vld [vmem:[#allocation3 + $0x18] sm:$0xff]
        %v312 = vld [vmem:[#allocation3 + $0x20] sm:$0xff]
        %v313 = vld [vmem:[#allocation3 + $0x28] sm:$0xff]
        %v314 = vld [vmem:[#allocation3 + $0x30] sm:$0xff]
        %v315 = vld [vmem:[#allocation3 + $0x38] sm:$0xff]
        %v316 = vld [vmem:[%s1] sm:$0x3]
        %v318 = vsel %vm294, %v308, 0
        %v321 = vsel %vm294, %v309, 0
        %v324 = vsel %vm294, %v310, 0
        %v327 = vsel %vm294, %v311, 0
        %v330 = vsel %vm294, %v312, 0
        %v333 = vsel %vm294, %v313, 0
        %v336 = vsel %vm294, %v314, 0
        %v339 = vsel %vm294, %v315, 0
        %vm341 = vcmask 1041408
        %v343 = vsel %vm341, %v316, 0
        %345 = vmatprep.subr.bf16.mxu0 0
        %346 = vmatpush1.bf16.msra.mxu0 %v343
        %347 = vmatprep.subr.bf16.mxu0 0
        %348 = vmatpush1.bf16.msra.mxu0 0
        %349 = vmatprep.subr.bf16.mxu0 0
        %350 = vmatpush1.bf16.msra.mxu0 0
        %351 = vmatprep.subr.bf16.mxu0 0
        %352 = vmatpush1.bf16.msra.mxu0 0
        %353 = vmatprep.subr.bf16.mxu0 0
        %354 = vmatpush1.bf16.msra.mxu0 0
        %355 = vmatprep.subr.bf16.mxu0 0
        %356 = vmatpush1.bf16.msra.mxu0 0
        %357 = vmatprep.subr.bf16.mxu0 0
        %358 = vmatpush1.bf16.msra.mxu0 0
        %359 = vmatprep.subr.bf16.mxu0 0
        %360 = vmatpush1.bf16.msra.mxu0 0
        %361 = vmatprep.subr.bf16.mxu0 0
        %362 = vmatpush1.bf16.msra.mxu0 0
        %363 = vmatprep.subr.bf16.mxu0 0
        %364 = vmatpush1.bf16.msra.mxu0 0
        %365 = vmatprep.subr.bf16.mxu0 0
        %366 = vmatpush1.bf16.msra.mxu0 0
        %367 = vmatprep.subr.bf16.mxu0 0
        %368 = vmatpush1.bf16.msra.mxu0 0
        %369 = vmatprep.subr.bf16.mxu0 0
        %370 = vmatpush1.bf16.msra.mxu0 0
        %371 = vmatprep.subr.bf16.mxu0 0
        %372 = vmatpush1.bf16.msra.mxu0 0
        %373 = vmatprep.subr.bf16.mxu0 0
        %374 = vmatpush1.bf16.msra.mxu0 0
        %375 = vmatprep.subr.bf16.mxu0 0
        %376 = vmatpush1.bf16.msra.mxu0 0
        %377 = vmatprep.mubr.bf16.mxu0 0
        %378 = vmatmul.mubr.bf16.gmra.mrb[0].mxu0 %v318
        %v379 = vpop.f32.mrb[0].mxu0
        %v380 = vadd.f32 0.0, %v379
        %v381 = vpop.f32.mrb[0].mxu0
        %v382 = vpop.f32.mrb[0].mxu0
        %v383 = vadd.f32 0.0, %v382
        %v384 = vpop.f32.mrb[0].mxu0
        %385 = vmatprep.mubr.bf16.mxu0 0
        %386 = vmatmul.mubr.bf16.gmra.mrb[0].mxu0 %v321
        %v387 = vpop.f32.mrb[0].mxu0
        %v388 = vadd.f32 0.0, %v387
        %v389 = vpop.f32.mrb[0].mxu0
        %v390 = vpop.f32.mrb[0].mxu0
        %v391 = vadd.f32 0.0, %v390
        %v392 = vpop.f32.mrb[0].mxu0
        %393 = vmatprep.mubr.bf16.mxu0 0
        %394 = vmatmul.mubr.bf16.gmra.mrb[0].mxu0 %v324
        %v395 = vpop.f32.mrb[0].mxu0
        %v396 = vadd.f32 0.0, %v395
        %v397 = vpop.f32.mrb[0].mxu0
        %v398 = vpop.f32.mrb[0].mxu0
        %v399 = vadd.f32 0.0, %v398
        %v400 = vpop.f32.mrb[0].mxu0
        %401 = vmatprep.mubr.bf16.mxu0 0
        %402 = vmatmul.mubr.bf16.gmra.mrb[0].mxu0 %v327
        %v403 = vpop.f32.mrb[0].mxu0
        %v404 = vadd.f32 0.0, %v403
        %v405 = vpop.f32.mrb[0].mxu0
        %v406 = vpop.f32.mrb[0].mxu0
        %v407 = vadd.f32 0.0, %v406
        %v408 = vpop.f32.mrb[0].mxu0
        %409 = vmatprep.mubr.bf16.mxu0 0
        %410 = vmatmul.mubr.bf16.gmra.mrb[0].mxu0 %v330
        %v411 = vpop.f32.mrb[0].mxu0
        %v412 = vadd.f32 0.0, %v411
        %v413 = vpop.f32.mrb[0].mxu0
        %v414 = vpop.f32.mrb[0].mxu0
        %v415 = vadd.f32 0.0, %v414
        %v416 = vpop.f32.mrb[0].mxu0
        %417 = vmatprep.mubr.bf16.mxu0 0
        %418 = vmatmul.mubr.bf16.gmra.mrb[0].mxu0 %v333
        %v419 = vpop.f32.mrb[0].mxu0
        %v420 = vadd.f32 0.0, %v419
        %v421 = vpop.f32.mrb[0].mxu0
        %v422 = vpop.f32.mrb[0].mxu0
        %v423 = vadd.f32 0.0, %v422
        %v424 = vpop.f32.mrb[0].mxu0
        %425 = vmatprep.mubr.bf16.mxu0 0
        %426 = vmatmul.mubr.bf16.gmra.mrb[0].mxu0 %v336
        %v427 = vpop.f32.mrb[0].mxu0
        %v428 = vadd.f32 0.0, %v427
        %v429 = vpop.f32.mrb[0].mxu0
        %v430 = vpop.f32.mrb[0].mxu0
        %v431 = vadd.f32 0.0, %v430
        %v432 = vpop.f32.mrb[0].mxu0
        %433 = vmatprep.mubr.bf16.mxu0 0
        %434 = vmatmul.mubr.bf16.gmra.mrb[0].mxu0 %v339
        %v435 = vpop.f32.mrb[0].mxu0
        %v436 = vadd.f32 0.0, %v435
        %v437 = vpop.f32.mrb[0].mxu0
        %v438 = vpop.f32.mrb[0].mxu0
        %v439 = vadd.f32 0.0, %v438
        %v440 = vpop.f32.mrb[0].mxu0
        %441 = vdwg.mxu0
        %442 = vst [vmem:[#allocation2] sm:$0xff] %v380
        %443 = vst [vmem:[#allocation2 + $0x8] sm:$0xff] %v383
        %444 = vst [vmem:[#allocation2 + $0x10] sm:$0xff] %v388
        %445 = vst [vmem:[#allocation2 + $0x18] sm:$0xff] %v391
        %446 = vst [vmem:[#allocation2 + $0x20] sm:$0xff] %v396
        %447 = vst [vmem:[#allocation2 + $0x28] sm:$0xff] %v399
        %448 = vst [vmem:[#allocation2 + $0x30] sm:$0xff] %v404
        %449 = vst [vmem:[#allocation2 + $0x38] sm:$0xff] %v407
        %450 = vst [vmem:[#allocation2 + $0x40] sm:$0xff] %v412
        %451 = vst [vmem:[#allocation2 + $0x48] sm:$0xff] %v415
        %452 = vst [vmem:[#allocation2 + $0x50] sm:$0xff] %v420
        %453 = vst [vmem:[#allocation2 + $0x58] sm:$0xff] %v423
        %454 = vst [vmem:[#allocation2 + $0x60] sm:$0xff] %v428
        %455 = vst [vmem:[#allocation2 + $0x68] sm:$0xff] %v431
        %456 = vst [vmem:[#allocation2 + $0x70] sm:$0xff] %v436
        %457 = vst [vmem:[#allocation2 + $0x78] sm:$0xff] %v439
        %v458 = vld [vmem:[#allocation3] sm:$0xff]
        %v459 = vld [vmem:[#allocation3 + $0x8] sm:$0xff]
        %v460 = vld [vmem:[#allocation3 + $0x10] sm:$0xff]
        %v461 = vld [vmem:[#allocation3 + $0x18] sm:$0xff]
        %v462 = vld [vmem:[#allocation3 + $0x20] sm:$0xff]
        %v463 = vld [vmem:[#allocation3 + $0x28] sm:$0xff]
        %v464 = vld [vmem:[#allocation3 + $0x30] sm:$0xff]
        %v465 = vld [vmem:[#allocation3 + $0x38] sm:$0xff]
        %v466 = vld [vmem:[#allocation3 + $0x40] sm:$0x1]
        %s467 = scalar_lea.vmem %s1, 2
        %v468 = vld [vmem:[%s467] sm:$0x3]
        %vm469 = vsmask.f32 7424
        %v471 = vshrl.u32 %v458, 16
        %v473 = vshll.u32 %v458, 16
        %v475 = vrot.slane %v473, 1
        %v476 = vor.u32 %v471, %v475
        %v478 = vshll.u32 %v459, 16
        %v480 = vrot.slane %v478, 1
        %v481 = vsel %vm469, %v476, %v480
        %v482 = vshrl.u32 %v459, 16
        %v484 = vor.u32 %v482, %v480
        %v486 = vshll.u32 %v460, 16
        %v488 = vrot.slane %v486, 1
        %v489 = vsel %vm469, %v484, %v488
        %v490 = vshrl.u32 %v460, 16
        %v492 = vor.u32 %v490, %v488
        %v494 = vshll.u32 %v461, 16
        %v496 = vrot.slane %v494, 1
        %v497 = vsel %vm469, %v492, %v496
        %v498 = vshrl.u32 %v461, 16
        %v500 = vor.u32 %v498, %v496
        %v502 = vshll.u32 %v462, 16
        %v504 = vrot.slane %v502, 1
        %v505 = vsel %vm469, %v500, %v504
        %v506 = vshrl.u32 %v462, 16
        %v508 = vor.u32 %v506, %v504
        %v510 = vshll.u32 %v463, 16
        %v512 = vrot.slane %v510, 1
        %v513 = vsel %vm469, %v508, %v512
        %v514 = vshrl.u32 %v463, 16
        %v516 = vor.u32 %v514, %v512
        %v518 = vshll.u32 %v464, 16
        %v520 = vrot.slane %v518, 1
        %v521 = vsel %vm469, %v516, %v520
        %v522 = vshrl.u32 %v464, 16
        %v524 = vor.u32 %v522, %v520
        %v526 = vshll.u32 %v465, 16
        %v528 = vrot.slane %v526, 1
        %v529 = vsel %vm469, %v524, %v528
        %v530 = vshrl.u32 %v465, 16
        %v532 = vor.u32 %v530, %v528
        %v534 = vshll.u32 %v466, 16
        %v536 = vrot.slane %v534, 1
        %v537 = vsel %vm469, %v532, %v536
        %v539 = vsel %vm294, %v481, 0
        %v542 = vsel %vm294, %v489, 0
        %v545 = vsel %vm294, %v497, 0
        %v548 = vsel %vm294, %v505, 0
        %v551 = vsel %vm294, %v513, 0
        %v554 = vsel %vm294, %v521, 0
        %v557 = vsel %vm294, %v529, 0
        %v560 = vsel %vm294, %v537, 0
        %v563 = vsel %vm341, %v468, 0
        %565 = vmatprep.subr.bf16.mxu0 0
        %566 = vmatpush1.bf16.msra.mxu0 %v563
        %567 = vmatprep.subr.bf16.mxu0 0
        %568 = vmatpush1.bf16.msra.mxu0 0
        %569 = vmatprep.subr.bf16.mxu0 0
        %570 = vmatpush1.bf16.msra.mxu0 0
        %571 = vmatprep.subr.bf16.mxu0 0
        %572 = vmatpush1.bf16.msra.mxu0 0
        %573 = vmatprep.subr.bf16.mxu0 0
        %574 = vmatpush1.bf16.msra.mxu0 0
        %575 = vmatprep.subr.bf16.mxu0 0
        %576 = vmatpush1.bf16.msra.mxu0 0
        %577 = vmatprep.subr.bf16.mxu0 0
        %578 = vmatpush1.bf16.msra.mxu0 0
        %579 = vmatprep.subr.bf16.mxu0 0
        %580 = vmatpush1.bf16.msra.mxu0 0
        %581 = vmatprep.subr.bf16.mxu0 0
        %582 = vmatpush1.bf16.msra.mxu0 0
        %583 = vmatprep.subr.bf16.mxu0 0
        %584 = vmatpush1.bf16.msra.mxu0 0
        %585 = vmatprep.subr.bf16.mxu0 0
        %586 = vmatpush1.bf16.msra.mxu0 0
        %587 = vmatprep.subr.bf16.mxu0 0
        %588 = vmatpush1.bf16.msra.mxu0 0
        %589 = vmatprep.subr.bf16.mxu0 0
        %590 = vmatpush1.bf16.msra.mxu0 0
        %591 = vmatprep.subr.bf16.mxu0 0
        %592 = vmatpush1.bf16.msra.mxu0 0
        %593 = vmatprep.subr.bf16.mxu0 0
        %594 = vmatpush1.bf16.msra.mxu0 0
        %595 = vmatprep.subr.bf16.mxu0 0
        %596 = vmatpush1.bf16.msra.mxu0 0
        %597 = vmatprep.mubr.bf16.mxu0 0
        %598 = vmatmul.mubr.bf16.gmra.mrb[0].mxu0 %v539
        %v599 = vpop.f32.mrb[0].mxu0
        %v600 = vadd.f32 0.0, %v599
        %v601 = vpop.f32.mrb[0].mxu0
        %v602 = vpop.f32.mrb[0].mxu0
        %v603 = vadd.f32 0.0, %v602
        %v604 = vpop.f32.mrb[0].mxu0
        %605 = vmatprep.mubr.bf16.mxu0 0
        %606 = vmatmul.mubr.bf16.gmra.mrb[0].mxu0 %v542
        %v607 = vpop.f32.mrb[0].mxu0
        %v608 = vadd.f32 0.0, %v607
        %v609 = vpop.f32.mrb[0].mxu0
        %v610 = vpop.f32.mrb[0].mxu0
        %v611 = vadd.f32 0.0, %v610
        %v612 = vpop.f32.mrb[0].mxu0
        %613 = vmatprep.mubr.bf16.mxu0 0
        %614 = vmatmul.mubr.bf16.gmra.mrb[0].mxu0 %v545
        %v615 = vpop.f32.mrb[0].mxu0
        %v616 = vadd.f32 0.0, %v615
        %v617 = vpop.f32.mrb[0].mxu0
        %v618 = vpop.f32.mrb[0].mxu0
        %v619 = vadd.f32 0.0, %v618
        %v620 = vpop.f32.mrb[0].mxu0
        %621 = vmatprep.mubr.bf16.mxu0 0
        %622 = vmatmul.mubr.bf16.gmra.mrb[0].mxu0 %v548
        %v623 = vpop.f32.mrb[0].mxu0
        %v624 = vadd.f32 0.0, %v623
        %v625 = vpop.f32.mrb[0].mxu0
        %v626 = vpop.f32.mrb[0].mxu0
        %v627 = vadd.f32 0.0, %v626
        %v628 = vpop.f32.mrb[0].mxu0
        %629 = vmatprep.mubr.bf16.mxu0 0
        %630 = vmatmul.mubr.bf16.gmra.mrb[0].mxu0 %v551
        %v631 = vpop.f32.mrb[0].mxu0
        %v632 = vadd.f32 0.0, %v631
        %v633 = vpop.f32.mrb[0].mxu0
        %v634 = vpop.f32.mrb[0].mxu0
        %v635 = vadd.f32 0.0, %v634
        %v636 = vpop.f32.mrb[0].mxu0
        %637 = vmatprep.mubr.bf16.mxu0 0
        %638 = vmatmul.mubr.bf16.gmra.mrb[0].mxu0 %v554
        %v639 = vpop.f32.mrb[0].mxu0
        %v640 = vadd.f32 0.0, %v639
        %v641 = vpop.f32.mrb[0].mxu0
        %v642 = vpop.f32.mrb[0].mxu0
        %v643 = vadd.f32 0.0, %v642
        %v644 = vpop.f32.mrb[0].mxu0
        %645 = vmatprep.mubr.bf16.mxu0 0
        %646 = vmatmul.mubr.bf16.gmra.mrb[0].mxu0 %v557
        %v647 = vpop.f32.mrb[0].mxu0
        %v648 = vadd.f32 0.0, %v647
        %v649 = vpop.f32.mrb[0].mxu0
        %v650 = vpop.f32.mrb[0].mxu0
        %v651 = vadd.f32 0.0, %v650
        %v652 = vpop.f32.mrb[0].mxu0
        %653 = vmatprep.mubr.bf16.mxu0 0
        %654 = vmatmul.mubr.bf16.gmra.mrb[0].mxu0 %v560
        %v655 = vpop.f32.mrb[0].mxu0
        %v656 = vadd.f32 0.0, %v655
        %v657 = vpop.f32.mrb[0].mxu0
        %v658 = vpop.f32.mrb[0].mxu0
        %v659 = vadd.f32 0.0, %v658
        %v660 = vpop.f32.mrb[0].mxu0
        %661 = vdwg.mxu0
        %v662 = vld [vmem:[#allocation2] sm:$0xff]
        %v663 = vld [vmem:[#allocation2 + $0x8] sm:$0xff]
        %v664 = vld [vmem:[#allocation2 + $0x10] sm:$0xff]
        %v665 = vld [vmem:[#allocation2 + $0x18] sm:$0xff]
        %v666 = vld [vmem:[#allocation2 + $0x20] sm:$0xff]
        %v667 = vld [vmem:[#allocation2 + $0x28] sm:$0xff]
        %v668 = vld [vmem:[#allocation2 + $0x30] sm:$0xff]
        %v669 = vld [vmem:[#allocation2 + $0x38] sm:$0xff]
        %v670 = vld [vmem:[#allocation2 + $0x40] sm:$0xff]
        %v671 = vld [vmem:[#allocation2 + $0x48] sm:$0xff]
        %v672 = vld [vmem:[#allocation2 + $0x50] sm:$0xff]
        %v673 = vld [vmem:[#allocation2 + $0x58] sm:$0xff]
        %v674 = vld [vmem:[#allocation2 + $0x60] sm:$0xff]
        %v675 = vld [vmem:[#allocation2 + $0x68] sm:$0xff]
        %v676 = vld [vmem:[#allocation2 + $0x70] sm:$0xff]
        %v677 = vld [vmem:[#allocation2 + $0x78] sm:$0xff]
        %v678 = vadd.f32 %v662, %v600
        %v679 = vadd.f32 %v663, %v603
        %v680 = vadd.f32 %v664, %v608
        %v681 = vadd.f32 %v665, %v611
        %v682 = vadd.f32 %v666, %v616
        %v683 = vadd.f32 %v667, %v619
        %v684 = vadd.f32 %v668, %v624
        %v685 = vadd.f32 %v669, %v627
        %v686 = vadd.f32 %v670, %v632
        %v687 = vadd.f32 %v671, %v635
        %v688 = vadd.f32 %v672, %v640
        %v689 = vadd.f32 %v673, %v643
        %v690 = vadd.f32 %v674, %v648
        %v691 = vadd.f32 %v675, %v651
        %v692 = vadd.f32 %v676, %v656
        %v693 = vadd.f32 %v677, %v659
        %694 = vst [vmem:[#allocation2] sm:$0xff] %v678
        %695 = vst [vmem:[#allocation2 + $0x8] sm:$0xff] %v679
        %696 = vst [vmem:[#allocation2 + $0x10] sm:$0xff] %v680
        %697 = vst [vmem:[#allocation2 + $0x18] sm:$0xff] %v681
        %698 = vst [vmem:[#allocation2 + $0x20] sm:$0xff] %v682
        %699 = vst [vmem:[#allocation2 + $0x28] sm:$0xff] %v683
        %700 = vst [vmem:[#allocation2 + $0x30] sm:$0xff] %v684
        %701 = vst [vmem:[#allocation2 + $0x38] sm:$0xff] %v685
        %702 = vst [vmem:[#allocation2 + $0x40] sm:$0xff] %v686
        %703 = vst [vmem:[#allocation2 + $0x48] sm:$0xff] %v687
        %704 = vst [vmem:[#allocation2 + $0x50] sm:$0xff] %v688
        %705 = vst [vmem:[#allocation2 + $0x58] sm:$0xff] %v689
        %706 = vst [vmem:[#allocation2 + $0x60] sm:$0xff] %v690
        %707 = vst [vmem:[#allocation2 + $0x68] sm:$0xff] %v691
        %708 = vst [vmem:[#allocation2 + $0x70] sm:$0xff] %v692
        %709 = vst [vmem:[#allocation2 + $0x78] sm:$0xff] %v693
        %v710 = vld [vmem:[#allocation3] sm:$0xfe]
        %v711 = vld [vmem:[#allocation3 + $0x8] sm:$0xff]
        %v712 = vld [vmem:[#allocation3 + $0x10] sm:$0xff]
        %v713 = vld [vmem:[#allocation3 + $0x18] sm:$0xff]
        %v714 = vld [vmem:[#allocation3 + $0x20] sm:$0xff]
        %v715 = vld [vmem:[#allocation3 + $0x28] sm:$0xff]
        %v716 = vld [vmem:[#allocation3 + $0x30] sm:$0xff]
        %v717 = vld [vmem:[#allocation3 + $0x38] sm:$0xff]
        %v718 = vld [vmem:[#allocation3 + $0x40] sm:$0x1]
        %s719 = scalar_lea.vmem %s1, 4
        %v720 = vld [vmem:[%s719] sm:$0x3]
        %vm730 = vcmask 1046528
        %v731 = vrot.slane %v710, 1
        %v732 = vrot.slane %v711, 1
        %v733 = vsel %vm730, %v731, %v732
        %v734 = vrot.slane %v712, 1
        %v735 = vsel %vm730, %v732, %v734
        %v736 = vrot.slane %v713, 1
        %v737 = vsel %vm730, %v734, %v736
        %v738 = vrot.slane %v714, 1
        %v739 = vsel %vm730, %v736, %v738
        %v740 = vrot.slane %v715, 1
        %v741 = vsel %vm730, %v738, %v740
        %v742 = vrot.slane %v716, 1
        %v743 = vsel %vm730, %v740, %v742
        %v744 = vrot.slane %v717, 1
        %v745 = vsel %vm730, %v742, %v744
        %v746 = vrot.slane %v718, 1
        %v747 = vsel %vm730, %v744, %v746
        %v749 = vsel %vm294, %v733, 0
        %v752 = vsel %vm294, %v735, 0
        %v755 = vsel %vm294, %v737, 0
        %v758 = vsel %vm294, %v739, 0
        %v761 = vsel %vm294, %v741, 0
        %v764 = vsel %vm294, %v743, 0
        %v767 = vsel %vm294, %v745, 0
        %v770 = vsel %vm294, %v747, 0
        %v773 = vsel %vm341, %v720, 0
        %775 = vmatprep.subr.bf16.mxu0 0
        %776 = vmatpush1.bf16.msra.mxu0 %v773
        %777 = vmatprep.subr.bf16.mxu0 0
        %778 = vmatpush1.bf16.msra.mxu0 0
        %779 = vmatprep.subr.bf16.mxu0 0
        %780 = vmatpush1.bf16.msra.mxu0 0
        %781 = vmatprep.subr.bf16.mxu0 0
        %782 = vmatpush1.bf16.msra.mxu0 0
        %783 = vmatprep.subr.bf16.mxu0 0
        %784 = vmatpush1.bf16.msra.mxu0 0
        %785 = vmatprep.subr.bf16.mxu0 0
        %786 = vmatpush1.bf16.msra.mxu0 0
        %787 = vmatprep.subr.bf16.mxu0 0
        %788 = vmatpush1.bf16.msra.mxu0 0
        %789 = vmatprep.subr.bf16.mxu0 0
        %790 = vmatpush1.bf16.msra.mxu0 0
        %791 = vmatprep.subr.bf16.mxu0 0
        %792 = vmatpush1.bf16.msra.mxu0 0
        %793 = vmatprep.subr.bf16.mxu0 0
        %794 = vmatpush1.bf16.msra.mxu0 0
        %795 = vmatprep.subr.bf16.mxu0 0
        %796 = vmatpush1.bf16.msra.mxu0 0
        %797 = vmatprep.subr.bf16.mxu0 0
        %798 = vmatpush1.bf16.msra.mxu0 0
        %799 = vmatprep.subr.bf16.mxu0 0
        %800 = vmatpush1.bf16.msra.mxu0 0
        %801 = vmatprep.subr.bf16.mxu0 0
        %802 = vmatpush1.bf16.msra.mxu0 0
        %803 = vmatprep.subr.bf16.mxu0 0
        %804 = vmatpush1.bf16.msra.mxu0 0
        %805 = vmatprep.subr.bf16.mxu0 0
        %806 = vmatpush1.bf16.msra.mxu0 0
        %807 = vmatprep.mubr.bf16.mxu0 0
        %808 = vmatmul.mubr.bf16.gmra.mrb[0].mxu0 %v749
        %v809 = vpop.f32.mrb[0].mxu0
        %v810 = vadd.f32 0.0, %v809
        %v811 = vpop.f32.mrb[0].mxu0
        %v812 = vpop.f32.mrb[0].mxu0
        %v813 = vadd.f32 0.0, %v812
        %v814 = vpop.f32.mrb[0].mxu0
        %815 = vmatprep.mubr.bf16.mxu0 0
        %816 = vmatmul.mubr.bf16.gmra.mrb[0].mxu0 %v752
        %v817 = vpop.f32.mrb[0].mxu0
        %v818 = vadd.f32 0.0, %v817
        %v819 = vpop.f32.mrb[0].mxu0
        %v820 = vpop.f32.mrb[0].mxu0
        %v821 = vadd.f32 0.0, %v820
        %v822 = vpop.f32.mrb[0].mxu0
        %823 = vmatprep.mubr.bf16.mxu0 0
        %824 = vmatmul.mubr.bf16.gmra.mrb[0].mxu0 %v755
        %v825 = vpop.f32.mrb[0].mxu0
        %v826 = vadd.f32 0.0, %v825
        %v827 = vpop.f32.mrb[0].mxu0
        %v828 = vpop.f32.mrb[0].mxu0
        %v829 = vadd.f32 0.0, %v828
        %v830 = vpop.f32.mrb[0].mxu0
        %831 = vmatprep.mubr.bf16.mxu0 0
        %832 = vmatmul.mubr.bf16.gmra.mrb[0].mxu0 %v758
        %v833 = vpop.f32.mrb[0].mxu0
        %v834 = vadd.f32 0.0, %v833
        %v835 = vpop.f32.mrb[0].mxu0
        %v836 = vpop.f32.mrb[0].mxu0
        %v837 = vadd.f32 0.0, %v836
        %v838 = vpop.f32.mrb[0].mxu0
        %839 = vmatprep.mubr.bf16.mxu0 0
        %840 = vmatmul.mubr.bf16.gmra.mrb[0].mxu0 %v761
        %v841 = vpop.f32.mrb[0].mxu0
        %v842 = vadd.f32 0.0, %v841
        %v843 = vpop.f32.mrb[0].mxu0
        %v844 = vpop.f32.mrb[0].mxu0
        %v845 = vadd.f32 0.0, %v844
        %v846 = vpop.f32.mrb[0].mxu0
        %847 = vmatprep.mubr.bf16.mxu0 0
        %848 = vmatmul.mubr.bf16.gmra.mrb[0].mxu0 %v764
        %v849 = vpop.f32.mrb[0].mxu0
        %v850 = vadd.f32 0.0, %v849
        %v851 = vpop.f32.mrb[0].mxu0
        %v852 = vpop.f32.mrb[0].mxu0
        %v853 = vadd.f32 0.0, %v852
        %v854 = vpop.f32.mrb[0].mxu0
        %855 = vmatprep.mubr.bf16.mxu0 0
        %856 = vmatmul.mubr.bf16.gmra.mrb[0].mxu0 %v767
        %v857 = vpop.f32.mrb[0].mxu0
        %v858 = vadd.f32 0.0, %v857
        %v859 = vpop.f32.mrb[0].mxu0
        %v860 = vpop.f32.mrb[0].mxu0
        %v861 = vadd.f32 0.0, %v860
        %v862 = vpop.f32.mrb[0].mxu0
        %863 = vmatprep.mubr.bf16.mxu0 0
        %864 = vmatmul.mubr.bf16.gmra.mrb[0].mxu0 %v770
        %v865 = vpop.f32.mrb[0].mxu0
        %v866 = vadd.f32 0.0, %v865
        %v867 = vpop.f32.mrb[0].mxu0
        %v868 = vpop.f32.mrb[0].mxu0
        %v869 = vadd.f32 0.0, %v868
        %v870 = vpop.f32.mrb[0].mxu0
        %871 = vdwg.mxu0
        %v872 = vld [vmem:[#allocation2] sm:$0xff]
        %v873 = vld [vmem:[#allocation2 + $0x8] sm:$0xff]
        %v874 = vld [vmem:[#allocation2 + $0x10] sm:$0xff]
        %v875 = vld [vmem:[#allocation2 + $0x18] sm:$0xff]
        %v876 = vld [vmem:[#allocation2 + $0x20] sm:$0xff]
        %v877 = vld [vmem:[#allocation2 + $0x28] sm:$0xff]
        %v878 = vld [vmem:[#allocation2 + $0x30] sm:$0xff]
        %v879 = vld [vmem:[#allocation2 + $0x38] sm:$0xff]
        %v880 = vld [vmem:[#allocation2 + $0x40] sm:$0xff]
        %v881 = vld [vmem:[#allocation2 + $0x48] sm:$0xff]
        %v882 = vld [vmem:[#allocation2 + $0x50] sm:$0xff]
        %v883 = vld [vmem:[#allocation2 + $0x58] sm:$0xff]
        %v884 = vld [vmem:[#allocation2 + $0x60] sm:$0xff]
        %v885 = vld [vmem:[#allocation2 + $0x68] sm:$0xff]
        %v886 = vld [vmem:[#allocation2 + $0x70] sm:$0xff]
        %v887 = vld [vmem:[#allocation2 + $0x78] sm:$0xff]
        %v888 = vadd.f32 %v872, %v810
        %v889 = vadd.f32 %v873, %v813
        %v890 = vadd.f32 %v874, %v818
        %v891 = vadd.f32 %v875, %v821
        %v892 = vadd.f32 %v876, %v826
        %v893 = vadd.f32 %v877, %v829
        %v894 = vadd.f32 %v878, %v834
        %v895 = vadd.f32 %v879, %v837
        %v896 = vadd.f32 %v880, %v842
        %v897 = vadd.f32 %v881, %v845
        %v898 = vadd.f32 %v882, %v850
        %v899 = vadd.f32 %v883, %v853
        %v900 = vadd.f32 %v884, %v858
        %v901 = vadd.f32 %v885, %v861
        %v902 = vadd.f32 %v886, %v866
        %v903 = vadd.f32 %v887, %v869
        %904 = vst [vmem:[#allocation2] sm:$0xff] %v888
        %905 = vst [vmem:[#allocation2 + $0x8] sm:$0xff] %v889
        %906 = vst [vmem:[#allocation2 + $0x10] sm:$0xff] %v890
        %907 = vst [vmem:[#allocation2 + $0x18] sm:$0xff] %v891
        %908 = vst [vmem:[#allocation2 + $0x20] sm:$0xff] %v892
        %909 = vst [vmem:[#allocation2 + $0x28] sm:$0xff] %v893
        %910 = vst [vmem:[#allocation2 + $0x30] sm:$0xff] %v894
        %911 = vst [vmem:[#allocation2 + $0x38] sm:$0xff] %v895
        %912 = vst [vmem:[#allocation2 + $0x40] sm:$0xff] %v896
        %913 = vst [vmem:[#allocation2 + $0x48] sm:$0xff] %v897
        %914 = vst [vmem:[#allocation2 + $0x50] sm:$0xff] %v898
        %915 = vst [vmem:[#allocation2 + $0x58] sm:$0xff] %v899
        %916 = vst [vmem:[#allocation2 + $0x60] sm:$0xff] %v900
        %917 = vst [vmem:[#allocation2 + $0x68] sm:$0xff] %v901
        %918 = vst [vmem:[#allocation2 + $0x70] sm:$0xff] %v902
        %919 = vst [vmem:[#allocation2 + $0x78] sm:$0xff] %v903
        %v920 = vld [vmem:[#allocation3 + $0x10] sm:$0xff]
        %v921 = vld [vmem:[#allocation3 + $0x18] sm:$0xff]
        %v922 = vld [vmem:[#allocation3 + $0x20] sm:$0xff]
        %v923 = vld [vmem:[#allocation3 + $0x28] sm:$0xff]
        %v924 = vld [vmem:[#allocation3 + $0x30] sm:$0xff]
        %v925 = vld [vmem:[#allocation3 + $0x38] sm:$0xff]
        %v926 = vld [vmem:[#allocation3 + $0x40] sm:$0xff]
        %v927 = vld [vmem:[#allocation3 + $0x48] sm:$0xff]
        %s928 = scalar_lea.vmem %s1, 6
        %v929 = vld [vmem:[%s928] sm:$0x3]
        %v931 = vsel %vm294, %v920, 0
        %v934 = vsel %vm294, %v921, 0
        %v937 = vsel %vm294, %v922, 0
        %v940 = vsel %vm294, %v923, 0
        %v943 = vsel %vm294, %v924, 0
        %v946 = vsel %vm294, %v925, 0
        %v949 = vsel %vm294, %v926, 0
        %v952 = vsel %vm294, %v927, 0
        %v955 = vsel %vm341, %v929, 0
        %957 = vmatprep.subr.bf16.mxu0 0
        %958 = vmatpush1.bf16.msra.mxu0 %v955
        %959 = vmatprep.subr.bf16.mxu0 0
        %960 = vmatpush1.bf16.msra.mxu0 0
        %961 = vmatprep.subr.bf16.mxu0 0
        %962 = vmatpush1.bf16.msra.mxu0 0
        %963 = vmatprep.subr.bf16.mxu0 0
        %964 = vmatpush1.bf16.msra.mxu0 0
        %965 = vmatprep.subr.bf16.mxu0 0
        %966 = vmatpush1.bf16.msra.mxu0 0
        %967 = vmatprep.subr.bf16.mxu0 0
        %968 = vmatpush1.bf16.msra.mxu0 0
        %969 = vmatprep.subr.bf16.mxu0 0
        %970 = vmatpush1.bf16.msra.mxu0 0
        %971 = vmatprep.subr.bf16.mxu0 0
        %972 = vmatpush1.bf16.msra.mxu0 0
        %973 = vmatprep.subr.bf16.mxu0 0
        %974 = vmatpush1.bf16.msra.mxu0 0
        %975 = vmatprep.subr.bf16.mxu0 0
        %976 = vmatpush1.bf16.msra.mxu0 0
        %977 = vmatprep.subr.bf16.mxu0 0
        %978 = vmatpush1.bf16.msra.mxu0 0
        %979 = vmatprep.subr.bf16.mxu0 0
        %980 = vmatpush1.bf16.msra.mxu0 0
        %981 = vmatprep.subr.bf16.mxu0 0
        %982 = vmatpush1.bf16.msra.mxu0 0
        %983 = vmatprep.subr.bf16.mxu0 0
        %984 = vmatpush1.bf16.msra.mxu0 0
        %985 = vmatprep.subr.bf16.mxu0 0
        %986 = vmatpush1.bf16.msra.mxu0 0
        %987 = vmatprep.subr.bf16.mxu0 0
        %988 = vmatpush1.bf16.msra.mxu0 0
        %989 = vmatprep.mubr.bf16.mxu0 0
        %990 = vmatmul.mubr.bf16.gmra.mrb[0].mxu0 %v931
        %v991 = vpop.f32.mrb[0].mxu0
        %v992 = vadd.f32 0.0, %v991
        %v993 = vpop.f32.mrb[0].mxu0
        %v994 = vpop.f32.mrb[0].mxu0
        %v995 = vadd.f32 0.0, %v994
        %v996 = vpop.f32.mrb[0].mxu0
        %997 = vmatprep.mubr.bf16.mxu0 0
        %998 = vmatmul.mubr.bf16.gmra.mrb[0].mxu0 %v934
        %v999 = vpop.f32.mrb[0].mxu0
        %v1000 = vadd.f32 0.0, %v999
        %v1001 = vpop.f32.mrb[0].mxu0
        %v1002 = vpop.f32.mrb[0].mxu0
        %v1003 = vadd.f32 0.0, %v1002
        %v1004 = vpop.f32.mrb[0].mxu0
        %1005 = vmatprep.mubr.bf16.mxu0 0
        %1006 = vmatmul.mubr.bf16.gmra.mrb[0].mxu0 %v937
        %v1007 = vpop.f32.mrb[0].mxu0
        %v1008 = vadd.f32 0.0, %v1007
        %v1009 = vpop.f32.mrb[0].mxu0
        %v1010 = vpop.f32.mrb[0].mxu0
        %v1011 = vadd.f32 0.0, %v1010
        %v1012 = vpop.f32.mrb[0].mxu0
        %1013 = vmatprep.mubr.bf16.mxu0 0
        %1014 = vmatmul.mubr.bf16.gmra.mrb[0].mxu0 %v940
        %v1015 = vpop.f32.mrb[0].mxu0
        %v1016 = vadd.f32 0.0, %v1015
        %v1017 = vpop.f32.mrb[0].mxu0
        %v1018 = vpop.f32.mrb[0].mxu0
        %v1019 = vadd.f32 0.0, %v1018
        %v1020 = vpop.f32.mrb[0].mxu0
        %1021 = vmatprep.mubr.bf16.mxu0 0
        %1022 = vmatmul.mubr.bf16.gmra.mrb[0].mxu0 %v943
        %v1023 = vpop.f32.mrb[0].mxu0
        %v1024 = vadd.f32 0.0, %v1023
        %v1025 = vpop.f32.mrb[0].mxu0
        %v1026 = vpop.f32.mrb[0].mxu0
        %v1027 = vadd.f32 0.0, %v1026
        %v1028 = vpop.f32.mrb[0].mxu0
        %1029 = vmatprep.mubr.bf16.mxu0 0
        %1030 = vmatmul.mubr.bf16.gmra.mrb[0].mxu0 %v946
        %v1031 = vpop.f32.mrb[0].mxu0
        %v1032 = vadd.f32 0.0, %v1031
        %v1033 = vpop.f32.mrb[0].mxu0
        %v1034 = vpop.f32.mrb[0].mxu0
        %v1035 = vadd.f32 0.0, %v1034
        %v1036 = vpop.f32.mrb[0].mxu0
        %1037 = vmatprep.mubr.bf16.mxu0 0
        %1038 = vmatmul.mubr.bf16.gmra.mrb[0].mxu0 %v949
        %v1039 = vpop.f32.mrb[0].mxu0
        %v1040 = vadd.f32 0.0, %v1039
        %v1041 = vpop.f32.mrb[0].mxu0
        %v1042 = vpop.f32.mrb[0].mxu0
        %v1043 = vadd.f32 0.0, %v1042
        %v1044 = vpop.f32.mrb[0].mxu0
        %1045 = vmatprep.mubr.bf16.mxu0 0
        %1046 = vmatmul.mubr.bf16.gmra.mrb[0].mxu0 %v952
        %v1047 = vpop.f32.mrb[0].mxu0
        %v1048 = vadd.f32 0.0, %v1047
        %v1049 = vpop.f32.mrb[0].mxu0
        %v1050 = vpop.f32.mrb[0].mxu0
        %v1051 = vadd.f32 0.0, %v1050
        %v1052 = vpop.f32.mrb[0].mxu0
        %1053 = vdwg.mxu0
        %v1054 = vld [vmem:[#allocation2] sm:$0xff]
        %v1055 = vld [vmem:[#allocation2 + $0x8] sm:$0xff]
        %v1056 = vld [vmem:[#allocation2 + $0x10] sm:$0xff]
        %v1057 = vld [vmem:[#allocation2 + $0x18] sm:$0xff]
        %v1058 = vld [vmem:[#allocation2 + $0x20] sm:$0xff]
        %v1059 = vld [vmem:[#allocation2 + $0x28] sm:$0xff]
        %v1060 = vld [vmem:[#allocation2 + $0x30] sm:$0xff]
        %v1061 = vld [vmem:[#allocation2 + $0x38] sm:$0xff]
        %v1062 = vld [vmem:[#allocation2 + $0x40] sm:$0xff]
        %v1063 = vld [vmem:[#allocation2 + $0x48] sm:$0xff]
        %v1064 = vld [vmem:[#allocation2 + $0x50] sm:$0xff]
        %v1065 = vld [vmem:[#allocation2 + $0x58] sm:$0xff]
        %v1066 = vld [vmem:[#allocation2 + $0x60] sm:$0xff]
        %v1067 = vld [vmem:[#allocation2 + $0x68] sm:$0xff]
        %v1068 = vld [vmem:[#allocation2 + $0x70] sm:$0xff]
        %v1069 = vld [vmem:[#allocation2 + $0x78] sm:$0xff]
        %v1070 = vadd.f32 %v1054, %v992
        %v1071 = vadd.f32 %v1055, %v995
        %v1072 = vadd.f32 %v1056, %v1000
        %v1073 = vadd.f32 %v1057, %v1003
        %v1074 = vadd.f32 %v1058, %v1008
        %v1075 = vadd.f32 %v1059, %v1011
        %v1076 = vadd.f32 %v1060, %v1016
        %v1077 = vadd.f32 %v1061, %v1019
        %v1078 = vadd.f32 %v1062, %v1024
        %v1079 = vadd.f32 %v1063, %v1027
        %v1080 = vadd.f32 %v1064, %v1032
        %v1081 = vadd.f32 %v1065, %v1035
        %v1082 = vadd.f32 %v1066, %v1040
        %v1083 = vadd.f32 %v1067, %v1043
        %v1084 = vadd.f32 %v1068, %v1048
        %v1085 = vadd.f32 %v1069, %v1051
        %1086 = vst [vmem:[#allocation2] sm:$0xff] %v1070
        %1087 = vst [vmem:[#allocation2 + $0x8] sm:$0xff] %v1071
        %1088 = vst [vmem:[#allocation2 + $0x10] sm:$0xff] %v1072
        %1089 = vst [vmem:[#allocation2 + $0x18] sm:$0xff] %v1073
        %1090 = vst [vmem:[#allocation2 + $0x20] sm:$0xff] %v1074
        %1091 = vst [vmem:[#allocation2 + $0x28] sm:$0xff] %v1075
        %1092 = vst [vmem:[#allocation2 + $0x30] sm:$0xff] %v1076
        %1093 = vst [vmem:[#allocation2 + $0x38] sm:$0xff] %v1077
        %1094 = vst [vmem:[#allocation2 + $0x40] sm:$0xff] %v1078
        %1095 = vst [vmem:[#allocation2 + $0x48] sm:$0xff] %v1079
        %1096 = vst [vmem:[#allocation2 + $0x50] sm:$0xff] %v1080
        %1097 = vst [vmem:[#allocation2 + $0x58] sm:$0xff] %v1081
        %1098 = vst [vmem:[#allocation2 + $0x60] sm:$0xff] %v1082
        %1099 = vst [vmem:[#allocation2 + $0x68] sm:$0xff] %v1083
        %1100 = vst [vmem:[#allocation2 + $0x70] sm:$0xff] %v1084
        %1101 = vst [vmem:[#allocation2 + $0x78] sm:$0xff] %v1085
        %v1102 = vld [vmem:[#allocation3 + $0x10] sm:$0xff]
        %v1103 = vld [vmem:[#allocation3 + $0x18] sm:$0xff]
        %v1104 = vld [vmem:[#allocation3 + $0x20] sm:$0xff]
        %v1105 = vld [vmem:[#allocation3 + $0x28] sm:$0xff]
        %v1106 = vld [vmem:[#allocation3 + $0x30] sm:$0xff]
        %v1107 = vld [vmem:[#allocation3 + $0x38] sm:$0xff]
        %v1108 = vld [vmem:[#allocation3 + $0x40] sm:$0xff]
        %v1109 = vld [vmem:[#allocation3 + $0x48] sm:$0xff]
        %v1110 = vld [vmem:[#allocation3 + $0x50] sm:$0x1]
        %s1111 = scalar_lea.vmem %s1, 8
        %v1112 = vld [vmem:[%s1111] sm:$0x3]
        %v1114 = vshrl.u32 %v1102, 16
        %v1116 = vshll.u32 %v1102, 16
        %v1118 = vrot.slane %v1116, 1
        %v1119 = vor.u32 %v1114, %v1118
        %v1121 = vshll.u32 %v1103, 16
        %v1123 = vrot.slane %v1121, 1
        %v1124 = vsel %vm469, %v1119, %v1123
        %v1125 = vshrl.u32 %v1103, 16
        %v1127 = vor.u32 %v1125, %v1123
        %v1129 = vshll.u32 %v1104, 16
        %v1131 = vrot.slane %v1129, 1
        %v1132 = vsel %vm469, %v1127, %v1131
        %v1133 = vshrl.u32 %v1104, 16
        %v1135 = vor.u32 %v1133, %v1131
        %v1137 = vshll.u32 %v1105, 16
        %v1139 = vrot.slane %v1137, 1
        %v1140 = vsel %vm469, %v1135, %v1139
        %v1141 = vshrl.u32 %v1105, 16
        %v1143 = vor.u32 %v1141, %v1139
        %v1145 = vshll.u32 %v1106, 16
        %v1147 = vrot.slane %v1145, 1
        %v1148 = vsel %vm469, %v1143, %v1147
        %v1149 = vshrl.u32 %v1106, 16
        %v1151 = vor.u32 %v1149, %v1147
        %v1153 = vshll.u32 %v1107, 16
        %v1155 = vrot.slane %v1153, 1
        %v1156 = vsel %vm469, %v1151, %v1155
        %v1157 = vshrl.u32 %v1107, 16
        %v1159 = vor.u32 %v1157, %v1155
        %v1161 = vshll.u32 %v1108, 16
        %v1163 = vrot.slane %v1161, 1
        %v1164 = vsel %vm469, %v1159, %v1163
        %v1165 = vshrl.u32 %v1108, 16
        %v1167 = vor.u32 %v1165, %v1163
        %v1169 = vshll.u32 %v1109, 16
        %v1171 = vrot.slane %v1169, 1
        %v1172 = vsel %vm469, %v1167, %v1171
        %v1173 = vshrl.u32 %v1109, 16
        %v1175 = vor.u32 %v1173, %v1171
        %v1177 = vshll.u32 %v1110, 16
        %v1179 = vrot.slane %v1177, 1
        %v1180 = vsel %vm469, %v1175, %v1179
        %v1182 = vsel %vm294, %v1124, 0
        %v1185 = vsel %vm294, %v1132, 0
        %v1188 = vsel %vm294, %v1140, 0
        %v1191 = vsel %vm294, %v1148, 0
        %v1194 = vsel %vm294, %v1156, 0
        %v1197 = vsel %vm294, %v1164, 0
        %v1200 = vsel %vm294, %v1172, 0
        %v1203 = vsel %vm294, %v1180, 0
        %v1206 = vsel %vm341, %v1112, 0
        %1208 = vmatprep.subr.bf16.mxu0 0
        %1209 = vmatpush1.bf16.msra.mxu0 %v1206
        %1210 = vmatprep.subr.bf16.mxu0 0
        %1211 = vmatpush1.bf16.msra.mxu0 0
        %1212 = vmatprep.subr.bf16.mxu0 0
        %1213 = vmatpush1.bf16.msra.mxu0 0
        %1214 = vmatprep.subr.bf16.mxu0 0
        %1215 = vmatpush1.bf16.msra.mxu0 0
        %1216 = vmatprep.subr.bf16.mxu0 0
        %1217 = vmatpush1.bf16.msra.mxu0 0
        %1218 = vmatprep.subr.bf16.mxu0 0
        %1219 = vmatpush1.bf16.msra.mxu0 0
        %1220 = vmatprep.subr.bf16.mxu0 0
        %1221 = vmatpush1.bf16.msra.mxu0 0
        %1222 = vmatprep.subr.bf16.mxu0 0
        %1223 = vmatpush1.bf16.msra.mxu0 0
        %1224 = vmatprep.subr.bf16.mxu0 0
        %1225 = vmatpush1.bf16.msra.mxu0 0
        %1226 = vmatprep.subr.bf16.mxu0 0
        %1227 = vmatpush1.bf16.msra.mxu0 0
        %1228 = vmatprep.subr.bf16.mxu0 0
        %1229 = vmatpush1.bf16.msra.mxu0 0
        %1230 = vmatprep.subr.bf16.mxu0 0
        %1231 = vmatpush1.bf16.msra.mxu0 0
        %1232 = vmatprep.subr.bf16.mxu0 0
        %1233 = vmatpush1.bf16.msra.mxu0 0
        %1234 = vmatprep.subr.bf16.mxu0 0
        %1235 = vmatpush1.bf16.msra.mxu0 0
        %1236 = vmatprep.subr.bf16.mxu0 0
        %1237 = vmatpush1.bf16.msra.mxu0 0
        %1238 = vmatprep.subr.bf16.mxu0 0
        %1239 = vmatpush1.bf16.msra.mxu0 0
        %1240 = vmatprep.mubr.bf16.mxu0 0
        %1241 = vmatmul.mubr.bf16.gmra.mrb[0].mxu0 %v1182
        %v1242 = vpop.f32.mrb[0].mxu0
        %v1243 = vadd.f32 0.0, %v1242
        %v1244 = vpop.f32.mrb[0].mxu0
        %v1245 = vpop.f32.mrb[0].mxu0
        %v1246 = vadd.f32 0.0, %v1245
        %v1247 = vpop.f32.mrb[0].mxu0
        %1248 = vmatprep.mubr.bf16.mxu0 0
        %1249 = vmatmul.mubr.bf16.gmra.mrb[0].mxu0 %v1185
        %v1250 = vpop.f32.mrb[0].mxu0
        %v1251 = vadd.f32 0.0, %v1250
        %v1252 = vpop.f32.mrb[0].mxu0
        %v1253 = vpop.f32.mrb[0].mxu0
        %v1254 = vadd.f32 0.0, %v1253
        %v1255 = vpop.f32.mrb[0].mxu0
        %1256 = vmatprep.mubr.bf16.mxu0 0
        %1257 = vmatmul.mubr.bf16.gmra.mrb[0].mxu0 %v1188
        %v1258 = vpop.f32.mrb[0].mxu0
        %v1259 = vadd.f32 0.0, %v1258
        %v1260 = vpop.f32.mrb[0].mxu0
        %v1261 = vpop.f32.mrb[0].mxu0
        %v1262 = vadd.f32 0.0, %v1261
        %v1263 = vpop.f32.mrb[0].mxu0
        %1264 = vmatprep.mubr.bf16.mxu0 0
        %1265 = vmatmul.mubr.bf16.gmra.mrb[0].mxu0 %v1191
        %v1266 = vpop.f32.mrb[0].mxu0
        %v1267 = vadd.f32 0.0, %v1266
        %v1268 = vpop.f32.mrb[0].mxu0
        %v1269 = vpop.f32.mrb[0].mxu0
        %v1270 = vadd.f32 0.0, %v1269
        %v1271 = vpop.f32.mrb[0].mxu0
        %1272 = vmatprep.mubr.bf16.mxu0 0
        %1273 = vmatmul.mubr.bf16.gmra.mrb[0].mxu0 %v1194
        %v1274 = vpop.f32.mrb[0].mxu0
        %v1275 = vadd.f32 0.0, %v1274
        %v1276 = vpop.f32.mrb[0].mxu0
        %v1277 = vpop.f32.mrb[0].mxu0
        %v1278 = vadd.f32 0.0, %v1277
        %v1279 = vpop.f32.mrb[0].mxu0
        %1280 = vmatprep.mubr.bf16.mxu0 0
        %1281 = vmatmul.mubr.bf16.gmra.mrb[0].mxu0 %v1197
        %v1282 = vpop.f32.mrb[0].mxu0
        %v1283 = vadd.f32 0.0, %v1282
        %v1284 = vpop.f32.mrb[0].mxu0
        %v1285 = vpop.f32.mrb[0].mxu0
        %v1286 = vadd.f32 0.0, %v1285
        %v1287 = vpop.f32.mrb[0].mxu0
        %1288 = vmatprep.mubr.bf16.mxu0 0
        %1289 = vmatmul.mubr.bf16.gmra.mrb[0].mxu0 %v1200
        %v1290 = vpop.f32.mrb[0].mxu0
        %v1291 = vadd.f32 0.0, %v1290
        %v1292 = vpop.f32.mrb[0].mxu0
        %v1293 = vpop.f32.mrb[0].mxu0
        %v1294 = vadd.f32 0.0, %v1293
        %v1295 = vpop.f32.mrb[0].mxu0
        %1296 = vmatprep.mubr.bf16.mxu0 0
        %1297 = vmatmul.mubr.bf16.gmra.mrb[0].mxu0 %v1203
        %v1298 = vpop.f32.mrb[0].mxu0
        %v1299 = vadd.f32 0.0, %v1298
        %v1300 = vpop.f32.mrb[0].mxu0
        %v1301 = vpop.f32.mrb[0].mxu0
        %v1302 = vadd.f32 0.0, %v1301
        %v1303 = vpop.f32.mrb[0].mxu0
        %1304 = vdwg.mxu0
        %v1305 = vld [vmem:[#allocation2] sm:$0xff]
        %v1306 = vld [vmem:[#allocation2 + $0x8] sm:$0xff]
        %v1307 = vld [vmem:[#allocation2 + $0x10] sm:$0xff]
        %v1308 = vld [vmem:[#allocation2 + $0x18] sm:$0xff]
        %v1309 = vld [vmem:[#allocation2 + $0x20] sm:$0xff]
        %v1310 = vld [vmem:[#allocation2 + $0x28] sm:$0xff]
        %v1311 = vld [vmem:[#allocation2 + $0x30] sm:$0xff]
        %v1312 = vld [vmem:[#allocation2 + $0x38] sm:$0xff]
        %v1313 = vld [vmem:[#allocation2 + $0x40] sm:$0xff]
        %v1314 = vld [vmem:[#allocation2 + $0x48] sm:$0xff]
        %v1315 = vld [vmem:[#allocation2 + $0x50] sm:$0xff]
        %v1316 = vld [vmem:[#allocation2 + $0x58] sm:$0xff]
        %v1317 = vld [vmem:[#allocation2 + $0x60] sm:$0xff]
        %v1318 = vld [vmem:[#allocation2 + $0x68] sm:$0xff]
        %v1319 = vld [vmem:[#allocation2 + $0x70] sm:$0xff]
        %v1320 = vld [vmem:[#allocation2 + $0x78] sm:$0xff]
        %v1321 = vadd.f32 %v1305, %v1243
        %v1322 = vadd.f32 %v1306, %v1246
        %v1323 = vadd.f32 %v1307, %v1251
        %v1324 = vadd.f32 %v1308, %v1254
        %v1325 = vadd.f32 %v1309, %v1259
        %v1326 = vadd.f32 %v1310, %v1262
        %v1327 = vadd.f32 %v1311, %v1267
        %v1328 = vadd.f32 %v1312, %v1270
        %v1329 = vadd.f32 %v1313, %v1275
        %v1330 = vadd.f32 %v1314, %v1278
        %v1331 = vadd.f32 %v1315, %v1283
        %v1332 = vadd.f32 %v1316, %v1286
        %v1333 = vadd.f32 %v1317, %v1291
        %v1334 = vadd.f32 %v1318, %v1294
        %v1335 = vadd.f32 %v1319, %v1299
        %v1336 = vadd.f32 %v1320, %v1302
        %1337 = vst [vmem:[#allocation2] sm:$0xff] %v1321
        %1338 = vst [vmem:[#allocation2 + $0x8] sm:$0xff] %v1322
        %1339 = vst [vmem:[#allocation2 + $0x10] sm:$0xff] %v1323
        %1340 = vst [vmem:[#allocation2 + $0x18] sm:$0xff] %v1324
        %1341 = vst [vmem:[#allocation2 + $0x20] sm:$0xff] %v1325
        %1342 = vst [vmem:[#allocation2 + $0x28] sm:$0xff] %v1326
        %1343 = vst [vmem:[#allocation2 + $0x30] sm:$0xff] %v1327
        %1344 = vst [vmem:[#allocation2 + $0x38] sm:$0xff] %v1328
        %1345 = vst [vmem:[#allocation2 + $0x40] sm:$0xff] %v1329
        %1346 = vst [vmem:[#allocation2 + $0x48] sm:$0xff] %v1330
        %1347 = vst [vmem:[#allocation2 + $0x50] sm:$0xff] %v1331
        %1348 = vst [vmem:[#allocation2 + $0x58] sm:$0xff] %v1332
        %1349 = vst [vmem:[#allocation2 + $0x60] sm:$0xff] %v1333
        %1350 = vst [vmem:[#allocation2 + $0x68] sm:$0xff] %v1334
        %1351 = vst [vmem:[#allocation2 + $0x70] sm:$0xff] %v1335
        %1352 = vst [vmem:[#allocation2 + $0x78] sm:$0xff] %v1336
        %v1353 = vld [vmem:[#allocation3 + $0x10] sm:$0xfe]
        %v1354 = vld [vmem:[#allocation3 + $0x18] sm:$0xff]
        %v1355 = vld [vmem:[#allocation3 + $0x20] sm:$0xff]
        %v1356 = vld [vmem:[#allocation3 + $0x28] sm:$0xff]
        %v1357 = vld [vmem:[#allocation3 + $0x30] sm:$0xff]
        %v1358 = vld [vmem:[#allocation3 + $0x38] sm:$0xff]
        %v1359 = vld [vmem:[#allocation3 + $0x40] sm:$0xff]
        %v1360 = vld [vmem:[#allocation3 + $0x48] sm:$0xff]
        %v1361 = vld [vmem:[#allocation3 + $0x50] sm:$0x1]
        %s1362 = scalar_lea.vmem %s1, 10
        %v1363 = vld [vmem:[%s1362] sm:$0x3]
        %v1373 = vrot.slane %v1353, 1
        %v1374 = vrot.slane %v1354, 1
        %v1375 = vsel %vm730, %v1373, %v1374
        %v1376 = vrot.slane %v1355, 1
        %v1377 = vsel %vm730, %v1374, %v1376
        %v1378 = vrot.slane %v1356, 1
        %v1379 = vsel %vm730, %v1376, %v1378
        %v1380 = vrot.slane %v1357, 1
        %v1381 = vsel %vm730, %v1378, %v1380
        %v1382 = vrot.slane %v1358, 1
        %v1383 = vsel %vm730, %v1380, %v1382
        %v1384 = vrot.slane %v1359, 1
        %v1385 = vsel %vm730, %v1382, %v1384
        %v1386 = vrot.slane %v1360, 1
        %v1387 = vsel %vm730, %v1384, %v1386
        %v1388 = vrot.slane %v1361, 1
        %v1389 = vsel %vm730, %v1386, %v1388
        %v1391 = vsel %vm294, %v1375, 0
        %v1394 = vsel %vm294, %v1377, 0
        %v1397 = vsel %vm294, %v1379, 0
        %v1400 = vsel %vm294, %v1381, 0
        %v1403 = vsel %vm294, %v1383, 0
        %v1406 = vsel %vm294, %v1385, 0
        %v1409 = vsel %vm294, %v1387, 0
        %v1412 = vsel %vm294, %v1389, 0
        %v1415 = vsel %vm341, %v1363, 0
        %1417 = vmatprep.subr.bf16.mxu0 0
        %1418 = vmatpush1.bf16.msra.mxu0 %v1415
        %1419 = vmatprep.subr.bf16.mxu0 0
        %1420 = vmatpush1.bf16.msra.mxu0 0
        %1421 = vmatprep.subr.bf16.mxu0 0
        %1422 = vmatpush1.bf16.msra.mxu0 0
        %1423 = vmatprep.subr.bf16.mxu0 0
        %1424 = vmatpush1.bf16.msra.mxu0 0
        %1425 = vmatprep.subr.bf16.mxu0 0
        %1426 = vmatpush1.bf16.msra.mxu0 0
        %1427 = vmatprep.subr.bf16.mxu0 0
        %1428 = vmatpush1.bf16.msra.mxu0 0
        %1429 = vmatprep.subr.bf16.mxu0 0
        %1430 = vmatpush1.bf16.msra.mxu0 0
        %1431 = vmatprep.subr.bf16.mxu0 0
        %1432 = vmatpush1.bf16.msra.mxu0 0
        %1433 = vmatprep.subr.bf16.mxu0 0
        %1434 = vmatpush1.bf16.msra.mxu0 0
        %1435 = vmatprep.subr.bf16.mxu0 0
        %1436 = vmatpush1.bf16.msra.mxu0 0
        %1437 = vmatprep.subr.bf16.mxu0 0
        %1438 = vmatpush1.bf16.msra.mxu0 0
        %1439 = vmatprep.subr.bf16.mxu0 0
        %1440 = vmatpush1.bf16.msra.mxu0 0
        %1441 = vmatprep.subr.bf16.mxu0 0
        %1442 = vmatpush1.bf16.msra.mxu0 0
        %1443 = vmatprep.subr.bf16.mxu0 0
        %1444 = vmatpush1.bf16.msra.mxu0 0
        %1445 = vmatprep.subr.bf16.mxu0 0
        %1446 = vmatpush1.bf16.msra.mxu0 0
        %1447 = vmatprep.subr.bf16.mxu0 0
        %1448 = vmatpush1.bf16.msra.mxu0 0
        %1449 = vmatprep.mubr.bf16.mxu0 0
        %1450 = vmatmul.mubr.bf16.gmra.mrb[0].mxu0 %v1391
        %v1451 = vpop.f32.mrb[0].mxu0
        %v1452 = vadd.f32 0.0, %v1451
        %v1453 = vpop.f32.mrb[0].mxu0
        %v1454 = vpop.f32.mrb[0].mxu0
        %v1455 = vadd.f32 0.0, %v1454
        %v1456 = vpop.f32.mrb[0].mxu0
        %1457 = vmatprep.mubr.bf16.mxu0 0
        %1458 = vmatmul.mubr.bf16.gmra.mrb[0].mxu0 %v1394
        %v1459 = vpop.f32.mrb[0].mxu0
        %v1460 = vadd.f32 0.0, %v1459
        %v1461 = vpop.f32.mrb[0].mxu0
        %v1462 = vpop.f32.mrb[0].mxu0
        %v1463 = vadd.f32 0.0, %v1462
        %v1464 = vpop.f32.mrb[0].mxu0
        %1465 = vmatprep.mubr.bf16.mxu0 0
        %1466 = vmatmul.mubr.bf16.gmra.mrb[0].mxu0 %v1397
        %v1467 = vpop.f32.mrb[0].mxu0
        %v1468 = vadd.f32 0.0, %v1467
        %v1469 = vpop.f32.mrb[0].mxu0
        %v1470 = vpop.f32.mrb[0].mxu0
        %v1471 = vadd.f32 0.0, %v1470
        %v1472 = vpop.f32.mrb[0].mxu0
        %1473 = vmatprep.mubr.bf16.mxu0 0
        %1474 = vmatmul.mubr.bf16.gmra.mrb[0].mxu0 %v1400
        %v1475 = vpop.f32.mrb[0].mxu0
        %v1476 = vadd.f32 0.0, %v1475
        %v1477 = vpop.f32.mrb[0].mxu0
        %v1478 = vpop.f32.mrb[0].mxu0
        %v1479 = vadd.f32 0.0, %v1478
        %v1480 = vpop.f32.mrb[0].mxu0
        %1481 = vmatprep.mubr.bf16.mxu0 0
        %1482 = vmatmul.mubr.bf16.gmra.mrb[0].mxu0 %v1403
        %v1483 = vpop.f32.mrb[0].mxu0
        %v1484 = vadd.f32 0.0, %v1483
        %v1485 = vpop.f32.mrb[0].mxu0
        %v1486 = vpop.f32.mrb[0].mxu0
        %v1487 = vadd.f32 0.0, %v1486
        %v1488 = vpop.f32.mrb[0].mxu0
        %1489 = vmatprep.mubr.bf16.mxu0 0
        %1490 = vmatmul.mubr.bf16.gmra.mrb[0].mxu0 %v1406
        %v1491 = vpop.f32.mrb[0].mxu0
        %v1492 = vadd.f32 0.0, %v1491
        %v1493 = vpop.f32.mrb[0].mxu0
        %v1494 = vpop.f32.mrb[0].mxu0
        %v1495 = vadd.f32 0.0, %v1494
        %v1496 = vpop.f32.mrb[0].mxu0
        %1497 = vmatprep.mubr.bf16.mxu0 0
        %1498 = vmatmul.mubr.bf16.gmra.mrb[0].mxu0 %v1409
        %v1499 = vpop.f32.mrb[0].mxu0
        %v1500 = vadd.f32 0.0, %v1499
        %v1501 = vpop.f32.mrb[0].mxu0
        %v1502 = vpop.f32.mrb[0].mxu0
        %v1503 = vadd.f32 0.0, %v1502
        %v1504 = vpop.f32.mrb[0].mxu0
        %1505 = vmatprep.mubr.bf16.mxu0 0
        %1506 = vmatmul.mubr.bf16.gmra.mrb[0].mxu0 %v1412
        %v1507 = vpop.f32.mrb[0].mxu0
        %v1508 = vadd.f32 0.0, %v1507
        %v1509 = vpop.f32.mrb[0].mxu0
        %v1510 = vpop.f32.mrb[0].mxu0
        %v1511 = vadd.f32 0.0, %v1510
        %v1512 = vpop.f32.mrb[0].mxu0
        %1513 = vdwg.mxu0
        %v1514 = vld [vmem:[#allocation2] sm:$0xff]
        %v1515 = vld [vmem:[#allocation2 + $0x8] sm:$0xff]
        %v1516 = vld [vmem:[#allocation2 + $0x10] sm:$0xff]
        %v1517 = vld [vmem:[#allocation2 + $0x18] sm:$0xff]
        %v1518 = vld [vmem:[#allocation2 + $0x20] sm:$0xff]
        %v1519 = vld [vmem:[#allocation2 + $0x28] sm:$0xff]
        %v1520 = vld [vmem:[#allocation2 + $0x30] sm:$0xff]
        %v1521 = vld [vmem:[#allocation2 + $0x38] sm:$0xff]
        %v1522 = vld [vmem:[#allocation2 + $0x40] sm:$0xff]
        %v1523 = vld [vmem:[#allocation2 + $0x48] sm:$0xff]
        %v1524 = vld [vmem:[#allocation2 + $0x50] sm:$0xff]
        %v1525 = vld [vmem:[#allocation2 + $0x58] sm:$0xff]
        %v1526 = vld [vmem:[#allocation2 + $0x60] sm:$0xff]
        %v1527 = vld [vmem:[#allocation2 + $0x68] sm:$0xff]
        %v1528 = vld [vmem:[#allocation2 + $0x70] sm:$0xff]
        %v1529 = vld [vmem:[#allocation2 + $0x78] sm:$0xff]
        %v1530 = vadd.f32 %v1514, %v1452
        %v1531 = vadd.f32 %v1515, %v1455
        %v1532 = vadd.f32 %v1516, %v1460
        %v1533 = vadd.f32 %v1517, %v1463
        %v1534 = vadd.f32 %v1518, %v1468
        %v1535 = vadd.f32 %v1519, %v1471
        %v1536 = vadd.f32 %v1520, %v1476
        %v1537 = vadd.f32 %v1521, %v1479
        %v1538 = vadd.f32 %v1522, %v1484
        %v1539 = vadd.f32 %v1523, %v1487
        %v1540 = vadd.f32 %v1524, %v1492
        %v1541 = vadd.f32 %v1525, %v1495
        %v1542 = vadd.f32 %v1526, %v1500
        %v1543 = vadd.f32 %v1527, %v1503
        %v1544 = vadd.f32 %v1528, %v1508
        %v1545 = vadd.f32 %v1529, %v1511
        %1546 = vst [vmem:[#allocation2] sm:$0xff] %v1530
        %1547 = vst [vmem:[#allocation2 + $0x8] sm:$0xff] %v1531
        %1548 = vst [vmem:[#allocation2 + $0x10] sm:$0xff] %v1532
        %1549 = vst [vmem:[#allocation2 + $0x18] sm:$0xff] %v1533
        %1550 = vst [vmem:[#allocation2 + $0x20] sm:$0xff] %v1534
        %1551 = vst [vmem:[#allocation2 + $0x28] sm:$0xff] %v1535
        %1552 = vst [vmem:[#allocation2 + $0x30] sm:$0xff] %v1536
        %1553 = vst [vmem:[#allocation2 + $0x38] sm:$0xff] %v1537
        %1554 = vst [vmem:[#allocation2 + $0x40] sm:$0xff] %v1538
        %1555 = vst [vmem:[#allocation2 + $0x48] sm:$0xff] %v1539
        %1556 = vst [vmem:[#allocation2 + $0x50] sm:$0xff] %v1540
        %1557 = vst [vmem:[#allocation2 + $0x58] sm:$0xff] %v1541
        %1558 = vst [vmem:[#allocation2 + $0x60] sm:$0xff] %v1542
        %1559 = vst [vmem:[#allocation2 + $0x68] sm:$0xff] %v1543
        %1560 = vst [vmem:[#allocation2 + $0x70] sm:$0xff] %v1544
        %1561 = vst [vmem:[#allocation2 + $0x78] sm:$0xff] %v1545
        %v1562 = vld [vmem:[#allocation3 + $0x20] sm:$0xff]
        %v1563 = vld [vmem:[#allocation3 + $0x28] sm:$0xff]
        %v1564 = vld [vmem:[#allocation3 + $0x30] sm:$0xff]
        %v1565 = vld [vmem:[#allocation3 + $0x38] sm:$0xff]
        %v1566 = vld [vmem:[#allocation3 + $0x40] sm:$0xff]
        %v1567 = vld [vmem:[#allocation3 + $0x48] sm:$0xff]
        %v1568 = vld [vmem:[#allocation3 + $0x50] sm:$0xff]
        %v1569 = vld [vmem:[#allocation3 + $0x58] sm:$0xff]
        %s1570 = scalar_lea.vmem %s1, 12
        %v1571 = vld [vmem:[%s1570] sm:$0x3]
        %v1573 = vsel %vm294, %v1562, 0
        %v1576 = vsel %vm294, %v1563, 0
        %v1579 = vsel %vm294, %v1564, 0
        %v1582 = vsel %vm294, %v1565, 0
        %v1585 = vsel %vm294, %v1566, 0
        %v1588 = vsel %vm294, %v1567, 0
        %v1591 = vsel %vm294, %v1568, 0
        %v1594 = vsel %vm294, %v1569, 0
        %v1597 = vsel %vm341, %v1571, 0
        %1599 = vmatprep.subr.bf16.mxu0 0
        %1600 = vmatpush1.bf16.msra.mxu0 %v1597
        %1601 = vmatprep.subr.bf16.mxu0 0
        %1602 = vmatpush1.bf16.msra.mxu0 0
        %1603 = vmatprep.subr.bf16.mxu0 0
        %1604 = vmatpush1.bf16.msra.mxu0 0
        %1605 = vmatprep.subr.bf16.mxu0 0
        %1606 = vmatpush1.bf16.msra.mxu0 0
        %1607 = vmatprep.subr.bf16.mxu0 0
        %1608 = vmatpush1.bf16.msra.mxu0 0
        %1609 = vmatprep.subr.bf16.mxu0 0
        %1610 = vmatpush1.bf16.msra.mxu0 0
        %1611 = vmatprep.subr.bf16.mxu0 0
        %1612 = vmatpush1.bf16.msra.mxu0 0
        %1613 = vmatprep.subr.bf16.mxu0 0
        %1614 = vmatpush1.bf16.msra.mxu0 0
        %1615 = vmatprep.subr.bf16.mxu0 0
        %1616 = vmatpush1.bf16.msra.mxu0 0
        %1617 = vmatprep.subr.bf16.mxu0 0
        %1618 = vmatpush1.bf16.msra.mxu0 0
        %1619 = vmatprep.subr.bf16.mxu0 0
        %1620 = vmatpush1.bf16.msra.mxu0 0
        %1621 = vmatprep.subr.bf16.mxu0 0
        %1622 = vmatpush1.bf16.msra.mxu0 0
        %1623 = vmatprep.subr.bf16.mxu0 0
        %1624 = vmatpush1.bf16.msra.mxu0 0
        %1625 = vmatprep.subr.bf16.mxu0 0
        %1626 = vmatpush1.bf16.msra.mxu0 0
        %1627 = vmatprep.subr.bf16.mxu0 0
        %1628 = vmatpush1.bf16.msra.mxu0 0
        %1629 = vmatprep.subr.bf16.mxu0 0
        %1630 = vmatpush1.bf16.msra.mxu0 0
        %1631 = vmatprep.mubr.bf16.mxu0 0
        %1632 = vmatmul.mubr.bf16.gmra.mrb[0].mxu0 %v1573
        %v1633 = vpop.f32.mrb[0].mxu0
        %v1634 = vadd.f32 0.0, %v1633
        %v1635 = vpop.f32.mrb[0].mxu0
        %v1636 = vpop.f32.mrb[0].mxu0
        %v1637 = vadd.f32 0.0, %v1636
        %v1638 = vpop.f32.mrb[0].mxu0
        %1639 = vmatprep.mubr.bf16.mxu0 0
        %1640 = vmatmul.mubr.bf16.gmra.mrb[0].mxu0 %v1576
        %v1641 = vpop.f32.mrb[0].mxu0
        %v1642 = vadd.f32 0.0, %v1641
        %v1643 = vpop.f32.mrb[0].mxu0
        %v1644 = vpop.f32.mrb[0].mxu0
        %v1645 = vadd.f32 0.0, %v1644
        %v1646 = vpop.f32.mrb[0].mxu0
        %1647 = vmatprep.mubr.bf16.mxu0 0
        %1648 = vmatmul.mubr.bf16.gmra.mrb[0].mxu0 %v1579
        %v1649 = vpop.f32.mrb[0].mxu0
        %v1650 = vadd.f32 0.0, %v1649
        %v1651 = vpop.f32.mrb[0].mxu0
        %v1652 = vpop.f32.mrb[0].mxu0
        %v1653 = vadd.f32 0.0, %v1652
        %v1654 = vpop.f32.mrb[0].mxu0
        %1655 = vmatprep.mubr.bf16.mxu0 0
        %1656 = vmatmul.mubr.bf16.gmra.mrb[0].mxu0 %v1582
        %v1657 = vpop.f32.mrb[0].mxu0
        %v1658 = vadd.f32 0.0, %v1657
        %v1659 = vpop.f32.mrb[0].mxu0
        %v1660 = vpop.f32.mrb[0].mxu0
        %v1661 = vadd.f32 0.0, %v1660
        %v1662 = vpop.f32.mrb[0].mxu0
        %1663 = vmatprep.mubr.bf16.mxu0 0
        %1664 = vmatmul.mubr.bf16.gmra.mrb[0].mxu0 %v1585
        %v1665 = vpop.f32.mrb[0].mxu0
        %v1666 = vadd.f32 0.0, %v1665
        %v1667 = vpop.f32.mrb[0].mxu0
        %v1668 = vpop.f32.mrb[0].mxu0
        %v1669 = vadd.f32 0.0, %v1668
        %v1670 = vpop.f32.mrb[0].mxu0
        %1671 = vmatprep.mubr.bf16.mxu0 0
        %1672 = vmatmul.mubr.bf16.gmra.mrb[0].mxu0 %v1588
        %v1673 = vpop.f32.mrb[0].mxu0
        %v1674 = vadd.f32 0.0, %v1673
        %v1675 = vpop.f32.mrb[0].mxu0
        %v1676 = vpop.f32.mrb[0].mxu0
        %v1677 = vadd.f32 0.0, %v1676
        %v1678 = vpop.f32.mrb[0].mxu0
        %1679 = vmatprep.mubr.bf16.mxu0 0
        %1680 = vmatmul.mubr.bf16.gmra.mrb[0].mxu0 %v1591
        %v1681 = vpop.f32.mrb[0].mxu0
        %v1682 = vadd.f32 0.0, %v1681
        %v1683 = vpop.f32.mrb[0].mxu0
        %v1684 = vpop.f32.mrb[0].mxu0
        %v1685 = vadd.f32 0.0, %v1684
        %v1686 = vpop.f32.mrb[0].mxu0
        %1687 = vmatprep.mubr.bf16.mxu0 0
        %1688 = vmatmul.mubr.bf16.gmra.mrb[0].mxu0 %v1594
        %v1689 = vpop.f32.mrb[0].mxu0
        %v1690 = vadd.f32 0.0, %v1689
        %v1691 = vpop.f32.mrb[0].mxu0
        %v1692 = vpop.f32.mrb[0].mxu0
        %v1693 = vadd.f32 0.0, %v1692
        %v1694 = vpop.f32.mrb[0].mxu0
        %1695 = vdwg.mxu0
        %v1696 = vld [vmem:[#allocation2] sm:$0xff]
        %v1697 = vld [vmem:[#allocation2 + $0x8] sm:$0xff]
        %v1698 = vld [vmem:[#allocation2 + $0x10] sm:$0xff]
        %v1699 = vld [vmem:[#allocation2 + $0x18] sm:$0xff]
        %v1700 = vld [vmem:[#allocation2 + $0x20] sm:$0xff]
        %v1701 = vld [vmem:[#allocation2 + $0x28] sm:$0xff]
        %v1702 = vld [vmem:[#allocation2 + $0x30] sm:$0xff]
        %v1703 = vld [vmem:[#allocation2 + $0x38] sm:$0xff]
        %v1704 = vld [vmem:[#allocation2 + $0x40] sm:$0xff]
        %v1705 = vld [vmem:[#allocation2 + $0x48] sm:$0xff]
        %v1706 = vld [vmem:[#allocation2 + $0x50] sm:$0xff]
        %v1707 = vld [vmem:[#allocation2 + $0x58] sm:$0xff]
        %v1708 = vld [vmem:[#allocation2 + $0x60] sm:$0xff]
        %v1709 = vld [vmem:[#allocation2 + $0x68] sm:$0xff]
        %v1710 = vld [vmem:[#allocation2 + $0x70] sm:$0xff]
        %v1711 = vld [vmem:[#allocation2 + $0x78] sm:$0xff]
        %v1712 = vadd.f32 %v1696, %v1634
        %v1713 = vadd.f32 %v1697, %v1637
        %v1714 = vadd.f32 %v1698, %v1642
        %v1715 = vadd.f32 %v1699, %v1645
        %v1716 = vadd.f32 %v1700, %v1650
        %v1717 = vadd.f32 %v1701, %v1653
        %v1718 = vadd.f32 %v1702, %v1658
        %v1719 = vadd.f32 %v1703, %v1661
        %v1720 = vadd.f32 %v1704, %v1666
        %v1721 = vadd.f32 %v1705, %v1669
        %v1722 = vadd.f32 %v1706, %v1674
        %v1723 = vadd.f32 %v1707, %v1677
        %v1724 = vadd.f32 %v1708, %v1682
        %v1725 = vadd.f32 %v1709, %v1685
        %v1726 = vadd.f32 %v1710, %v1690
        %v1727 = vadd.f32 %v1711, %v1693
        %1728 = vst [vmem:[#allocation2] sm:$0xff] %v1712
        %1729 = vst [vmem:[#allocation2 + $0x8] sm:$0xff] %v1713
        %1730 = vst [vmem:[#allocation2 + $0x10] sm:$0xff] %v1714
        %1731 = vst [vmem:[#allocation2 + $0x18] sm:$0xff] %v1715
        %1732 = vst [vmem:[#allocation2 + $0x20] sm:$0xff] %v1716
        %1733 = vst [vmem:[#allocation2 + $0x28] sm:$0xff] %v1717
        %1734 = vst [vmem:[#allocation2 + $0x30] sm:$0xff] %v1718
        %1735 = vst [vmem:[#allocation2 + $0x38] sm:$0xff] %v1719
        %1736 = vst [vmem:[#allocation2 + $0x40] sm:$0xff] %v1720
        %1737 = vst [vmem:[#allocation2 + $0x48] sm:$0xff] %v1721
        %1738 = vst [vmem:[#allocation2 + $0x50] sm:$0xff] %v1722
        %1739 = vst [vmem:[#allocation2 + $0x58] sm:$0xff] %v1723
        %1740 = vst [vmem:[#allocation2 + $0x60] sm:$0xff] %v1724
        %1741 = vst [vmem:[#allocation2 + $0x68] sm:$0xff] %v1725
        %1742 = vst [vmem:[#allocation2 + $0x70] sm:$0xff] %v1726
        %1743 = vst [vmem:[#allocation2 + $0x78] sm:$0xff] %v1727
        %v1744 = vld [vmem:[#allocation3 + $0x20] sm:$0xff]
        %v1745 = vld [vmem:[#allocation3 + $0x28] sm:$0xff]
        %v1746 = vld [vmem:[#allocation3 + $0x30] sm:$0xff]
        %v1747 = vld [vmem:[#allocation3 + $0x38] sm:$0xff]
        %v1748 = vld [vmem:[#allocation3 + $0x40] sm:$0xff]
        %v1749 = vld [vmem:[#allocation3 + $0x48] sm:$0xff]
        %v1750 = vld [vmem:[#allocation3 + $0x50] sm:$0xff]
        %v1751 = vld [vmem:[#allocation3 + $0x58] sm:$0xff]
        %v1752 = vld [vmem:[#allocation3 + $0x60] sm:$0x1]
        %s1753 = scalar_lea.vmem %s1, 14
        %v1754 = vld [vmem:[%s1753] sm:$0x3]
        %v1756 = vshrl.u32 %v1744, 16
        %v1758 = vshll.u32 %v1744, 16
        %v1760 = vrot.slane %v1758, 1
        %v1761 = vor.u32 %v1756, %v1760
        %v1763 = vshll.u32 %v1745, 16
        %v1765 = vrot.slane %v1763, 1
        %v1766 = vsel %vm469, %v1761, %v1765
        %v1767 = vshrl.u32 %v1745, 16
        %v1769 = vor.u32 %v1767, %v1765
        %v1771 = vshll.u32 %v1746, 16
        %v1773 = vrot.slane %v1771, 1
        %v1774 = vsel %vm469, %v1769, %v1773
        %v1775 = vshrl.u32 %v1746, 16
        %v1777 = vor.u32 %v1775, %v1773
        %v1779 = vshll.u32 %v1747, 16
        %v1781 = vrot.slane %v1779, 1
        %v1782 = vsel %vm469, %v1777, %v1781
        %v1783 = vshrl.u32 %v1747, 16
        %v1785 = vor.u32 %v1783, %v1781
        %v1787 = vshll.u32 %v1748, 16
        %v1789 = vrot.slane %v1787, 1
        %v1790 = vsel %vm469, %v1785, %v1789
        %v1791 = vshrl.u32 %v1748, 16
        %v1793 = vor.u32 %v1791, %v1789
        %v1795 = vshll.u32 %v1749, 16
        %v1797 = vrot.slane %v1795, 1
        %v1798 = vsel %vm469, %v1793, %v1797
        %v1799 = vshrl.u32 %v1749, 16
        %v1801 = vor.u32 %v1799, %v1797
        %v1803 = vshll.u32 %v1750, 16
        %v1805 = vrot.slane %v1803, 1
        %v1806 = vsel %vm469, %v1801, %v1805
        %v1807 = vshrl.u32 %v1750, 16
        %v1809 = vor.u32 %v1807, %v1805
        %v1811 = vshll.u32 %v1751, 16
        %v1813 = vrot.slane %v1811, 1
        %v1814 = vsel %vm469, %v1809, %v1813
        %v1815 = vshrl.u32 %v1751, 16
        %v1817 = vor.u32 %v1815, %v1813
        %v1819 = vshll.u32 %v1752, 16
        %v1821 = vrot.slane %v1819, 1
        %v1822 = vsel %vm469, %v1817, %v1821
        %v1824 = vsel %vm294, %v1766, 0
        %v1827 = vsel %vm294, %v1774, 0
        %v1830 = vsel %vm294, %v1782, 0
        %v1833 = vsel %vm294, %v1790, 0
        %v1836 = vsel %vm294, %v1798, 0
        %v1839 = vsel %vm294, %v1806, 0
        %v1842 = vsel %vm294, %v1814, 0
        %v1845 = vsel %vm294, %v1822, 0
        %v1848 = vsel %vm341, %v1754, 0
        %1850 = vmatprep.subr.bf16.mxu0 0
        %1851 = vmatpush1.bf16.msra.mxu0 %v1848
        %1852 = vmatprep.subr.bf16.mxu0 0
        %1853 = vmatpush1.bf16.msra.mxu0 0
        %1854 = vmatprep.subr.bf16.mxu0 0
        %1855 = vmatpush1.bf16.msra.mxu0 0
        %1856 = vmatprep.subr.bf16.mxu0 0
        %1857 = vmatpush1.bf16.msra.mxu0 0
        %1858 = vmatprep.subr.bf16.mxu0 0
        %1859 = vmatpush1.bf16.msra.mxu0 0
        %1860 = vmatprep.subr.bf16.mxu0 0
        %1861 = vmatpush1.bf16.msra.mxu0 0
        %1862 = vmatprep.subr.bf16.mxu0 0
        %1863 = vmatpush1.bf16.msra.mxu0 0
        %1864 = vmatprep.subr.bf16.mxu0 0
        %1865 = vmatpush1.bf16.msra.mxu0 0
        %1866 = vmatprep.subr.bf16.mxu0 0
        %1867 = vmatpush1.bf16.msra.mxu0 0
        %1868 = vmatprep.subr.bf16.mxu0 0
        %1869 = vmatpush1.bf16.msra.mxu0 0
        %1870 = vmatprep.subr.bf16.mxu0 0
        %1871 = vmatpush1.bf16.msra.mxu0 0
        %1872 = vmatprep.subr.bf16.mxu0 0
        %1873 = vmatpush1.bf16.msra.mxu0 0
        %1874 = vmatprep.subr.bf16.mxu0 0
        %1875 = vmatpush1.bf16.msra.mxu0 0
        %1876 = vmatprep.subr.bf16.mxu0 0
        %1877 = vmatpush1.bf16.msra.mxu0 0
        %1878 = vmatprep.subr.bf16.mxu0 0
        %1879 = vmatpush1.bf16.msra.mxu0 0
        %1880 = vmatprep.subr.bf16.mxu0 0
        %1881 = vmatpush1.bf16.msra.mxu0 0
        %1882 = vmatprep.mubr.bf16.mxu0 0
        %1883 = vmatmul.mubr.bf16.gmra.mrb[0].mxu0 %v1824
        %v1884 = vpop.f32.mrb[0].mxu0
        %v1885 = vadd.f32 0.0, %v1884
        %v1886 = vpop.f32.mrb[0].mxu0
        %v1887 = vpop.f32.mrb[0].mxu0
        %v1888 = vadd.f32 0.0, %v1887
        %v1889 = vpop.f32.mrb[0].mxu0
        %1890 = vmatprep.mubr.bf16.mxu0 0
        %1891 = vmatmul.mubr.bf16.gmra.mrb[0].mxu0 %v1827
        %v1892 = vpop.f32.mrb[0].mxu0
        %v1893 = vadd.f32 0.0, %v1892
        %v1894 = vpop.f32.mrb[0].mxu0
        %v1895 = vpop.f32.mrb[0].mxu0
        %v1896 = vadd.f32 0.0, %v1895
        %v1897 = vpop.f32.mrb[0].mxu0
        %1898 = vmatprep.mubr.bf16.mxu0 0
        %1899 = vmatmul.mubr.bf16.gmra.mrb[0].mxu0 %v1830
        %v1900 = vpop.f32.mrb[0].mxu0
        %v1901 = vadd.f32 0.0, %v1900
        %v1902 = vpop.f32.mrb[0].mxu0
        %v1903 = vpop.f32.mrb[0].mxu0
        %v1904 = vadd.f32 0.0, %v1903
        %v1905 = vpop.f32.mrb[0].mxu0
        %1906 = vmatprep.mubr.bf16.mxu0 0
        %1907 = vmatmul.mubr.bf16.gmra.mrb[0].mxu0 %v1833
        %v1908 = vpop.f32.mrb[0].mxu0
        %v1909 = vadd.f32 0.0, %v1908
        %v1910 = vpop.f32.mrb[0].mxu0
        %v1911 = vpop.f32.mrb[0].mxu0
        %v1912 = vadd.f32 0.0, %v1911
        %v1913 = vpop.f32.mrb[0].mxu0
        %1914 = vmatprep.mubr.bf16.mxu0 0
        %1915 = vmatmul.mubr.bf16.gmra.mrb[0].mxu0 %v1836
        %v1916 = vpop.f32.mrb[0].mxu0
        %v1917 = vadd.f32 0.0, %v1916
        %v1918 = vpop.f32.mrb[0].mxu0
        %v1919 = vpop.f32.mrb[0].mxu0
        %v1920 = vadd.f32 0.0, %v1919
        %v1921 = vpop.f32.mrb[0].mxu0
        %1922 = vmatprep.mubr.bf16.mxu0 0
        %1923 = vmatmul.mubr.bf16.gmra.mrb[0].mxu0 %v1839
        %v1924 = vpop.f32.mrb[0].mxu0
        %v1925 = vadd.f32 0.0, %v1924
        %v1926 = vpop.f32.mrb[0].mxu0
        %v1927 = vpop.f32.mrb[0].mxu0
        %v1928 = vadd.f32 0.0, %v1927
        %v1929 = vpop.f32.mrb[0].mxu0
        %1930 = vmatprep.mubr.bf16.mxu0 0
        %1931 = vmatmul.mubr.bf16.gmra.mrb[0].mxu0 %v1842
        %v1932 = vpop.f32.mrb[0].mxu0
        %v1933 = vadd.f32 0.0, %v1932
        %v1934 = vpop.f32.mrb[0].mxu0
        %v1935 = vpop.f32.mrb[0].mxu0
        %v1936 = vadd.f32 0.0, %v1935
        %v1937 = vpop.f32.mrb[0].mxu0
        %1938 = vmatprep.mubr.bf16.mxu0 0
        %1939 = vmatmul.mubr.bf16.gmra.mrb[0].mxu0 %v1845
        %v1940 = vpop.f32.mrb[0].mxu0
        %v1941 = vadd.f32 0.0, %v1940
        %v1942 = vpop.f32.mrb[0].mxu0
        %v1943 = vpop.f32.mrb[0].mxu0
        %v1944 = vadd.f32 0.0, %v1943
        %v1945 = vpop.f32.mrb[0].mxu0
        %1946 = vdwg.mxu0
        %v1947 = vld [vmem:[#allocation2] sm:$0xff]
        %v1948 = vld [vmem:[#allocation2 + $0x8] sm:$0xff]
        %v1949 = vld [vmem:[#allocation2 + $0x10] sm:$0xff]
        %v1950 = vld [vmem:[#allocation2 + $0x18] sm:$0xff]
        %v1951 = vld [vmem:[#allocation2 + $0x20] sm:$0xff]
        %v1952 = vld [vmem:[#allocation2 + $0x28] sm:$0xff]
        %v1953 = vld [vmem:[#allocation2 + $0x30] sm:$0xff]
        %v1954 = vld [vmem:[#allocation2 + $0x38] sm:$0xff]
        %v1955 = vld [vmem:[#allocation2 + $0x40] sm:$0xff]
        %v1956 = vld [vmem:[#allocation2 + $0x48] sm:$0xff]
        %v1957 = vld [vmem:[#allocation2 + $0x50] sm:$0xff]
        %v1958 = vld [vmem:[#allocation2 + $0x58] sm:$0xff]
        %v1959 = vld [vmem:[#allocation2 + $0x60] sm:$0xff]
        %v1960 = vld [vmem:[#allocation2 + $0x68] sm:$0xff]
        %v1961 = vld [vmem:[#allocation2 + $0x70] sm:$0xff]
        %v1962 = vld [vmem:[#allocation2 + $0x78] sm:$0xff]
        %v1963 = vadd.f32 %v1947, %v1885
        %v1964 = vadd.f32 %v1948, %v1888
        %v1965 = vadd.f32 %v1949, %v1893
        %v1966 = vadd.f32 %v1950, %v1896
        %v1967 = vadd.f32 %v1951, %v1901
        %v1968 = vadd.f32 %v1952, %v1904
        %v1969 = vadd.f32 %v1953, %v1909
        %v1970 = vadd.f32 %v1954, %v1912
        %v1971 = vadd.f32 %v1955, %v1917
        %v1972 = vadd.f32 %v1956, %v1920
        %v1973 = vadd.f32 %v1957, %v1925
        %v1974 = vadd.f32 %v1958, %v1928
        %v1975 = vadd.f32 %v1959, %v1933
        %v1976 = vadd.f32 %v1960, %v1936
        %v1977 = vadd.f32 %v1961, %v1941
        %v1978 = vadd.f32 %v1962, %v1944
        %1979 = vst [vmem:[#allocation2] sm:$0xff] %v1963
        %1980 = vst [vmem:[#allocation2 + $0x8] sm:$0xff] %v1964
        %1981 = vst [vmem:[#allocation2 + $0x10] sm:$0xff] %v1965
        %1982 = vst [vmem:[#allocation2 + $0x18] sm:$0xff] %v1966
        %1983 = vst [vmem:[#allocation2 + $0x20] sm:$0xff] %v1967
        %1984 = vst [vmem:[#allocation2 + $0x28] sm:$0xff] %v1968
        %1985 = vst [vmem:[#allocation2 + $0x30] sm:$0xff] %v1969
        %1986 = vst [vmem:[#allocation2 + $0x38] sm:$0xff] %v1970
        %1987 = vst [vmem:[#allocation2 + $0x40] sm:$0xff] %v1971
        %1988 = vst [vmem:[#allocation2 + $0x48] sm:$0xff] %v1972
        %1989 = vst [vmem:[#allocation2 + $0x50] sm:$0xff] %v1973
        %1990 = vst [vmem:[#allocation2 + $0x58] sm:$0xff] %v1974
        %1991 = vst [vmem:[#allocation2 + $0x60] sm:$0xff] %v1975
        %1992 = vst [vmem:[#allocation2 + $0x68] sm:$0xff] %v1976
        %1993 = vst [vmem:[#allocation2 + $0x70] sm:$0xff] %v1977
        %1994 = vst [vmem:[#allocation2 + $0x78] sm:$0xff] %v1978
        %v1995 = vld [vmem:[#allocation3 + $0x20] sm:$0xfe]
        %v1996 = vld [vmem:[#allocation3 + $0x28] sm:$0xff]
        %v1997 = vld [vmem:[#allocation3 + $0x30] sm:$0xff]
        %v1998 = vld [vmem:[#allocation3 + $0x38] sm:$0xff]
        %v1999 = vld [vmem:[#allocation3 + $0x40] sm:$0xff]
        %v2000 = vld [vmem:[#allocation3 + $0x48] sm:$0xff]
        %v2001 = vld [vmem:[#allocation3 + $0x50] sm:$0xff]
        %v2002 = vld [vmem:[#allocation3 + $0x58] sm:$0xff]
        %v2003 = vld [vmem:[#allocation3 + $0x60] sm:$0x1]
        %s2004 = scalar_lea.vmem %s1, 16
        %v2005 = vld [vmem:[%s2004] sm:$0x3]
        %v2015 = vrot.slane %v1995, 1
        %v2016 = vrot.slane %v1996, 1
        %v2017 = vsel %vm730, %v2015, %v2016
        %v2018 = vrot.slane %v1997, 1
        %v2019 = vsel %vm730, %v2016, %v2018
        %v2020 = vrot.slane %v1998, 1
        %v2021 = vsel %vm730, %v2018, %v2020
        %v2022 = vrot.slane %v1999, 1
        %v2023 = vsel %vm730, %v2020, %v2022
        %v2024 = vrot.slane %v2000, 1
        %v2025 = vsel %vm730, %v2022, %v2024
        %v2026 = vrot.slane %v2001, 1
        %v2027 = vsel %vm730, %v2024, %v2026
        %v2028 = vrot.slane %v2002, 1
        %v2029 = vsel %vm730, %v2026, %v2028
        %v2030 = vrot.slane %v2003, 1
        %v2031 = vsel %vm730, %v2028, %v2030
        %v2033 = vsel %vm294, %v2017, 0
        %v2036 = vsel %vm294, %v2019, 0
        %v2039 = vsel %vm294, %v2021, 0
        %v2042 = vsel %vm294, %v2023, 0
        %v2045 = vsel %vm294, %v2025, 0
        %v2048 = vsel %vm294, %v2027, 0
        %v2051 = vsel %vm294, %v2029, 0
        %v2054 = vsel %vm294, %v2031, 0
        %v2057 = vsel %vm341, %v2005, 0
        %2059 = vmatprep.subr.bf16.mxu0 0
        %2060 = vmatpush1.bf16.msra.mxu0 %v2057
        %2061 = vmatprep.subr.bf16.mxu0 0
        %2062 = vmatpush1.bf16.msra.mxu0 0
        %2063 = vmatprep.subr.bf16.mxu0 0
        %2064 = vmatpush1.bf16.msra.mxu0 0
        %2065 = vmatprep.subr.bf16.mxu0 0
        %2066 = vmatpush1.bf16.msra.mxu0 0
        %2067 = vmatprep.subr.bf16.mxu0 0
        %2068 = vmatpush1.bf16.msra.mxu0 0
        %2069 = vmatprep.subr.bf16.mxu0 0
        %2070 = vmatpush1.bf16.msra.mxu0 0
        %2071 = vmatprep.subr.bf16.mxu0 0
        %2072 = vmatpush1.bf16.msra.mxu0 0
        %2073 = vmatprep.subr.bf16.mxu0 0
        %2074 = vmatpush1.bf16.msra.mxu0 0
        %2075 = vmatprep.subr.bf16.mxu0 0
        %2076 = vmatpush1.bf16.msra.mxu0 0
        %2077 = vmatprep.subr.bf16.mxu0 0
        %2078 = vmatpush1.bf16.msra.mxu0 0
        %2079 = vmatprep.subr.bf16.mxu0 0
        %2080 = vmatpush1.bf16.msra.mxu0 0
        %2081 = vmatprep.subr.bf16.mxu0 0
        %2082 = vmatpush1.bf16.msra.mxu0 0
        %2083 = vmatprep.subr.bf16.mxu0 0
        %2084 = vmatpush1.bf16.msra.mxu0 0
        %2085 = vmatprep.subr.bf16.mxu0 0
        %2086 = vmatpush1.bf16.msra.mxu0 0
        %2087 = vmatprep.subr.bf16.mxu0 0
        %2088 = vmatpush1.bf16.msra.mxu0 0
        %2089 = vmatprep.subr.bf16.mxu0 0
        %2090 = vmatpush1.bf16.msra.mxu0 0
        %2091 = vmatprep.mubr.bf16.mxu0 0
        %2092 = vmatmul.mubr.bf16.gmra.mrb[0].mxu0 %v2033
        %v2093 = vpop.f32.mrb[0].mxu0
        %v2094 = vadd.f32 0.0, %v2093
        %v2095 = vpop.f32.mrb[0].mxu0
        %v2096 = vpop.f32.mrb[0].mxu0
        %v2097 = vadd.f32 0.0, %v2096
        %v2098 = vpop.f32.mrb[0].mxu0
        %2099 = vmatprep.mubr.bf16.mxu0 0
        %2100 = vmatmul.mubr.bf16.gmra.mrb[0].mxu0 %v2036
        %v2101 = vpop.f32.mrb[0].mxu0
        %v2102 = vadd.f32 0.0, %v2101
        %v2103 = vpop.f32.mrb[0].mxu0
        %v2104 = vpop.f32.mrb[0].mxu0
        %v2105 = vadd.f32 0.0, %v2104
        %v2106 = vpop.f32.mrb[0].mxu0
        %2107 = vmatprep.mubr.bf16.mxu0 0
        %2108 = vmatmul.mubr.bf16.gmra.mrb[0].mxu0 %v2039
        %v2109 = vpop.f32.mrb[0].mxu0
        %v2110 = vadd.f32 0.0, %v2109
        %v2111 = vpop.f32.mrb[0].mxu0
        %v2112 = vpop.f32.mrb[0].mxu0
        %v2113 = vadd.f32 0.0, %v2112
        %v2114 = vpop.f32.mrb[0].mxu0
        %2115 = vmatprep.mubr.bf16.mxu0 0
        %2116 = vmatmul.mubr.bf16.gmra.mrb[0].mxu0 %v2042
        %v2117 = vpop.f32.mrb[0].mxu0
        %v2118 = vadd.f32 0.0, %v2117
        %v2119 = vpop.f32.mrb[0].mxu0
        %v2120 = vpop.f32.mrb[0].mxu0
        %v2121 = vadd.f32 0.0, %v2120
        %v2122 = vpop.f32.mrb[0].mxu0
        %2123 = vmatprep.mubr.bf16.mxu0 0
        %2124 = vmatmul.mubr.bf16.gmra.mrb[0].mxu0 %v2045
        %v2125 = vpop.f32.mrb[0].mxu0
        %v2126 = vadd.f32 0.0, %v2125
        %v2127 = vpop.f32.mrb[0].mxu0
        %v2128 = vpop.f32.mrb[0].mxu0
        %v2129 = vadd.f32 0.0, %v2128
        %v2130 = vpop.f32.mrb[0].mxu0
        %2131 = vmatprep.mubr.bf16.mxu0 0
        %2132 = vmatmul.mubr.bf16.gmra.mrb[0].mxu0 %v2048
        %v2133 = vpop.f32.mrb[0].mxu0
        %v2134 = vadd.f32 0.0, %v2133
        %v2135 = vpop.f32.mrb[0].mxu0
        %v2136 = vpop.f32.mrb[0].mxu0
        %v2137 = vadd.f32 0.0, %v2136
        %v2138 = vpop.f32.mrb[0].mxu0
        %2139 = vmatprep.mubr.bf16.mxu0 0
        %2140 = vmatmul.mubr.bf16.gmra.mrb[0].mxu0 %v2051
        %v2141 = vpop.f32.mrb[0].mxu0
        %v2142 = vadd.f32 0.0, %v2141
        %v2143 = vpop.f32.mrb[0].mxu0
        %v2144 = vpop.f32.mrb[0].mxu0
        %v2145 = vadd.f32 0.0, %v2144
        %v2146 = vpop.f32.mrb[0].mxu0
        %2147 = vmatprep.mubr.bf16.mxu0 0
        %2148 = vmatmul.mubr.bf16.gmra.mrb[0].mxu0 %v2054
        %v2149 = vpop.f32.mrb[0].mxu0
        %v2150 = vadd.f32 0.0, %v2149
        %v2151 = vpop.f32.mrb[0].mxu0
        %v2152 = vpop.f32.mrb[0].mxu0
        %v2153 = vadd.f32 0.0, %v2152
        %v2154 = vpop.f32.mrb[0].mxu0
        %2155 = vdwg.mxu0
        %v2156 = vld [vmem:[#allocation2] sm:$0xff]
        %v2157 = vld [vmem:[#allocation2 + $0x8] sm:$0xff]
        %v2158 = vld [vmem:[#allocation2 + $0x10] sm:$0xff]
        %v2159 = vld [vmem:[#allocation2 + $0x18] sm:$0xff]
        %v2160 = vld [vmem:[#allocation2 + $0x20] sm:$0xff]
        %v2161 = vld [vmem:[#allocation2 + $0x28] sm:$0xff]
        %v2162 = vld [vmem:[#allocation2 + $0x30] sm:$0xff]
        %v2163 = vld [vmem:[#allocation2 + $0x38] sm:$0xff]
        %v2164 = vld [vmem:[#allocation2 + $0x40] sm:$0xff]
        %v2165 = vld [vmem:[#allocation2 + $0x48] sm:$0xff]
        %v2166 = vld [vmem:[#allocation2 + $0x50] sm:$0xff]
        %v2167 = vld [vmem:[#allocation2 + $0x58] sm:$0xff]
        %v2168 = vld [vmem:[#allocation2 + $0x60] sm:$0xff]
        %v2169 = vld [vmem:[#allocation2 + $0x68] sm:$0xff]
        %v2170 = vld [vmem:[#allocation2 + $0x70] sm:$0xff]
        %v2171 = vld [vmem:[#allocation2 + $0x78] sm:$0xff]
        %v2172 = vadd.f32 %v2156, %v2094
        %v2173 = vadd.f32 %v2157, %v2097
        %v2174 = vadd.f32 %v2158, %v2102
        %v2175 = vadd.f32 %v2159, %v2105
        %v2176 = vadd.f32 %v2160, %v2110
        %v2177 = vadd.f32 %v2161, %v2113
        %v2178 = vadd.f32 %v2162, %v2118
        %v2179 = vadd.f32 %v2163, %v2121
        %v2180 = vadd.f32 %v2164, %v2126
        %v2181 = vadd.f32 %v2165, %v2129
        %v2182 = vadd.f32 %v2166, %v2134
        %v2183 = vadd.f32 %v2167, %v2137
        %v2184 = vadd.f32 %v2168, %v2142
        %v2185 = vadd.f32 %v2169, %v2145
        %v2186 = vadd.f32 %v2170, %v2150
        %v2187 = vadd.f32 %v2171, %v2153
        %2188 = vst [vmem:[#allocation2] sm:$0xff] %v2172
        %2189 = vst [vmem:[#allocation2 + $0x8] sm:$0xff] %v2173
        %2190 = vst [vmem:[#allocation2 + $0x10] sm:$0xff] %v2174
        %2191 = vst [vmem:[#allocation2 + $0x18] sm:$0xff] %v2175
        %2192 = vst [vmem:[#allocation2 + $0x20] sm:$0xff] %v2176
        %2193 = vst [vmem:[#allocation2 + $0x28] sm:$0xff] %v2177
        %2194 = vst [vmem:[#allocation2 + $0x30] sm:$0xff] %v2178
        %2195 = vst [vmem:[#allocation2 + $0x38] sm:$0xff] %v2179
        %2196 = vst [vmem:[#allocation2 + $0x40] sm:$0xff] %v2180
        %2197 = vst [vmem:[#allocation2 + $0x48] sm:$0xff] %v2181
        %2198 = vst [vmem:[#allocation2 + $0x50] sm:$0xff] %v2182
        %2199 = vst [vmem:[#allocation2 + $0x58] sm:$0xff] %v2183
        %2200 = vst [vmem:[#allocation2 + $0x60] sm:$0xff] %v2184
        %2201 = vst [vmem:[#allocation2 + $0x68] sm:$0xff] %v2185
        %2202 = vst [vmem:[#allocation2 + $0x70] sm:$0xff] %v2186
        %2203 = vst [vmem:[#allocation2 + $0x78] sm:$0xff] %v2187
        %v2204 = vld [vmem:[#allocation2] sm:$0xff]
        %v2205 = vld [vmem:[#allocation2 + $0x8] sm:$0xff]
        %v2206 = vld [vmem:[#allocation2 + $0x10] sm:$0xff]
        %v2207 = vld [vmem:[#allocation2 + $0x18] sm:$0xff]
        %v2208 = vld [vmem:[#allocation2 + $0x20] sm:$0xff]
        %v2209 = vld [vmem:[#allocation2 + $0x28] sm:$0xff]
        %v2210 = vld [vmem:[#allocation2 + $0x30] sm:$0xff]
        %v2211 = vld [vmem:[#allocation2 + $0x38] sm:$0xff]
        %v2212 = vld [vmem:[#allocation2 + $0x40] sm:$0xff]
        %v2213 = vld [vmem:[#allocation2 + $0x48] sm:$0xff]
        %v2214 = vld [vmem:[#allocation2 + $0x50] sm:$0xff]
        %v2215 = vld [vmem:[#allocation2 + $0x58] sm:$0xff]
        %v2216 = vld [vmem:[#allocation2 + $0x60] sm:$0xff]
        %v2217 = vld [vmem:[#allocation2 + $0x68] sm:$0xff]
        %v2218 = vld [vmem:[#allocation2 + $0x70] sm:$0xff]
        %v2219 = vld [vmem:[#allocation2 + $0x78] sm:$0xff]
        %v2220 = vld [vmem:[%s2] sm:$0x1]
        %v2222 = vlaneseq
        %v2223 = vshrl.u32 %v2222, 7
        %v2224 = vsub.s32 0, %v2223
        %v2225 = vrot.slane %v2220, %v2224
        %v2227 = vadd.f32 %v2204, %v2225
        %v2228 = vadd.f32 %v2205, %v2225
        %v2229 = vadd.f32 %v2206, %v2225
        %v2230 = vadd.f32 %v2207, %v2225
        %v2231 = vadd.f32 %v2208, %v2225
        %v2232 = vadd.f32 %v2209, %v2225
        %v2233 = vadd.f32 %v2210, %v2225
        %v2234 = vadd.f32 %v2211, %v2225
        %v2235 = vadd.f32 %v2212, %v2225
        %v2236 = vadd.f32 %v2213, %v2225
        %v2237 = vadd.f32 %v2214, %v2225
        %v2238 = vadd.f32 %v2215, %v2225
        %v2239 = vadd.f32 %v2216, %v2225
        %v2240 = vadd.f32 %v2217, %v2225
        %v2241 = vadd.f32 %v2218, %v2225
        %v2242 = vadd.f32 %v2219, %v2225
        %v2243 = vmax.f32 %v2227, 0.0
        %v2244 = vmax.f32 %v2228, 0.0
        %v2245 = vmax.f32 %v2229, 0.0
        %v2246 = vmax.f32 %v2230, 0.0
        %v2247 = vmax.f32 %v2231, 0.0
        %v2248 = vmax.f32 %v2232, 0.0
        %v2249 = vmax.f32 %v2233, 0.0
        %v2250 = vmax.f32 %v2234, 0.0
        %v2251 = vmax.f32 %v2235, 0.0
        %v2252 = vmax.f32 %v2236, 0.0
        %v2253 = vmax.f32 %v2237, 0.0
        %v2254 = vmax.f32 %v2238, 0.0
        %v2255 = vmax.f32 %v2239, 0.0
        %v2256 = vmax.f32 %v2240, 0.0
        %v2257 = vmax.f32 %v2241, 0.0
        %v2258 = vmax.f32 %v2242, 0.0
        %v2259 = vpack.c.bf16 %v2244, %v2243
        %v2260 = vpack.c.bf16 %v2246, %v2245
        %v2261 = vpack.c.bf16 %v2248, %v2247
        %v2262 = vpack.c.bf16 %v2250, %v2249
        %v2263 = vpack.c.bf16 %v2252, %v2251
        %v2264 = vpack.c.bf16 %v2254, %v2253
        %v2265 = vpack.c.bf16 %v2256, %v2255
        %v2266 = vpack.c.bf16 %v2258, %v2257
        %v2275 = vunpack.c.l.b16 %v2259
        %v2276 = vunpack.c.h.b16 %v2259
        %v2277 = vunpack.c.l.b16 %v2260
        %v2278 = vunpack.c.h.b16 %v2260
        %v2279 = vunpack.c.l.b16 %v2261
        %v2280 = vunpack.c.h.b16 %v2261
        %v2281 = vunpack.c.l.b16 %v2262
        %v2282 = vunpack.c.h.b16 %v2262
        %v2283 = vunpack.c.l.b16 %v2263
        %v2284 = vunpack.c.h.b16 %v2263
        %v2285 = vunpack.c.l.b16 %v2264
        %v2286 = vunpack.c.h.b16 %v2264
        %v2287 = vunpack.c.l.b16 %v2265
        %v2288 = vunpack.c.h.b16 %v2265
        %v2289 = vunpack.c.l.b16 %v2266
        %v2290 = vunpack.c.h.b16 %v2266
        %v2291 = vpack.c.b16 %v2275, %v2275
        %v2292 = vpack.c.b16 %v2276, %v2276
        %v2293 = vpack.c.b16 %v2277, %v2277
        %v2294 = vpack.c.b16 %v2278, %v2278
        %v2295 = vpack.c.b16 %v2279, %v2279
        %v2296 = vpack.c.b16 %v2280, %v2280
        %v2297 = vpack.c.b16 %v2281, %v2281
        %v2298 = vpack.c.b16 %v2282, %v2282
        %v2299 = vpack.c.b16 %v2283, %v2283
        %v2300 = vpack.c.b16 %v2284, %v2284
        %v2301 = vpack.c.b16 %v2285, %v2285
        %v2302 = vpack.c.b16 %v2286, %v2286
        %v2303 = vpack.c.b16 %v2287, %v2287
        %v2304 = vpack.c.b16 %v2288, %v2288
        %v2305 = vpack.c.b16 %v2289, %v2289
        %v2306 = vpack.c.b16 %v2290, %v2290
        %2323 = vst [vmem:[%s177] sm:$0xf] %v2291
        %2324 = vst [vmem:[%s177 + $0x4] sm:$0xf] %v2292
        %2325 = vst [vmem:[%s177 + $0x8] sm:$0xf] %v2293
        %2326 = vst [vmem:[%s177 + $0xc] sm:$0xf] %v2294
        %2327 = vst [vmem:[%s177 + $0x10] sm:$0xf] %v2295
        %2328 = vst [vmem:[%s177 + $0x14] sm:$0xf] %v2296
        %2329 = vst [vmem:[%s177 + $0x18] sm:$0xf] %v2297
        %2330 = vst [vmem:[%s177 + $0x1c] sm:$0xf] %v2298
        %2331 = vst [vmem:[%s177 + $0x20] sm:$0xf] %v2299
        %2332 = vst [vmem:[%s177 + $0x24] sm:$0xf] %v2300
        %2333 = vst [vmem:[%s177 + $0x28] sm:$0xf] %v2301
        %2334 = vst [vmem:[%s177 + $0x2c] sm:$0xf] %v2302
        %2335 = vst [vmem:[%s177 + $0x30] sm:$0xf] %v2303
        %2336 = vst [vmem:[%s177 + $0x34] sm:$0xf] %v2304
        %2337 = vst [vmem:[%s177 + $0x38] sm:$0xf] %v2305
        %2338 = vst [vmem:[%s177 + $0x3c] sm:$0xf] %v2306
        %s2339 = sand.u32 %s107, 1
        %s2340 = scalar_lea.sflag [#allocation5], %s2339
        %s2341 = sand.u32 %s107, 1
        %s2342 = smul.addr %s2341, 64
        %s2343 = scalar_lea.vmem [#allocation4], %s2342
        // Predicated region
        $region33: #{tpu_custom_call.1} parent=31 // pred_check
          %p2344 = pneg %p117
        $region34: #{tpu_custom_call.1} parent=31 // pred_check_branch
          %2346 = sbr.rel (%p2344) target = $region36
        $region35: #{tpu_custom_call.1} parent=31 // pred_region
          %s2347 = smul.u32 16, %s22
          %s2349 = ssub.s32 1024, 1024
          %2350 = vsyncadd %s2340, %s2349
          %s2351 = smul.addr %s21, 64
          %s2352 = sadd.s32 %s2347, %s2351
          %s2353 = smul.addr %s2352, 64
          %s2354 = scalar_lea.hbm %s3, %s2353
          %s2355 = sshll.u32 %s2343, 4
          %s2356 = int_to_ptr.vmem [resolvable:$true] %s2355
          %2361 = dma.vmem_to_hbm [thread:$0]  %s2356, 1024, %s2354, %s2340, 64, 64, 4
        $region36: #{tpu_custom_call.1} parent=31 // pred_fallthru
          _
      $region32: #{tpu_custom_call.1} parent=5 // pred_fallthru
        _
      %p2362 = scmp.le.s32.totalorder 2, %s12
      // Predicated region
      $region37: #{tpu_custom_call.1} parent=5 // pred_check
        %p2363 = pneg %p2362
      $region38: #{tpu_custom_call.1} parent=5 // pred_check_branch
        %2365 = sbr.rel (%p2363) target = $region40
      $region39: #{tpu_custom_call.1} parent=5 // pred_region
        %s2366 = ssub.s32 %s12, 2
        // Predicated region
        $region41: #{tpu_custom_call.1} parent=39 // pred_check
          %p2367 = pneg %p123
        $region42: #{tpu_custom_call.1} parent=39 // pred_check_branch
          %2369 = sbr.rel (%p2367) target = $region44
        $region43: #{tpu_custom_call.1} parent=39 // pred_region
          %s2370 = sand.u32 %s108, 1
          %s2371 = scalar_lea.sflag [#allocation5], %s2370
          %s2372 = sand.u32 %s108, 1
          %s2373 = smul.addr %s2372, 64
          %s2374 = scalar_lea.vmem [#allocation4], %s2373
          %2375 = dma.done %s2371, 1024
        $region44: #{tpu_custom_call.1} parent=39 // pred_fallthru
          _
      $region40: #{tpu_custom_call.1} parent=5 // pred_fallthru
        _
    $region6: #{tpu_custom_call.1} parent=1 // loop_footer
      %s16 = sadd.s32 1, %s12
    $region7: #{tpu_custom_call.1} parent=1 // loop_footer_branch
      %11 = sbr.rel target = $region3
    $region8: #{tpu_custom_call.1} parent=1 // loop_exit
      _
    %2376 = vsyncpa [#allocation5], 1
    %s2377 = scalar_lea.sflag [#allocation5], 1
    %2378 = vsyncpa %s2377, 1

// kernel: tpu_custom_call.1
$region0: #{tpu_custom_call.1}
  #allocation0 [shape = 'u32[]', space=smem, size = 0x4, offset = 0x4, fixed_abs, tag = 'smem constant byte address 0x4 - core index']
  #allocation1 [shape = 'u32[144,128]{1,0:T(1,128)}', space=vmem, size = 0x12000, scoped, tag = 'internal scratch']
  #allocation2 [shape = 'f32[128,128]{1,0:T(8,128)}', space=vmem, size = 0x10000, scoped, tag = 'scratch operand']
  #allocation3 [shape = 'bf16[208,4]{1,0:T(16,128)(2,1)}', space=vmem, size = 0xd000, scoped, tag = 'scratch operand']
  %s0 = inlined_call_operand.vmem [shape: bf16[2,592,4], index: 0, kind: input, shape index: {}]
  %s1 = inlined_call_operand.vmem [shape: bf16[9,4,128], index: 1, kind: input, shape index: {}]
  %s2 = inlined_call_operand.vmem [shape: f32[1,128], index: 2, kind: input, shape index: {}]
  %s3 = inlined_call_operand.hbm [shape: bf16[2,512,128], index: 3, kind: output, shape index: {}]
  %s4 = sld [smem:[#allocation0]]
  $region45: #{tpu_custom_call.1} parent=0
    _
  %s6 = ssub.s32 1, %s4
  %s7 = scalar_select 0, %s6, %s4
  $region1: #{tpu_custom_call.1} parent=0
    #allocation4 [shape = 'u8[65536]{0}', space=vmem, size = 0x10000, scoped, tag = 'output window, operand 0']
    #allocation5 [shape = 's32[2]{0}', space=sflag, size = 0x8, scoped, tag = 'scoped memory for tpu_custom_call.1']
    %8 = vsyncpa [#allocation5], 0
    %s9 = scalar_lea.sflag [#allocation5], 1
    %10 = vsyncpa %s9, 0
    loop: start=0, step=1, limit=10
    $region2: #{tpu_custom_call.1} parent=1 // loop_pre_header
      _
    $region3: #{tpu_custom_call.1} parent=1 // loop_header
      %s12 = sphi 0, %s16
      %p13 = scmp.ge.s32.totalorder %s12, 10
      %s19 = sphi 0, %s31
      %s20 = sphi 0, %s27
      %s21 = sphi 0, %s19
      %s22 = sphi 0, %s20
      %s23 = sphi 0, %s21
      %s24 = sphi 0, %s22
      %s34 = sphi 0, %s36
      %s37 = sphi 0, %s34
      %s38 = sphi 0, %s37
      %s54 = sphi 0, %s38
      %s58 = sphi 0, %s58
      %s60 = sphi 0, %s58
      %s61 = sphi 0, %s60
      %s75 = sphi 0, %s61
      %s79 = sphi 0, %s79
      %s81 = sphi 0, %s79
      %s82 = sphi 0, %s81
      %s96 = sphi 0, %s82
      %s104 = sphi 0, %s106
      %s107 = sphi 0, %s104
      %s108 = sphi 0, %s107
      %s124 = sphi 0, %s108
    $region4: #{tpu_custom_call.1} parent=1 // loop_header_branch
      %15 = sbr.rel (%p13) target = $region8
    $region5: #{tpu_custom_call.1} parent=1 // loop_body
      %s17 = ssub.s32 %s12, 1
      %s18 = ssub.s32 %s12, 2
      %s25 = sadd.s32 1, %s20
      %p26 = scmp.ge.s32.totalorder %s25, 4
      %s27 = scalar_select %p26, 0, %s25
      %s28 = sadd.s32 1, %s19
      %s29 = scalar_select %p26, %s28, %s19
      %p30 = scmp.ge.s32.totalorder %s29, 2
      %s31 = scalar_select %p30, 0, %s29
      %s32 = ssub.s32 %s19, %s31
      %p33 = scmp.eq.s32.totalorder %s32, 0
      %s35 = sadd.s32 %s34, 1
      %s36 = scalar_select %p33, %s34, %s35
      %p39 = pneg %p33
      %p40 = scmp.eq.s32.totalorder %s12, 7
      %p41 = por %p39, %p40
      %p42 = scmp.ne.s32.totalorder %s34, %s37
      %p43 = scmp.eq.s32.totalorder %s12, 0
      %p44 = por %p42, %p43
      %p45 = scmp.ne.s32.totalorder %s34, %s37
      %p46 = scmp.eq.s32.totalorder %s17, 7
      %p47 = por %p45, %p46
      %p48 = scmp.ne.s32.totalorder %s37, %s38
      %p49 = scmp.eq.s32.totalorder %s17, 0
      %p50 = por %p48, %p49
      %p51 = scmp.ne.s32.totalorder %s37, %s38
      %p52 = scmp.eq.s32.totalorder %s18, 7
      %p53 = por %p51, %p52
      %p55 = scmp.ne.s32.totalorder %s38, %s54
      %p56 = scmp.eq.s32.totalorder %s18, 0
      %p57 = por %p55, %p56
      %s59 = sadd.s32 %s58, 1
      %p62 = scmp.eq.s32.totalorder %s12, 7
      %p63 = scmp.ne.s32.totalorder %s58, %s60
      %p64 = scmp.eq.s32.totalorder %s12, 0
      %p65 = por %p63, %p64
      %p66 = scmp.ne.s32.totalorder %s58, %s60
      %p67 = scmp.eq.s32.totalorder %s17, 7
      %p68 = por %p66, %p67
      %p69 = scmp.ne.s32.totalorder %s60, %s61
      %p70 = scmp.eq.s32.totalorder %s17, 0
      %p71 = por %p69, %p70
      %p72 = scmp.ne.s32.totalorder %s60, %s61
      %p73 = scmp.eq.s32.totalorder %s18, 7
      %p74 = por %p72, %p73
      %p76 = scmp.ne.s32.totalorder %s61, %s75
      %p77 = scmp.eq.s32.totalorder %s18, 0
      %p78 = por %p76, %p77
      %s80 = sadd.s32 %s79, 1
      %p83 = scmp.eq.s32.totalorder %s12, 7
      %p84 = scmp.ne.s32.totalorder %s79, %s81
      %p85 = scmp.eq.s32.totalorder %s12, 0
      %p86 = por %p84, %p85
      %p87 = scmp.ne.s32.totalorder %s79, %s81
      %p88 = scmp.eq.s32.totalorder %s17, 7
      %p89 = por %p87, %p88
      %p90 = scmp.ne.s32.totalorder %s81, %s82
      %p91 = scmp.eq.s32.totalorder %s17, 0
      %p92 = por %p90, %p91
      %p93 = scmp.ne.s32.totalorder %s81, %s82
      %p94 = scmp.eq.s32.totalorder %s18, 7
      %p95 = por %p93, %p94
      %p97 = scmp.ne.s32.totalorder %s82, %s96
      %p98 = scmp.eq.s32.totalorder %s18, 0
      %p99 = por %p97, %p98
      %s100 = ssub.s32 %s19, %s31
      %s101 = ssub.s32 %s20, %s27
      %s102 = sor.u32 %s100, %s101
      %p103 = scmp.eq.s32.totalorder %s102, 0
      %s105 = sadd.s32 %s104, 1
      %s106 = scalar_select %p103, %s104, %s105
      %p109 = pneg %p103
      %p110 = scmp.eq.s32.totalorder %s12, 7
      %p111 = por %p109, %p110
      %p112 = scmp.ne.s32.totalorder %s104, %s107
      %p113 = scmp.eq.s32.totalorder %s12, 0
      %p114 = por %p112, %p113
      %p115 = scmp.ne.s32.totalorder %s104, %s107
      %p116 = scmp.eq.s32.totalorder %s17, 7
      %p117 = por %p115, %p116
      %p118 = scmp.ne.s32.totalorder %s107, %s108
      %p119 = scmp.eq.s32.totalorder %s17, 0
      %p120 = por %p118, %p119
      %p121 = scmp.ne.s32.totalorder %s107, %s108
      %p122 = scmp.eq.s32.totalorder %s18, 7
      %p123 = por %p121, %p122
      %p125 = scmp.ne.s32.totalorder %s108, %s124
      %p126 = scmp.eq.s32.totalorder %s18, 0
      %p127 = por %p125, %p126
      %p128 = scmp.le.s32.totalorder 1, %s12
      %p129 = scmp.lt.s32.totalorder %s12, 9
      %p130 = pnand %p128, %p129
      %p131 = pneg %p130
      // Predicated region
      $region9: #{tpu_custom_call.1} parent=5 // pred_check
        _
      $region10: #{tpu_custom_call.1} parent=5 // pred_check_branch
        %133 = sbr.rel (%p130) target = $region12
      $region11: #{tpu_custom_call.1} parent=5 // pred_region
        %s134 = ssub.s32 %s12, 1
        // Predicated region
        $region13: #{tpu_custom_call.1} parent=11 // pred_check
          %p135 = pneg %p71
        $region14: #{tpu_custom_call.1} parent=11 // pred_check_branch
          %137 = sbr.rel (%p135) target = $region16
        $region15: #{tpu_custom_call.1} parent=11 // pred_region
          _
        $region16: #{tpu_custom_call.1} parent=11 // pred_fallthru
          _
        // Predicated region
        $region17: #{tpu_custom_call.1} parent=11 // pred_check
          %p138 = pneg %p92
        $region18: #{tpu_custom_call.1} parent=11 // pred_check_branch
          %140 = sbr.rel (%p138) target = $region20
        $region19: #{tpu_custom_call.1} parent=11 // pred_region
          _
        $region20: #{tpu_custom_call.1} parent=11 // pred_fallthru
          _
      $region12: #{tpu_custom_call.1} parent=5 // pred_fallthru
        _
      %p141 = scmp.lt.s32.totalorder %s12, 8
      // Predicated region
      $region21: #{tpu_custom_call.1} parent=5 // pred_check
        %p142 = pneg %p141
      $region22: #{tpu_custom_call.1} parent=5 // pred_check_branch
        %144 = sbr.rel (%p142) target = $region24
      $region23: #{tpu_custom_call.1} parent=5 // pred_region
        // Predicated region
        $region25: #{tpu_custom_call.1} parent=23 // pred_check
          %p145 = pneg %p44
        $region26: #{tpu_custom_call.1} parent=23 // pred_check_branch
          %147 = sbr.rel (%p145) target = $region28
        $region27: #{tpu_custom_call.1} parent=23 // pred_region
          %p148 = scmp.lt.s32.totalorder %s19, 1
          %s149 = scalar_select %p148, %s19, 1
          %s150 = smul.addr %s149, 74
          %s151 = smul.addr %s150, 4
          %s152 = scalar_lea.vmem %s0, %s151
        $region28: #{tpu_custom_call.1} parent=23 // pred_fallthru
          _
      $region24: #{tpu_custom_call.1} parent=5 // pred_fallthru
        _
      %p153 = scmp.le.s32.totalorder 1, %s12
      %p154 = scmp.lt.s32.totalorder %s12, 9
      %p155 = pnand %p153, %p154
      %p156 = pneg %p155
      // Predicated region
      $region29: #{tpu_custom_call.1} parent=5 // pred_check
        _
      $region30: #{tpu_custom_call.1} parent=5 // pred_check_branch
        %158 = sbr.rel (%p155) target = $region32
      $region31: #{tpu_custom_call.1} parent=5 // pred_region
        %s159 = ssub.s32 %s12, 1
        %p160 = scmp.lt.s32.totalorder %s21, 1
        %s161 = scalar_select %p160, %s21, 1
        %s162 = smul.addr %s161, 74
        %s163 = smul.addr %s162, 4
        %s164 = scalar_lea.vmem %s0, %s163
        %p165 = pneg %p50
        %p166 = pneg %p47
        %p167 = pneg %p71
        %p168 = pneg %p68
        %p169 = pneg %p92
        %p170 = pneg %p89
        %p171 = pneg %p120
        %p172 = pneg %p117
        %s173 = sand.u32 %s107, 1
        %s174 = scalar_lea.sflag [#allocation5], %s173
        %s175 = sand.u32 %s107, 1
        %s176 = smul.addr %s175, 64
        %s177 = scalar_lea.vmem [#allocation4], %s176
        %p178 = scmp.lt.s32.totalorder %s21, 1
        %s179 = scalar_select %p178, %s21, 1
        %s180 = smul.addr %s179, 74
        %s181 = smul.addr %s180, 4
        %s182 = scalar_lea.vmem %s0, %s181
        %s183 = smul.u32 16, %s22
        %s185 = smul.u32 %s22, 128
        %s186 = sshra.s32 %s185, 3
        %s187 = sand.u32 %s185, 7
        %s188 = smul.addr %s186, 4
        %s189 = scalar_lea.vmem %s182, %s188
        %v190 = vld [vmem:[%s189] sm:$0xf]
        %v191 = vld [vmem:[%s189 + $0x4] sm:$0xf]
        %v192 = vld [vmem:[%s189 + $0x8] sm:$0xf]
        %v193 = vld [vmem:[%s189 + $0xc] sm:$0xf]
        %v194 = vld [vmem:[%s189 + $0x10] sm:$0xf]
        %v195 = vld [vmem:[%s189 + $0x14] sm:$0xf]
        %v196 = vld [vmem:[%s189 + $0x18] sm:$0xf]
        %v197 = vld [vmem:[%s189 + $0x1c] sm:$0xf]
        %v198 = vld [vmem:[%s189 + $0x20] sm:$0xf]
        %v199 = vld [vmem:[%s189 + $0x24] sm:$0xf]
        %v200 = vld [vmem:[%s189 + $0x28] sm:$0xf]
        %v201 = vld [vmem:[%s189 + $0x2c] sm:$0xf]
        %v202 = vld [vmem:[%s189 + $0x30] sm:$0xf]
        %v203 = vld [vmem:[%s189 + $0x34] sm:$0xf]
        %v204 = vld [vmem:[%s189 + $0x38] sm:$0xf]
        %v205 = vld [vmem:[%s189 + $0x3c] sm:$0xf]
        %v206 = vld [vmem:[%s189 + $0x40] sm:$0xf]
        %v207 = vld [vmem:[%s189 + $0x44] sm:$0xf]
        %v208 = vld [vmem:[%s189 + $0x48] sm:$0xf]
        %v209 = vld [vmem:[%s189 + $0x4c] sm:$0xf]
        %v210 = vld [vmem:[%s189 + $0x50] sm:$0xf]
        %v211 = vld [vmem:[%s189 + $0x54] sm:$0xf]
        %v212 = vld [vmem:[%s189 + $0x58] sm:$0xf]
        %v213 = vld [vmem:[%s189 + $0x5c] sm:$0xf]
        %v214 = vld [vmem:[%s189 + $0x60] sm:$0xf]
        %v215 = vld [vmem:[%s189 + $0x64] sm:$0xf]
        %v242 = vunpack.c.l.b16 %v190
        %v243 = vunpack.c.l.b16 %v191
        %v244 = vunpack.c.l.b16 %v192
        %v245 = vunpack.c.l.b16 %v193
        %v246 = vunpack.c.l.b16 %v194
        %v247 = vunpack.c.l.b16 %v195
        %v248 = vunpack.c.l.b16 %v196
        %v249 = vunpack.c.l.b16 %v197
        %v250 = vunpack.c.l.b16 %v198
        %v251 = vunpack.c.l.b16 %v199
        %v252 = vunpack.c.l.b16 %v200
        %v253 = vunpack.c.l.b16 %v201
        %v254 = vunpack.c.l.b16 %v202
        %v255 = vunpack.c.l.b16 %v203
        %v256 = vunpack.c.l.b16 %v204
        %v257 = vunpack.c.l.b16 %v205
        %v258 = vunpack.c.l.b16 %v206
        %v259 = vunpack.c.l.b16 %v207
        %v260 = vunpack.c.l.b16 %v208
        %v261 = vunpack.c.l.b16 %v209
        %v262 = vunpack.c.l.b16 %v210
        %v263 = vunpack.c.l.b16 %v211
        %v264 = vunpack.c.l.b16 %v212
        %v265 = vunpack.c.l.b16 %v213
        %v266 = vunpack.c.l.b16 %v214
        %v267 = vunpack.c.l.b16 %v215
        %v268 = vpack.c.b16 %v243, %v242
        %v269 = vpack.c.b16 %v245, %v244
        %v270 = vpack.c.b16 %v247, %v246
        %v271 = vpack.c.b16 %v249, %v248
        %v272 = vpack.c.b16 %v251, %v250
        %v273 = vpack.c.b16 %v253, %v252
        %v274 = vpack.c.b16 %v255, %v254
        %v275 = vpack.c.b16 %v257, %v256
        %v276 = vpack.c.b16 %v259, %v258
        %v277 = vpack.c.b16 %v261, %v260
        %v278 = vpack.c.b16 %v263, %v262
        %v279 = vpack.c.b16 %v265, %v264
        %v280 = vpack.c.b16 %v267, %v266
        %vm294 = vcmask 31744
        %295 = vst.msk [vmem:[#allocation3] sm:$0xff] %vm294, %v268
        %296 = vst.msk [vmem:[#allocation3 + $0x8] sm:$0xff] %vm294, %v269
        %297 = vst.msk [vmem:[#allocation3 + $0x10] sm:$0xff] %vm294, %v270
        %298 = vst.msk [vmem:[#allocation3 + $0x18] sm:$0xff] %vm294, %v271
        %299 = vst.msk [vmem:[#allocation3 + $0x20] sm:$0xff] %vm294, %v272
        %300 = vst.msk [vmem:[#allocation3 + $0x28] sm:$0xff] %vm294, %v273
        %301 = vst.msk [vmem:[#allocation3 + $0x30] sm:$0xff] %vm294, %v274
        %302 = vst.msk [vmem:[#allocation3 + $0x38] sm:$0xff] %vm294, %v275
        %303 = vst.msk [vmem:[#allocation3 + $0x40] sm:$0xff] %vm294, %v276
        %304 = vst.msk [vmem:[#allocation3 + $0x48] sm:$0xff] %vm294, %v277
        %305 = vst.msk [vmem:[#allocation3 + $0x50] sm:$0xff] %vm294, %v278
        %306 = vst.msk [vmem:[#allocation3 + $0x58] sm:$0xff] %vm294, %v279
        %307 = vst.msk [vmem:[#allocation3 + $0x60] sm:$0xff] %vm294, %v280
        %v308 = vld [vmem:[#allocation3] sm:$0xff]
        %v309 = vld [vmem:[#allocation3 + $0x8] sm:$0xff]
        %v310 = vld [vmem:[#allocation3 + $0x10] sm:$0xff]
        %v311 = vld [vmem:[#allocation3 + $0x18] sm:$0xff]
        %v312 = vld [vmem:[#allocation3 + $0x20] sm:$0xff]
        %v313 = vld [vmem:[#allocation3 + $0x28] sm:$0xff]
        %v314 = vld [vmem:[#allocation3 + $0x30] sm:$0xff]
        %v315 = vld [vmem:[#allocation3 + $0x38] sm:$0xff]
        %v316 = vld [vmem:[%s1] sm:$0x3]
        %v318 = vsel %vm294, %v308, 0
        %v321 = vsel %vm294, %v309, 0
        %v324 = vsel %vm294, %v310, 0
        %v327 = vsel %vm294, %v311, 0
        %v330 = vsel %vm294, %v312, 0
        %v333 = vsel %vm294, %v313, 0
        %v336 = vsel %vm294, %v314, 0
        %v339 = vsel %vm294, %v315, 0
        %vm341 = vcmask 1041408
        %v343 = vsel %vm341, %v316, 0
        %345 = vmatprep.subr.bf16.mxu0 0
        %346 = vmatpush1.bf16.msra.mxu0 %v343
        %347 = vmatprep.subr.bf16.mxu0 0
        %348 = vmatpush1.bf16.msra.mxu0 0
        %349 = vmatprep.subr.bf16.mxu0 0
        %350 = vmatpush1.bf16.msra.mxu0 0
        %351 = vmatprep.subr.bf16.mxu0 0
        %352 = vmatpush1.bf16.msra.mxu0 0
        %353 = vmatprep.subr.bf16.mxu0 0
        %354 = vmatpush1.bf16.msra.mxu0 0
        %355 = vmatprep.subr.bf16.mxu0 0
        %356 = vmatpush1.bf16.msra.mxu0 0
        %357 = vmatprep.subr.bf16.mxu0 0
        %358 = vmatpush1.bf16.msra.mxu0 0
        %359 = vmatprep.subr.bf16.mxu0 0
        %360 = vmatpush1.bf16.msra.mxu0 0
        %361 = vmatprep.subr.bf16.mxu0 0
        %362 = vmatpush1.bf16.msra.mxu0 0
        %363 = vmatprep.subr.bf16.mxu0 0
        %364 = vmatpush1.bf16.msra.mxu0 0
        %365 = vmatprep.subr.bf16.mxu0 0
        %366 = vmatpush1.bf16.msra.mxu0 0
        %367 = vmatprep.subr.bf16.mxu0 0
        %368 = vmatpush1.bf16.msra.mxu0 0
        %369 = vmatprep.subr.bf16.mxu0 0
        %370 = vmatpush1.bf16.msra.mxu0 0
        %371 = vmatprep.subr.bf16.mxu0 0
        %372 = vmatpush1.bf16.msra.mxu0 0
        %373 = vmatprep.subr.bf16.mxu0 0
        %374 = vmatpush1.bf16.msra.mxu0 0
        %375 = vmatprep.subr.bf16.mxu0 0
        %376 = vmatpush1.bf16.msra.mxu0 0
        %377 = vmatprep.mubr.bf16.mxu0 0
        %378 = vmatmul.mubr.bf16.gmra.mrb[0].mxu0 %v318
        %v379 = vpop.f32.mrb[0].mxu0
        %v380 = vadd.f32 0.0, %v379
        %v381 = vpop.f32.mrb[0].mxu0
        %v382 = vpop.f32.mrb[0].mxu0
        %v383 = vadd.f32 0.0, %v382
        %v384 = vpop.f32.mrb[0].mxu0
        %385 = vmatprep.mubr.bf16.mxu0 0
        %386 = vmatmul.mubr.bf16.gmra.mrb[0].mxu0 %v321
        %v387 = vpop.f32.mrb[0].mxu0
        %v388 = vadd.f32 0.0, %v387
        %v389 = vpop.f32.mrb[0].mxu0
        %v390 = vpop.f32.mrb[0].mxu0
        %v391 = vadd.f32 0.0, %v390
        %v392 = vpop.f32.mrb[0].mxu0
        %393 = vmatprep.mubr.bf16.mxu0 0
        %394 = vmatmul.mubr.bf16.gmra.mrb[0].mxu0 %v324
        %v395 = vpop.f32.mrb[0].mxu0
        %v396 = vadd.f32 0.0, %v395
        %v397 = vpop.f32.mrb[0].mxu0
        %v398 = vpop.f32.mrb[0].mxu0
        %v399 = vadd.f32 0.0, %v398
        %v400 = vpop.f32.mrb[0].mxu0
        %401 = vmatprep.mubr.bf16.mxu0 0
        %402 = vmatmul.mubr.bf16.gmra.mrb[0].mxu0 %v327
        %v403 = vpop.f32.mrb[0].mxu0
        %v404 = vadd.f32 0.0, %v403
        %v405 = vpop.f32.mrb[0].mxu0
        %v406 = vpop.f32.mrb[0].mxu0
        %v407 = vadd.f32 0.0, %v406
        %v408 = vpop.f32.mrb[0].mxu0
        %409 = vmatprep.mubr.bf16.mxu0 0
        %410 = vmatmul.mubr.bf16.gmra.mrb[0].mxu0 %v330
        %v411 = vpop.f32.mrb[0].mxu0
        %v412 = vadd.f32 0.0, %v411
        %v413 = vpop.f32.mrb[0].mxu0
        %v414 = vpop.f32.mrb[0].mxu0
        %v415 = vadd.f32 0.0, %v414
        %v416 = vpop.f32.mrb[0].mxu0
        %417 = vmatprep.mubr.bf16.mxu0 0
        %418 = vmatmul.mubr.bf16.gmra.mrb[0].mxu0 %v333
        %v419 = vpop.f32.mrb[0].mxu0
        %v420 = vadd.f32 0.0, %v419
        %v421 = vpop.f32.mrb[0].mxu0
        %v422 = vpop.f32.mrb[0].mxu0
        %v423 = vadd.f32 0.0, %v422
        %v424 = vpop.f32.mrb[0].mxu0
        %425 = vmatprep.mubr.bf16.mxu0 0
        %426 = vmatmul.mubr.bf16.gmra.mrb[0].mxu0 %v336
        %v427 = vpop.f32.mrb[0].mxu0
        %v428 = vadd.f32 0.0, %v427
        %v429 = vpop.f32.mrb[0].mxu0
        %v430 = vpop.f32.mrb[0].mxu0
        %v431 = vadd.f32 0.0, %v430
        %v432 = vpop.f32.mrb[0].mxu0
        %433 = vmatprep.mubr.bf16.mxu0 0
        %434 = vmatmul.mubr.bf16.gmra.mrb[0].mxu0 %v339
        %v435 = vpop.f32.mrb[0].mxu0
        %v436 = vadd.f32 0.0, %v435
        %v437 = vpop.f32.mrb[0].mxu0
        %v438 = vpop.f32.mrb[0].mxu0
        %v439 = vadd.f32 0.0, %v438
        %v440 = vpop.f32.mrb[0].mxu0
        %441 = vdwg.mxu0
        %442 = vst [vmem:[#allocation2] sm:$0xff] %v380
        %443 = vst [vmem:[#allocation2 + $0x8] sm:$0xff] %v383
        %444 = vst [vmem:[#allocation2 + $0x10] sm:$0xff] %v388
        %445 = vst [vmem:[#allocation2 + $0x18] sm:$0xff] %v391
        %446 = vst [vmem:[#allocation2 + $0x20] sm:$0xff] %v396
        %447 = vst [vmem:[#allocation2 + $0x28] sm:$0xff] %v399
        %448 = vst [vmem:[#allocation2 + $0x30] sm:$0xff] %v404
        %449 = vst [vmem:[#allocation2 + $0x38] sm:$0xff] %v407
        %450 = vst [vmem:[#allocation2 + $0x40] sm:$0xff] %v412
        %451 = vst [vmem:[#allocation2 + $0x48] sm:$0xff] %v415
        %452 = vst [vmem:[#allocation2 + $0x50] sm:$0xff] %v420
        %453 = vst [vmem:[#allocation2 + $0x58] sm:$0xff] %v423
        %454 = vst [vmem:[#allocation2 + $0x60] sm:$0xff] %v428
        %455 = vst [vmem:[#allocation2 + $0x68] sm:$0xff] %v431
        %456 = vst [vmem:[#allocation2 + $0x70] sm:$0xff] %v436
        %457 = vst [vmem:[#allocation2 + $0x78] sm:$0xff] %v439
        %v458 = vld [vmem:[#allocation3] sm:$0xff]
        %v459 = vld [vmem:[#allocation3 + $0x8] sm:$0xff]
        %v460 = vld [vmem:[#allocation3 + $0x10] sm:$0xff]
        %v461 = vld [vmem:[#allocation3 + $0x18] sm:$0xff]
        %v462 = vld [vmem:[#allocation3 + $0x20] sm:$0xff]
        %v463 = vld [vmem:[#allocation3 + $0x28] sm:$0xff]
        %v464 = vld [vmem:[#allocation3 + $0x30] sm:$0xff]
        %v465 = vld [vmem:[#allocation3 + $0x38] sm:$0xff]
        %v466 = vld [vmem:[#allocation3 + $0x40] sm:$0x1]
        %s467 = scalar_lea.vmem %s1, 2
        %v468 = vld [vmem:[%s467] sm:$0x3]
        %vm469 = vsmask.f32 7424
        %v471 = vshrl.u32 %v458, 16
        %v473 = vshll.u32 %v458, 16
        %v475 = vrot.slane %v473, 1
        %v476 = vor.u32 %v471, %v475
        %v478 = vshll.u32 %v459, 16
        %v480 = vrot.slane %v478, 1
        %v481 = vsel %vm469, %v476, %v480
        %v482 = vshrl.u32 %v459, 16
        %v484 = vor.u32 %v482, %v480
        %v486 = vshll.u32 %v460, 16
        %v488 = vrot.slane %v486, 1
        %v489 = vsel %vm469, %v484, %v488
        %v490 = vshrl.u32 %v460, 16
        %v492 = vor.u32 %v490, %v488
        %v494 = vshll.u32 %v461, 16
        %v496 = vrot.slane %v494, 1
        %v497 = vsel %vm469, %v492, %v496
        %v498 = vshrl.u32 %v461, 16
        %v500 = vor.u32 %v498, %v496
        %v502 = vshll.u32 %v462, 16
        %v504 = vrot.slane %v502, 1
        %v505 = vsel %vm469, %v500, %v504
        %v506 = vshrl.u32 %v462, 16
        %v508 = vor.u32 %v506, %v504
        %v510 = vshll.u32 %v463, 16
        %v512 = vrot.slane %v510, 1
        %v513 = vsel %vm469, %v508, %v512
        %v514 = vshrl.u32 %v463, 16
        %v516 = vor.u32 %v514, %v512
        %v518 = vshll.u32 %v464, 16
        %v520 = vrot.slane %v518, 1
        %v521 = vsel %vm469, %v516, %v520
        %v522 = vshrl.u32 %v464, 16
        %v524 = vor.u32 %v522, %v520
        %v526 = vshll.u32 %v465, 16
        %v528 = vrot.slane %v526, 1
        %v529 = vsel %vm469, %v524, %v528
        %v530 = vshrl.u32 %v465, 16
        %v532 = vor.u32 %v530, %v528
        %v534 = vshll.u32 %v466, 16
        %v536 = vrot.slane %v534, 1
        %v537 = vsel %vm469, %v532, %v536
        %v539 = vsel %vm294, %v481, 0
        %v542 = vsel %vm294, %v489, 0
        %v545 = vsel %vm294, %v497, 0
        %v548 = vsel %vm294, %v505, 0
        %v551 = vsel %vm294, %v513, 0
        %v554 = vsel %vm294, %v521, 0
        %v557 = vsel %vm294, %v529, 0
        %v560 = vsel %vm294, %v537, 0
        %v563 = vsel %vm341, %v468, 0
        %565 = vmatprep.subr.bf16.mxu0 0
        %566 = vmatpush1.bf16.msra.mxu0 %v563
        %567 = vmatprep.subr.bf16.mxu0 0
        %568 = vmatpush1.bf16.msra.mxu0 0
        %569 = vmatprep.subr.bf16.mxu0 0
        %570 = vmatpush1.bf16.msra.mxu0 0
        %571 = vmatprep.subr.bf16.mxu0 0
        %572 = vmatpush1.bf16.msra.mxu0 0
        %573 = vmatprep.subr.bf16.mxu0 0
        %574 = vmatpush1.bf16.msra.mxu0 0
        %575 = vmatprep.subr.bf16.mxu0 0
        %576 = vmatpush1.bf16.msra.mxu0 0
        %577 = vmatprep.subr.bf16.mxu0 0
        %578 = vmatpush1.bf16.msra.mxu0 0
        %579 = vmatprep.subr.bf16.mxu0 0
        %580 = vmatpush1.bf16.msra.mxu0 0
        %581 = vmatprep.subr.bf16.mxu0 0
        %582 = vmatpush1.bf16.msra.mxu0 0
        %583 = vmatprep.subr.bf16.mxu0 0
        %584 = vmatpush1.bf16.msra.mxu0 0
        %585 = vmatprep.subr.bf16.mxu0 0
        %586 = vmatpush1.bf16.msra.mxu0 0
        %587 = vmatprep.subr.bf16.mxu0 0
        %588 = vmatpush1.bf16.msra.mxu0 0
        %589 = vmatprep.subr.bf16.mxu0 0
        %590 = vmatpush1.bf16.msra.mxu0 0
        %591 = vmatprep.subr.bf16.mxu0 0
        %592 = vmatpush1.bf16.msra.mxu0 0
        %593 = vmatprep.subr.bf16.mxu0 0
        %594 = vmatpush1.bf16.msra.mxu0 0
        %595 = vmatprep.subr.bf16.mxu0 0
        %596 = vmatpush1.bf16.msra.mxu0 0
        %597 = vmatprep.mubr.bf16.mxu0 0
        %598 = vmatmul.mubr.bf16.gmra.mrb[0].mxu0 %v539
        %v599 = vpop.f32.mrb[0].mxu0
        %v600 = vadd.f32 0.0, %v599
        %v601 = vpop.f32.mrb[0].mxu0
        %v602 = vpop.f32.mrb[0].mxu0
        %v603 = vadd.f32 0.0, %v602
        %v604 = vpop.f32.mrb[0].mxu0
        %605 = vmatprep.mubr.bf16.mxu0 0
        %606 = vmatmul.mubr.bf16.gmra.mrb[0].mxu0 %v542
        %v607 = vpop.f32.mrb[0].mxu0
        %v608 = vadd.f32 0.0, %v607
        %v609 = vpop.f32.mrb[0].mxu0
        %v610 = vpop.f32.mrb[0].mxu0
        %v611 = vadd.f32 0.0, %v610
        %v612 = vpop.f32.mrb[0].mxu0
        %613 = vmatprep.mubr.bf16.mxu0 0
        %614 = vmatmul.mubr.bf16.gmra.mrb[0].mxu0 %v545
        %v615 = vpop.f32.mrb[0].mxu0
        %v616 = vadd.f32 0.0, %v615
        %v617 = vpop.f32.mrb[0].mxu0
        %v618 = vpop.f32.mrb[0].mxu0
        %v619 = vadd.f32 0.0, %v618
        %v620 = vpop.f32.mrb[0].mxu0
        %621 = vmatprep.mubr.bf16.mxu0 0
        %622 = vmatmul.mubr.bf16.gmra.mrb[0].mxu0 %v548
        %v623 = vpop.f32.mrb[0].mxu0
        %v624 = vadd.f32 0.0, %v623
        %v625 = vpop.f32.mrb[0].mxu0
        %v626 = vpop.f32.mrb[0].mxu0
        %v627 = vadd.f32 0.0, %v626
        %v628 = vpop.f32.mrb[0].mxu0
        %629 = vmatprep.mubr.bf16.mxu0 0
        %630 = vmatmul.mubr.bf16.gmra.mrb[0].mxu0 %v551
        %v631 = vpop.f32.mrb[0].mxu0
        %v632 = vadd.f32 0.0, %v631
        %v633 = vpop.f32.mrb[0].mxu0
        %v634 = vpop.f32.mrb[0].mxu0
        %v635 = vadd.f32 0.0, %v634
        %v636 = vpop.f32.mrb[0].mxu0
        %637 = vmatprep.mubr.bf16.mxu0 0
        %638 = vmatmul.mubr.bf16.gmra.mrb[0].mxu0 %v554
        %v639 = vpop.f32.mrb[0].mxu0
        %v640 = vadd.f32 0.0, %v639
        %v641 = vpop.f32.mrb[0].mxu0
        %v642 = vpop.f32.mrb[0].mxu0
        %v643 = vadd.f32 0.0, %v642
        %v644 = vpop.f32.mrb[0].mxu0
        %645 = vmatprep.mubr.bf16.mxu0 0
        %646 = vmatmul.mubr.bf16.gmra.mrb[0].mxu0 %v557
        %v647 = vpop.f32.mrb[0].mxu0
        %v648 = vadd.f32 0.0, %v647
        %v649 = vpop.f32.mrb[0].mxu0
        %v650 = vpop.f32.mrb[0].mxu0
        %v651 = vadd.f32 0.0, %v650
        %v652 = vpop.f32.mrb[0].mxu0
        %653 = vmatprep.mubr.bf16.mxu0 0
        %654 = vmatmul.mubr.bf16.gmra.mrb[0].mxu0 %v560
        %v655 = vpop.f32.mrb[0].mxu0
        %v656 = vadd.f32 0.0, %v655
        %v657 = vpop.f32.mrb[0].mxu0
        %v658 = vpop.f32.mrb[0].mxu0
        %v659 = vadd.f32 0.0, %v658
        %v660 = vpop.f32.mrb[0].mxu0
        %661 = vdwg.mxu0
        %v662 = vld [vmem:[#allocation2] sm:$0xff]
        %v663 = vld [vmem:[#allocation2 + $0x8] sm:$0xff]
        %v664 = vld [vmem:[#allocation2 + $0x10] sm:$0xff]
        %v665 = vld [vmem:[#allocation2 + $0x18] sm:$0xff]
        %v666 = vld [vmem:[#allocation2 + $0x20] sm:$0xff]
        %v667 = vld [vmem:[#allocation2 + $0x28] sm:$0xff]
        %v668 = vld [vmem:[#allocation2 + $0x30] sm:$0xff]
        %v669 = vld [vmem:[#allocation2 + $0x38] sm:$0xff]
        %v670 = vld [vmem:[#allocation2 + $0x40] sm:$0xff]
        %v671 = vld [vmem:[#allocation2 + $0x48] sm:$0xff]
        %v672 = vld [vmem:[#allocation2 + $0x50] sm:$0xff]
        %v673 = vld [vmem:[#allocation2 + $0x58] sm:$0xff]
        %v674 = vld [vmem:[#allocation2 + $0x60] sm:$0xff]
        %v675 = vld [vmem:[#allocation2 + $0x68] sm:$0xff]
        %v676 = vld [vmem:[#allocation2 + $0x70] sm:$0xff]
        %v677 = vld [vmem:[#allocation2 + $0x78] sm:$0xff]
        %v678 = vadd.f32 %v662, %v600
        %v679 = vadd.f32 %v663, %v603
        %v680 = vadd.f32 %v664, %v608
        %v681 = vadd.f32 %v665, %v611
        %v682 = vadd.f32 %v666, %v616
        %v683 = vadd.f32 %v667, %v619
        %v684 = vadd.f32 %v668, %v624
        %v685 = vadd.f32 %v669, %v627
        %v686 = vadd.f32 %v670, %v632
        %v687 = vadd.f32 %v671, %v635
        %v688 = vadd.f32 %v672, %v640
        %v689 = vadd.f32 %v673, %v643
        %v690 = vadd.f32 %v674, %v648
        %v691 = vadd.f32 %v675, %v651
        %v692 = vadd.f32 %v676, %v656
        %v693 = vadd.f32 %v677, %v659
        %694 = vst [vmem:[#allocation2] sm:$0xff] %v678
        %695 = vst [vmem:[#allocation2 + $0x8] sm:$0xff] %v679
        %696 = vst [vmem:[#allocation2 + $0x10] sm:$0xff] %v680
        %697 = vst [vmem:[#allocation2 + $0x18] sm:$0xff] %v681
        %698 = vst [vmem:[#allocation2 + $0x20] sm:$0xff] %v682
        %699 = vst [vmem:[#allocation2 + $0x28] sm:$0xff] %v683
        %700 = vst [vmem:[#allocation2 + $0x30] sm:$0xff] %v684
        %701 = vst [vmem:[#allocation2 + $0x38] sm:$0xff] %v685
        %702 = vst [vmem:[#allocation2 + $0x40] sm:$0xff] %v686
        %703 = vst [vmem:[#allocation2 + $0x48] sm:$0xff] %v687
        %704 = vst [vmem:[#allocation2 + $0x50] sm:$0xff] %v688
        %705 = vst [vmem:[#allocation2 + $0x58] sm:$0xff] %v689
        %706 = vst [vmem:[#allocation2 + $0x60] sm:$0xff] %v690
        %707 = vst [vmem:[#allocation2 + $0x68] sm:$0xff] %v691
        %708 = vst [vmem:[#allocation2 + $0x70] sm:$0xff] %v692
        %709 = vst [vmem:[#allocation2 + $0x78] sm:$0xff] %v693
        %v710 = vld [vmem:[#allocation3] sm:$0xfe]
        %v711 = vld [vmem:[#allocation3 + $0x8] sm:$0xff]
        %v712 = vld [vmem:[#allocation3 + $0x10] sm:$0xff]
        %v713 = vld [vmem:[#allocation3 + $0x18] sm:$0xff]
        %v714 = vld [vmem:[#allocation3 + $0x20] sm:$0xff]
        %v715 = vld [vmem:[#allocation3 + $0x28] sm:$0xff]
        %v716 = vld [vmem:[#allocation3 + $0x30] sm:$0xff]
        %v717 = vld [vmem:[#allocation3 + $0x38] sm:$0xff]
        %v718 = vld [vmem:[#allocation3 + $0x40] sm:$0x1]
        %s719 = scalar_lea.vmem %s1, 4
        %v720 = vld [vmem:[%s719] sm:$0x3]
        %vm730 = vcmask 1046528
        %v731 = vrot.slane %v710, 1
        %v732 = vrot.slane %v711, 1
        %v733 = vsel %vm730, %v731, %v732
        %v734 = vrot.slane %v712, 1
        %v735 = vsel %vm730, %v732, %v734
        %v736 = vrot.slane %v713, 1
        %v737 = vsel %vm730, %v734, %v736
        %v738 = vrot.slane %v714, 1
        %v739 = vsel %vm730, %v736, %v738
        %v740 = vrot.slane %v715, 1
        %v741 = vsel %vm730, %v738, %v740
        %v742 = vrot.slane %v716, 1
        %v743 = vsel %vm730, %v740, %v742
        %v744 = vrot.slane %v717, 1
        %v745 = vsel %vm730, %v742, %v744
        %v746 = vrot.slane %v718, 1
        %v747 = vsel %vm730, %v744, %v746
        %v749 = vsel %vm294, %v733, 0
        %v752 = vsel %vm294, %v735, 0
        %v755 = vsel %vm294, %v737, 0
        %v758 = vsel %vm294, %v739, 0
        %v761 = vsel %vm294, %v741, 0
        %v764 = vsel %vm294, %v743, 0
        %v767 = vsel %vm294, %v745, 0
        %v770 = vsel %vm294, %v747, 0
        %v773 = vsel %vm341, %v720, 0
        %775 = vmatprep.subr.bf16.mxu0 0
        %776 = vmatpush1.bf16.msra.mxu0 %v773
        %777 = vmatprep.subr.bf16.mxu0 0
        %778 = vmatpush1.bf16.msra.mxu0 0
        %779 = vmatprep.subr.bf16.mxu0 0
        %780 = vmatpush1.bf16.msra.mxu0 0
        %781 = vmatprep.subr.bf16.mxu0 0
        %782 = vmatpush1.bf16.msra.mxu0 0
        %783 = vmatprep.subr.bf16.mxu0 0
        %784 = vmatpush1.bf16.msra.mxu0 0
        %785 = vmatprep.subr.bf16.mxu0 0
        %786 = vmatpush1.bf16.msra.mxu0 0
        %787 = vmatprep.subr.bf16.mxu0 0
        %788 = vmatpush1.bf16.msra.mxu0 0
        %789 = vmatprep.subr.bf16.mxu0 0
        %790 = vmatpush1.bf16.msra.mxu0 0
        %791 = vmatprep.subr.bf16.mxu0 0
        %792 = vmatpush1.bf16.msra.mxu0 0
        %793 = vmatprep.subr.bf16.mxu0 0
        %794 = vmatpush1.bf16.msra.mxu0 0
        %795 = vmatprep.subr.bf16.mxu0 0
        %796 = vmatpush1.bf16.msra.mxu0 0
        %797 = vmatprep.subr.bf16.mxu0 0
        %798 = vmatpush1.bf16.msra.mxu0 0
        %799 = vmatprep.subr.bf16.mxu0 0
        %800 = vmatpush1.bf16.msra.mxu0 0
        %801 = vmatprep.subr.bf16.mxu0 0
        %802 = vmatpush1.bf16.msra.mxu0 0
        %803 = vmatprep.subr.bf16.mxu0 0
        %804 = vmatpush1.bf16.msra.mxu0 0
        %805 = vmatprep.subr.bf16.mxu0 0
        %806 = vmatpush1.bf16.msra.mxu0 0
        %807 = vmatprep.mubr.bf16.mxu0 0
        %808 = vmatmul.mubr.bf16.gmra.mrb[0].mxu0 %v749
        %v809 = vpop.f32.mrb[0].mxu0
        %v810 = vadd.f32 0.0, %v809
        %v811 = vpop.f32.mrb[0].mxu0
        %v812 = vpop.f32.mrb[0].mxu0
        %v813 = vadd.f32 0.0, %v812
        %v814 = vpop.f32.mrb[0].mxu0
        %815 = vmatprep.mubr.bf16.mxu0 0
        %816 = vmatmul.mubr.bf16.gmra.mrb[0].mxu0 %v752
        %v817 = vpop.f32.mrb[0].mxu0
        %v818 = vadd.f32 0.0, %v817
        %v819 = vpop.f32.mrb[0].mxu0
        %v820 = vpop.f32.mrb[0].mxu0
        %v821 = vadd.f32 0.0, %v820
        %v822 = vpop.f32.mrb[0].mxu0
        %823 = vmatprep.mubr.bf16.mxu0 0
        %824 = vmatmul.mubr.bf16.gmra.mrb[0].mxu0 %v755
        %v825 = vpop.f32.mrb[0].mxu0
        %v826 = vadd.f32 0.0, %v825
        %v827 = vpop.f32.mrb[0].mxu0
        %v828 = vpop.f32.mrb[0].mxu0
        %v829 = vadd.f32 0.0, %v828
        %v830 = vpop.f32.mrb[0].mxu0
        %831 = vmatprep.mubr.bf16.mxu0 0
        %832 = vmatmul.mubr.bf16.gmra.mrb[0].mxu0 %v758
        %v833 = vpop.f32.mrb[0].mxu0
        %v834 = vadd.f32 0.0, %v833
        %v835 = vpop.f32.mrb[0].mxu0
        %v836 = vpop.f32.mrb[0].mxu0
        %v837 = vadd.f32 0.0, %v836
        %v838 = vpop.f32.mrb[0].mxu0
        %839 = vmatprep.mubr.bf16.mxu0 0
        %840 = vmatmul.mubr.bf16.gmra.mrb[0].mxu0 %v761
        %v841 = vpop.f32.mrb[0].mxu0
        %v842 = vadd.f32 0.0, %v841
        %v843 = vpop.f32.mrb[0].mxu0
        %v844 = vpop.f32.mrb[0].mxu0
        %v845 = vadd.f32 0.0, %v844
        %v846 = vpop.f32.mrb[0].mxu0
        %847 = vmatprep.mubr.bf16.mxu0 0
        %848 = vmatmul.mubr.bf16.gmra.mrb[0].mxu0 %v764
        %v849 = vpop.f32.mrb[0].mxu0
        %v850 = vadd.f32 0.0, %v849
        %v851 = vpop.f32.mrb[0].mxu0
        %v852 = vpop.f32.mrb[0].mxu0
        %v853 = vadd.f32 0.0, %v852
        %v854 = vpop.f32.mrb[0].mxu0
        %855 = vmatprep.mubr.bf16.mxu0 0
        %856 = vmatmul.mubr.bf16.gmra.mrb[0].mxu0 %v767
        %v857 = vpop.f32.mrb[0].mxu0
        %v858 = vadd.f32 0.0, %v857
        %v859 = vpop.f32.mrb[0].mxu0
        %v860 = vpop.f32.mrb[0].mxu0
        %v861 = vadd.f32 0.0, %v860
        %v862 = vpop.f32.mrb[0].mxu0
        %863 = vmatprep.mubr.bf16.mxu0 0
        %864 = vmatmul.mubr.bf16.gmra.mrb[0].mxu0 %v770
        %v865 = vpop.f32.mrb[0].mxu0
        %v866 = vadd.f32 0.0, %v865
        %v867 = vpop.f32.mrb[0].mxu0
        %v868 = vpop.f32.mrb[0].mxu0
        %v869 = vadd.f32 0.0, %v868
        %v870 = vpop.f32.mrb[0].mxu0
        %871 = vdwg.mxu0
        %v872 = vld [vmem:[#allocation2] sm:$0xff]
        %v873 = vld [vmem:[#allocation2 + $0x8] sm:$0xff]
        %v874 = vld [vmem:[#allocation2 + $0x10] sm:$0xff]
        %v875 = vld [vmem:[#allocation2 + $0x18] sm:$0xff]
        %v876 = vld [vmem:[#allocation2 + $0x20] sm:$0xff]
        %v877 = vld [vmem:[#allocation2 + $0x28] sm:$0xff]
        %v878 = vld [vmem:[#allocation2 + $0x30] sm:$0xff]
        %v879 = vld [vmem:[#allocation2 + $0x38] sm:$0xff]
        %v880 = vld [vmem:[#allocation2 + $0x40] sm:$0xff]
        %v881 = vld [vmem:[#allocation2 + $0x48] sm:$0xff]
        %v882 = vld [vmem:[#allocation2 + $0x50] sm:$0xff]
        %v883 = vld [vmem:[#allocation2 + $0x58] sm:$0xff]
        %v884 = vld [vmem:[#allocation2 + $0x60] sm:$0xff]
        %v885 = vld [vmem:[#allocation2 + $0x68] sm:$0xff]
        %v886 = vld [vmem:[#allocation2 + $0x70] sm:$0xff]
        %v887 = vld [vmem:[#allocation2 + $0x78] sm:$0xff]
        %v888 = vadd.f32 %v872, %v810
        %v889 = vadd.f32 %v873, %v813
        %v890 = vadd.f32 %v874, %v818
        %v891 = vadd.f32 %v875, %v821
        %v892 = vadd.f32 %v876, %v826
        %v893 = vadd.f32 %v877, %v829
        %v894 = vadd.f32 %v878, %v834
        %v895 = vadd.f32 %v879, %v837
        %v896 = vadd.f32 %v880, %v842
        %v897 = vadd.f32 %v881, %v845
        %v898 = vadd.f32 %v882, %v850
        %v899 = vadd.f32 %v883, %v853
        %v900 = vadd.f32 %v884, %v858
        %v901 = vadd.f32 %v885, %v861
        %v902 = vadd.f32 %v886, %v866
        %v903 = vadd.f32 %v887, %v869
        %904 = vst [vmem:[#allocation2] sm:$0xff] %v888
        %905 = vst [vmem:[#allocation2 + $0x8] sm:$0xff] %v889
        %906 = vst [vmem:[#allocation2 + $0x10] sm:$0xff] %v890
        %907 = vst [vmem:[#allocation2 + $0x18] sm:$0xff] %v891
        %908 = vst [vmem:[#allocation2 + $0x20] sm:$0xff] %v892
        %909 = vst [vmem:[#allocation2 + $0x28] sm:$0xff] %v893
        %910 = vst [vmem:[#allocation2 + $0x30] sm:$0xff] %v894
        %911 = vst [vmem:[#allocation2 + $0x38] sm:$0xff] %v895
        %912 = vst [vmem:[#allocation2 + $0x40] sm:$0xff] %v896
        %913 = vst [vmem:[#allocation2 + $0x48] sm:$0xff] %v897
        %914 = vst [vmem:[#allocation2 + $0x50] sm:$0xff] %v898
        %915 = vst [vmem:[#allocation2 + $0x58] sm:$0xff] %v899
        %916 = vst [vmem:[#allocation2 + $0x60] sm:$0xff] %v900
        %917 = vst [vmem:[#allocation2 + $0x68] sm:$0xff] %v901
        %918 = vst [vmem:[#allocation2 + $0x70] sm:$0xff] %v902
        %919 = vst [vmem:[#allocation2 + $0x78] sm:$0xff] %v903
        %v920 = vld [vmem:[#allocation3 + $0x10] sm:$0xff]
        %v921 = vld [vmem:[#allocation3 + $0x18] sm:$0xff]
        %v922 = vld [vmem:[#allocation3 + $0x20] sm:$0xff]
        %v923 = vld [vmem:[#allocation3 + $0x28] sm:$0xff]
        %v924 = vld [vmem:[#allocation3 + $0x30] sm:$0xff]
        %v925 = vld [vmem:[#allocation3 + $0x38] sm:$0xff]
        %v926 = vld [vmem:[#allocation3 + $0x40] sm:$0xff]
        %v927 = vld [vmem:[#allocation3 + $0x48] sm:$0xff]
        %s928 = scalar_lea.vmem %s1, 6
        %v929 = vld [vmem:[%s928] sm:$0x3]
        %v931 = vsel %vm294, %v920, 0
        %v934 = vsel %vm294, %v921, 0
        %v937 = vsel %vm294, %v922, 0
        %v940 = vsel %vm294, %v923, 0
        %v943 = vsel %vm294, %v924, 0
        %v946 = vsel %vm294, %v925, 0
        %v949 = vsel %vm294, %v926, 0
        %v952 = vsel %vm294, %v927, 0
        %v955 = vsel %vm341, %v929, 0
        %957 = vmatprep.subr.bf16.mxu0 0
        %958 = vmatpush1.bf16.msra.mxu0 %v955
        %959 = vmatprep.subr.bf16.mxu0 0
        %960 = vmatpush1.bf16.msra.mxu0 0
        %961 = vmatprep.subr.bf16.mxu0 0
        %962 = vmatpush1.bf16.msra.mxu0 0
        %963 = vmatprep.subr.bf16.mxu0 0
        %964 = vmatpush1.bf16.msra.mxu0 0
        %965 = vmatprep.subr.bf16.mxu0 0
        %966 = vmatpush1.bf16.msra.mxu0 0
        %967 = vmatprep.subr.bf16.mxu0 0
        %968 = vmatpush1.bf16.msra.mxu0 0
        %969 = vmatprep.subr.bf16.mxu0 0
        %970 = vmatpush1.bf16.msra.mxu0 0
        %971 = vmatprep.subr.bf16.mxu0 0
        %972 = vmatpush1.bf16.msra.mxu0 0
        %973 = vmatprep.subr.bf16.mxu0 0
        %974 = vmatpush1.bf16.msra.mxu0 0
        %975 = vmatprep.subr.bf16.mxu0 0
        %976 = vmatpush1.bf16.msra.mxu0 0
        %977 = vmatprep.subr.bf16.mxu0 0
        %978 = vmatpush1.bf16.msra.mxu0 0
        %979 = vmatprep.subr.bf16.mxu0 0
        %980 = vmatpush1.bf16.msra.mxu0 0
        %981 = vmatprep.subr.bf16.mxu0 0
        %982 = vmatpush1.bf16.msra.mxu0 0
        %983 = vmatprep.subr.bf16.mxu0 0
        %984 = vmatpush1.bf16.msra.mxu0 0
        %985 = vmatprep.subr.bf16.mxu0 0
        %986 = vmatpush1.bf16.msra.mxu0 0
        %987 = vmatprep.subr.bf16.mxu0 0
        %988 = vmatpush1.bf16.msra.mxu0 0
        %989 = vmatprep.mubr.bf16.mxu0 0
        %990 = vmatmul.mubr.bf16.gmra.mrb[0].mxu0 %v931
        %v991 = vpop.f32.mrb[0].mxu0
        %v992 = vadd.f32 0.0, %v991
        %v993 = vpop.f32.mrb[0].mxu0
        %v994 = vpop.f32.mrb[0].mxu0
        %v995 = vadd.f32 0.0, %v994
        %v996 = vpop.f32.mrb[0].mxu0
        %997 = vmatprep.mubr.bf16.mxu0 0
        %998 = vmatmul.mubr.bf16.gmra.mrb[0].mxu0 %v934
        %v999 = vpop.f32.mrb[0].mxu0
        %v1000 = vadd.f32 0.0, %v999
        %v1001 = vpop.f32.mrb[0].mxu0
        %v1002 = vpop.f32.mrb[0].mxu0
        %v1003 = vadd.f32 0.0, %v1002
        %v1004 = vpop.f32.mrb[0].mxu0
        %1005 = vmatprep.mubr.bf16.mxu0 0
        %1006 = vmatmul.mubr.bf16.gmra.mrb[0].mxu0 %v937
        %v1007 = vpop.f32.mrb[0].mxu0
        %v1008 = vadd.f32 0.0, %v1007
        %v1009 = vpop.f32.mrb[0].mxu0
        %v1010 = vpop.f32.mrb[0].mxu0
        %v1011 = vadd.f32 0.0, %v1010
        %v1012 = vpop.f32.mrb[0].mxu0
        %1013 = vmatprep.mubr.bf16.mxu0 0
        %1014 = vmatmul.mubr.bf16.gmra.mrb[0].mxu0 %v940
        %v1015 = vpop.f32.mrb[0].mxu0
        %v1016 = vadd.f32 0.0, %v1015
        %v1017 = vpop.f32.mrb[0].mxu0
        %v1018 = vpop.f32.mrb[0].mxu0
        %v1019 = vadd.f32 0.0, %v1018
        %v1020 = vpop.f32.mrb[0].mxu0
        %1021 = vmatprep.mubr.bf16.mxu0 0
        %1022 = vmatmul.mubr.bf16.gmra.mrb[0].mxu0 %v943
        %v1023 = vpop.f32.mrb[0].mxu0
        %v1024 = vadd.f32 0.0, %v1023
        %v1025 = vpop.f32.mrb[0].mxu0
        %v1026 = vpop.f32.mrb[0].mxu0
        %v1027 = vadd.f32 0.0, %v1026
        %v1028 = vpop.f32.mrb[0].mxu0
        %1029 = vmatprep.mubr.bf16.mxu0 0
        %1030 = vmatmul.mubr.bf16.gmra.mrb[0].mxu0 %v946
        %v1031 = vpop.f32.mrb[0].mxu0
        %v1032 = vadd.f32 0.0, %v1031
        %v1033 = vpop.f32.mrb[0].mxu0
        %v1034 = vpop.f32.mrb[0].mxu0
        %v1035 = vadd.f32 0.0, %v1034
        %v1036 = vpop.f32.mrb[0].mxu0
        %1037 = vmatprep.mubr.bf16.mxu0 0
        %1038 = vmatmul.mubr.bf16.gmra.mrb[0].mxu0 %v949
        %v1039 = vpop.f32.mrb[0].mxu0
        %v1040 = vadd.f32 0.0, %v1039
        %v1041 = vpop.f32.mrb[0].mxu0
        %v1042 = vpop.f32.mrb[0].mxu0
        %v1043 = vadd.f32 0.0, %v1042
        %v1044 = vpop.f32.mrb[0].mxu0
        %1045 = vmatprep.mubr.bf16.mxu0 0
        %1046 = vmatmul.mubr.bf16.gmra.mrb[0].mxu0 %v952
        %v1047 = vpop.f32.mrb[0].mxu0
        %v1048 = vadd.f32 0.0, %v1047
        %v1049 = vpop.f32.mrb[0].mxu0
        %v1050 = vpop.f32.mrb[0].mxu0
        %v1051 = vadd.f32 0.0, %v1050
        %v1052 = vpop.f32.mrb[0].mxu0
        %1053 = vdwg.mxu0
        %v1054 = vld [vmem:[#allocation2] sm:$0xff]
        %v1055 = vld [vmem:[#allocation2 + $0x8] sm:$0xff]
        %v1056 = vld [vmem:[#allocation2 + $0x10] sm:$0xff]
        %v1057 = vld [vmem:[#allocation2 + $0x18] sm:$0xff]
        %v1058 = vld [vmem:[#allocation2 + $0x20] sm:$0xff]
        %v1059 = vld [vmem:[#allocation2 + $0x28] sm:$0xff]
        %v1060 = vld [vmem:[#allocation2 + $0x30] sm:$0xff]
        %v1061 = vld [vmem:[#allocation2 + $0x38] sm:$0xff]
        %v1062 = vld [vmem:[#allocation2 + $0x40] sm:$0xff]
        %v1063 = vld [vmem:[#allocation2 + $0x48] sm:$0xff]
        %v1064 = vld [vmem:[#allocation2 + $0x50] sm:$0xff]
        %v1065 = vld [vmem:[#allocation2 + $0x58] sm:$0xff]
        %v1066 = vld [vmem:[#allocation2 + $0x60] sm:$0xff]
        %v1067 = vld [vmem:[#allocation2 + $0x68] sm:$0xff]
        %v1068 = vld [vmem:[#allocation2 + $0x70] sm:$0xff]
        %v1069 = vld [vmem:[#allocation2 + $0x78] sm:$0xff]
        %v1070 = vadd.f32 %v1054, %v992
        %v1071 = vadd.f32 %v1055, %v995
        %v1072 = vadd.f32 %v1056, %v1000
        %v1073 = vadd.f32 %v1057, %v1003
        %v1074 = vadd.f32 %v1058, %v1008
        %v1075 = vadd.f32 %v1059, %v1011
        %v1076 = vadd.f32 %v1060, %v1016
        %v1077 = vadd.f32 %v1061, %v1019
        %v1078 = vadd.f32 %v1062, %v1024
        %v1079 = vadd.f32 %v1063, %v1027
        %v1080 = vadd.f32 %v1064, %v1032
        %v1081 = vadd.f32 %v1065, %v1035
        %v1082 = vadd.f32 %v1066, %v1040
        %v1083 = vadd.f32 %v1067, %v1043
        %v1084 = vadd.f32 %v1068, %v1048
        %v1085 = vadd.f32 %v1069, %v1051
        %1086 = vst [vmem:[#allocation2] sm:$0xff] %v1070
        %1087 = vst [vmem:[#allocation2 + $0x8] sm:$0xff] %v1071
        %1088 = vst [vmem:[#allocation2 + $0x10] sm:$0xff] %v1072
        %1089 = vst [vmem:[#allocation2 + $0x18] sm:$0xff] %v1073
        %1090 = vst [vmem:[#allocation2 + $0x20] sm:$0xff] %v1074
        %1091 = vst [vmem:[#allocation2 + $0x28] sm:$0xff] %v1075
        %1092 = vst [vmem:[#allocation2 + $0x30] sm:$0xff] %v1076
        %1093 = vst [vmem:[#allocation2 + $0x38] sm:$0xff] %v1077
        %1094 = vst [vmem:[#allocation2 + $0x40] sm:$0xff] %v1078
        %1095 = vst [vmem:[#allocation2 + $0x48] sm:$0xff] %v1079
        %1096 = vst [vmem:[#allocation2 + $0x50] sm:$0xff] %v1080
        %1097 = vst [vmem:[#allocation2 + $0x58] sm:$0xff] %v1081
        %1098 = vst [vmem:[#allocation2 + $0x60] sm:$0xff] %v1082
        %1099 = vst [vmem:[#allocation2 + $0x68] sm:$0xff] %v1083
        %1100 = vst [vmem:[#allocation2 + $0x70] sm:$0xff] %v1084
        %1101 = vst [vmem:[#allocation2 + $0x78] sm:$0xff] %v1085
        %v1102 = vld [vmem:[#allocation3 + $0x10] sm:$0xff]
        %v1103 = vld [vmem:[#allocation3 + $0x18] sm:$0xff]
        %v1104 = vld [vmem:[#allocation3 + $0x20] sm:$0xff]
        %v1105 = vld [vmem:[#allocation3 + $0x28] sm:$0xff]
        %v1106 = vld [vmem:[#allocation3 + $0x30] sm:$0xff]
        %v1107 = vld [vmem:[#allocation3 + $0x38] sm:$0xff]
        %v1108 = vld [vmem:[#allocation3 + $0x40] sm:$0xff]
        %v1109 = vld [vmem:[#allocation3 + $0x48] sm:$0xff]
        %v1110 = vld [vmem:[#allocation3 + $0x50] sm:$0x1]
        %s1111 = scalar_lea.vmem %s1, 8
        %v1112 = vld [vmem:[%s1111] sm:$0x3]
        %v1114 = vshrl.u32 %v1102, 16
        %v1116 = vshll.u32 %v1102, 16
        %v1118 = vrot.slane %v1116, 1
        %v1119 = vor.u32 %v1114, %v1118
        %v1121 = vshll.u32 %v1103, 16
        %v1123 = vrot.slane %v1121, 1
        %v1124 = vsel %vm469, %v1119, %v1123
        %v1125 = vshrl.u32 %v1103, 16
        %v1127 = vor.u32 %v1125, %v1123
        %v1129 = vshll.u32 %v1104, 16
        %v1131 = vrot.slane %v1129, 1
        %v1132 = vsel %vm469, %v1127, %v1131
        %v1133 = vshrl.u32 %v1104, 16
        %v1135 = vor.u32 %v1133, %v1131
        %v1137 = vshll.u32 %v1105, 16
        %v1139 = vrot.slane %v1137, 1
        %v1140 = vsel %vm469, %v1135, %v1139
        %v1141 = vshrl.u32 %v1105, 16
        %v1143 = vor.u32 %v1141, %v1139
        %v1145 = vshll.u32 %v1106, 16
        %v1147 = vrot.slane %v1145, 1
        %v1148 = vsel %vm469, %v1143, %v1147
        %v1149 = vshrl.u32 %v1106, 16
        %v1151 = vor.u32 %v1149, %v1147
        %v1153 = vshll.u32 %v1107, 16
        %v1155 = vrot.slane %v1153, 1
        %v1156 = vsel %vm469, %v1151, %v1155
        %v1157 = vshrl.u32 %v1107, 16
        %v1159 = vor.u32 %v1157, %v1155
        %v1161 = vshll.u32 %v1108, 16
        %v1163 = vrot.slane %v1161, 1
        %v1164 = vsel %vm469, %v1159, %v1163
        %v1165 = vshrl.u32 %v1108, 16
        %v1167 = vor.u32 %v1165, %v1163
        %v1169 = vshll.u32 %v1109, 16
        %v1171 = vrot.slane %v1169, 1
        %v1172 = vsel %vm469, %v1167, %v1171
        %v1173 = vshrl.u32 %v1109, 16
        %v1175 = vor.u32 %v1173, %v1171
        %v1177 = vshll.u32 %v1110, 16
        %v1179 = vrot.slane %v1177, 1
        %v1180 = vsel %vm469, %v1175, %v1179
        %v1182 = vsel %vm294, %v1124, 0
        %v1185 = vsel %vm294, %v1132, 0
        %v1188 = vsel %vm294, %v1140, 0
        %v1191 = vsel %vm294, %v1148, 0
        %v1194 = vsel %vm294, %v1156, 0
        %v1197 = vsel %vm294, %v1164, 0
        %v1200 = vsel %vm294, %v1172, 0
        %v1203 = vsel %vm294, %v1180, 0
        %v1206 = vsel %vm341, %v1112, 0
        %1208 = vmatprep.subr.bf16.mxu0 0
        %1209 = vmatpush1.bf16.msra.mxu0 %v1206
        %1210 = vmatprep.subr.bf16.mxu0 0
        %1211 = vmatpush1.bf16.msra.mxu0 0
        %1212 = vmatprep.subr.bf16.mxu0 0
        %1213 = vmatpush1.bf16.msra.mxu0 0
        %1214 = vmatprep.subr.bf16.mxu0 0
        %1215 = vmatpush1.bf16.msra.mxu0 0
        %1216 = vmatprep.subr.bf16.mxu0 0
        %1217 = vmatpush1.bf16.msra.mxu0 0
        %1218 = vmatprep.subr.bf16.mxu0 0
        %1219 = vmatpush1.bf16.msra.mxu0 0
        %1220 = vmatprep.subr.bf16.mxu0 0
        %1221 = vmatpush1.bf16.msra.mxu0 0
        %1222 = vmatprep.subr.bf16.mxu0 0
        %1223 = vmatpush1.bf16.msra.mxu0 0
        %1224 = vmatprep.subr.bf16.mxu0 0
        %1225 = vmatpush1.bf16.msra.mxu0 0
        %1226 = vmatprep.subr.bf16.mxu0 0
        %1227 = vmatpush1.bf16.msra.mxu0 0
        %1228 = vmatprep.subr.bf16.mxu0 0
        %1229 = vmatpush1.bf16.msra.mxu0 0
        %1230 = vmatprep.subr.bf16.mxu0 0
        %1231 = vmatpush1.bf16.msra.mxu0 0
        %1232 = vmatprep.subr.bf16.mxu0 0
        %1233 = vmatpush1.bf16.msra.mxu0 0
        %1234 = vmatprep.subr.bf16.mxu0 0
        %1235 = vmatpush1.bf16.msra.mxu0 0
        %1236 = vmatprep.subr.bf16.mxu0 0
        %1237 = vmatpush1.bf16.msra.mxu0 0
        %1238 = vmatprep.subr.bf16.mxu0 0
        %1239 = vmatpush1.bf16.msra.mxu0 0
        %1240 = vmatprep.mubr.bf16.mxu0 0
        %1241 = vmatmul.mubr.bf16.gmra.mrb[0].mxu0 %v1182
        %v1242 = vpop.f32.mrb[0].mxu0
        %v1243 = vadd.f32 0.0, %v1242
        %v1244 = vpop.f32.mrb[0].mxu0
        %v1245 = vpop.f32.mrb[0].mxu0
        %v1246 = vadd.f32 0.0, %v1245
        %v1247 = vpop.f32.mrb[0].mxu0
        %1248 = vmatprep.mubr.bf16.mxu0 0
        %1249 = vmatmul.mubr.bf16.gmra.mrb[0].mxu0 %v1185
        %v1250 = vpop.f32.mrb[0].mxu0
        %v1251 = vadd.f32 0.0, %v1250
        %v1252 = vpop.f32.mrb[0].mxu0
        %v1253 = vpop.f32.mrb[0].mxu0
        %v1254 = vadd.f32 0.0, %v1253
        %v1255 = vpop.f32.mrb[0].mxu0
        %1256 = vmatprep.mubr.bf16.mxu0 0
        %1257 = vmatmul.mubr.bf16.gmra.mrb[0].mxu0 %v1188
        %v1258 = vpop.f32.mrb[0].mxu0
        %v1259 = vadd.f32 0.0, %v1258
        %v1260 = vpop.f32.mrb[0].mxu0
        %v1261 = vpop.f32.mrb[0].mxu0
        %v1262 = vadd.f32 0.0, %v1261
        %v1263 = vpop.f32.mrb[0].mxu0
        %1264 = vmatprep.mubr.bf16.mxu0 0
        %1265 = vmatmul.mubr.bf16.gmra.mrb[0].mxu0 %v1191
        %v1266 = vpop.f32.mrb[0].mxu0
        %v1267 = vadd.f32 0.0, %v1266
        %v1268 = vpop.f32.mrb[0].mxu0
        %v1269 = vpop.f32.mrb[0].mxu0
        %v1270 = vadd.f32 0.0, %v1269
        %v1271 = vpop.f32.mrb[0].mxu0
        %1272 = vmatprep.mubr.bf16.mxu0 0
        %1273 = vmatmul.mubr.bf16.gmra.mrb[0].mxu0 %v1194
        %v1274 = vpop.f32.mrb[0].mxu0
        %v1275 = vadd.f32 0.0, %v1274
        %v1276 = vpop.f32.mrb[0].mxu0
        %v1277 = vpop.f32.mrb[0].mxu0
        %v1278 = vadd.f32 0.0, %v1277
        %v1279 = vpop.f32.mrb[0].mxu0
        %1280 = vmatprep.mubr.bf16.mxu0 0
        %1281 = vmatmul.mubr.bf16.gmra.mrb[0].mxu0 %v1197
        %v1282 = vpop.f32.mrb[0].mxu0
        %v1283 = vadd.f32 0.0, %v1282
        %v1284 = vpop.f32.mrb[0].mxu0
        %v1285 = vpop.f32.mrb[0].mxu0
        %v1286 = vadd.f32 0.0, %v1285
        %v1287 = vpop.f32.mrb[0].mxu0
        %1288 = vmatprep.mubr.bf16.mxu0 0
        %1289 = vmatmul.mubr.bf16.gmra.mrb[0].mxu0 %v1200
        %v1290 = vpop.f32.mrb[0].mxu0
        %v1291 = vadd.f32 0.0, %v1290
        %v1292 = vpop.f32.mrb[0].mxu0
        %v1293 = vpop.f32.mrb[0].mxu0
        %v1294 = vadd.f32 0.0, %v1293
        %v1295 = vpop.f32.mrb[0].mxu0
        %1296 = vmatprep.mubr.bf16.mxu0 0
        %1297 = vmatmul.mubr.bf16.gmra.mrb[0].mxu0 %v1203
        %v1298 = vpop.f32.mrb[0].mxu0
        %v1299 = vadd.f32 0.0, %v1298
        %v1300 = vpop.f32.mrb[0].mxu0
        %v1301 = vpop.f32.mrb[0].mxu0
        %v1302 = vadd.f32 0.0, %v1301
        %v1303 = vpop.f32.mrb[0].mxu0
        %1304 = vdwg.mxu0
        %v1305 = vld [vmem:[#allocation2] sm:$0xff]
        %v1306 = vld [vmem:[#allocation2 + $0x8] sm:$0xff]
        %v1307 = vld [vmem:[#allocation2 + $0x10] sm:$0xff]
        %v1308 = vld [vmem:[#allocation2 + $0x18] sm:$0xff]
        %v1309 = vld [vmem:[#allocation2 + $0x20] sm:$0xff]
        %v1310 = vld [vmem:[#allocation2 + $0x28] sm:$0xff]
        %v1311 = vld [vmem:[#allocation2 + $0x30] sm:$0xff]
        %v1312 = vld [vmem:[#allocation2 + $0x38] sm:$0xff]
        %v1313 = vld [vmem:[#allocation2 + $0x40] sm:$0xff]
        %v1314 = vld [vmem:[#allocation2 + $0x48] sm:$0xff]
        %v1315 = vld [vmem:[#allocation2 + $0x50] sm:$0xff]
        %v1316 = vld [vmem:[#allocation2 + $0x58] sm:$0xff]
        %v1317 = vld [vmem:[#allocation2 + $0x60] sm:$0xff]
        %v1318 = vld [vmem:[#allocation2 + $0x68] sm:$0xff]
        %v1319 = vld [vmem:[#allocation2 + $0x70] sm:$0xff]
        %v1320 = vld [vmem:[#allocation2 + $0x78] sm:$0xff]
        %v1321 = vadd.f32 %v1305, %v1243
        %v1322 = vadd.f32 %v1306, %v1246
        %v1323 = vadd.f32 %v1307, %v1251
        %v1324 = vadd.f32 %v1308, %v1254
        %v1325 = vadd.f32 %v1309, %v1259
        %v1326 = vadd.f32 %v1310, %v1262
        %v1327 = vadd.f32 %v1311, %v1267
        %v1328 = vadd.f32 %v1312, %v1270
        %v1329 = vadd.f32 %v1313, %v1275
        %v1330 = vadd.f32 %v1314, %v1278
        %v1331 = vadd.f32 %v1315, %v1283
        %v1332 = vadd.f32 %v1316, %v1286
        %v1333 = vadd.f32 %v1317, %v1291
        %v1334 = vadd.f32 %v1318, %v1294
        %v1335 = vadd.f32 %v1319, %v1299
        %v1336 = vadd.f32 %v1320, %v1302
        %1337 = vst [vmem:[#allocation2] sm:$0xff] %v1321
        %1338 = vst [vmem:[#allocation2 + $0x8] sm:$0xff] %v1322
        %1339 = vst [vmem:[#allocation2 + $0x10] sm:$0xff] %v1323
        %1340 = vst [vmem:[#allocation2 + $0x18] sm:$0xff] %v1324
        %1341 = vst [vmem:[#allocation2 + $0x20] sm:$0xff] %v1325
        %1342 = vst [vmem:[#allocation2 + $0x28] sm:$0xff] %v1326
        %1343 = vst [vmem:[#allocation2 + $0x30] sm:$0xff] %v1327
        %1344 = vst [vmem:[#allocation2 + $0x38] sm:$0xff] %v1328
        %1345 = vst [vmem:[#allocation2 + $0x40] sm:$0xff] %v1329
        %1346 = vst [vmem:[#allocation2 + $0x48] sm:$0xff] %v1330
        %1347 = vst [vmem:[#allocation2 + $0x50] sm:$0xff] %v1331
        %1348 = vst [vmem:[#allocation2 + $0x58] sm:$0xff] %v1332
        %1349 = vst [vmem:[#allocation2 + $0x60] sm:$0xff] %v1333
        %1350 = vst [vmem:[#allocation2 + $0x68] sm:$0xff] %v1334
        %1351 = vst [vmem:[#allocation2 + $0x70] sm:$0xff] %v1335
        %1352 = vst [vmem:[#allocation2 + $0x78] sm:$0xff] %v1336
        %v1353 = vld [vmem:[#allocation3 + $0x10] sm:$0xfe]
        %v1354 = vld [vmem:[#allocation3 + $0x18] sm:$0xff]
        %v1355 = vld [vmem:[#allocation3 + $0x20] sm:$0xff]
        %v1356 = vld [vmem:[#allocation3 + $0x28] sm:$0xff]
        %v1357 = vld [vmem:[#allocation3 + $0x30] sm:$0xff]
        %v1358 = vld [vmem:[#allocation3 + $0x38] sm:$0xff]
        %v1359 = vld [vmem:[#allocation3 + $0x40] sm:$0xff]
        %v1360 = vld [vmem:[#allocation3 + $0x48] sm:$0xff]
        %v1361 = vld [vmem:[#allocation3 + $0x50] sm:$0x1]
        %s1362 = scalar_lea.vmem %s1, 10
        %v1363 = vld [vmem:[%s1362] sm:$0x3]
        %v1373 = vrot.slane %v1353, 1
        %v1374 = vrot.slane %v1354, 1
        %v1375 = vsel %vm730, %v1373, %v1374
        %v1376 = vrot.slane %v1355, 1
        %v1377 = vsel %vm730, %v1374, %v1376
        %v1378 = vrot.slane %v1356, 1
        %v1379 = vsel %vm730, %v1376, %v1378
        %v1380 = vrot.slane %v1357, 1
        %v1381 = vsel %vm730, %v1378, %v1380
        %v1382 = vrot.slane %v1358, 1
        %v1383 = vsel %vm730, %v1380, %v1382
        %v1384 = vrot.slane %v1359, 1
        %v1385 = vsel %vm730, %v1382, %v1384
        %v1386 = vrot.slane %v1360, 1
        %v1387 = vsel %vm730, %v1384, %v1386
        %v1388 = vrot.slane %v1361, 1
        %v1389 = vsel %vm730, %v1386, %v1388
        %v1391 = vsel %vm294, %v1375, 0
        %v1394 = vsel %vm294, %v1377, 0
        %v1397 = vsel %vm294, %v1379, 0
        %v1400 = vsel %vm294, %v1381, 0
        %v1403 = vsel %vm294, %v1383, 0
        %v1406 = vsel %vm294, %v1385, 0
        %v1409 = vsel %vm294, %v1387, 0
        %v1412 = vsel %vm294, %v1389, 0
        %v1415 = vsel %vm341, %v1363, 0
        %1417 = vmatprep.subr.bf16.mxu0 0
        %1418 = vmatpush1.bf16.msra.mxu0 %v1415
        %1419 = vmatprep.subr.bf16.mxu0 0
        %1420 = vmatpush1.bf16.msra.mxu0 0
        %1421 = vmatprep.subr.bf16.mxu0 0
        %1422 = vmatpush1.bf16.msra.mxu0 0
        %1423 = vmatprep.subr.bf16.mxu0 0
        %1424 = vmatpush1.bf16.msra.mxu0 0
        %1425 = vmatprep.subr.bf16.mxu0 0
        %1426 = vmatpush1.bf16.msra.mxu0 0
        %1427 = vmatprep.subr.bf16.mxu0 0
        %1428 = vmatpush1.bf16.msra.mxu0 0
        %1429 = vmatprep.subr.bf16.mxu0 0
        %1430 = vmatpush1.bf16.msra.mxu0 0
        %1431 = vmatprep.subr.bf16.mxu0 0
        %1432 = vmatpush1.bf16.msra.mxu0 0
        %1433 = vmatprep.subr.bf16.mxu0 0
        %1434 = vmatpush1.bf16.msra.mxu0 0
        %1435 = vmatprep.subr.bf16.mxu0 0
        %1436 = vmatpush1.bf16.msra.mxu0 0
        %1437 = vmatprep.subr.bf16.mxu0 0
        %1438 = vmatpush1.bf16.msra.mxu0 0
        %1439 = vmatprep.subr.bf16.mxu0 0
        %1440 = vmatpush1.bf16.msra.mxu0 0
        %1441 = vmatprep.subr.bf16.mxu0 0
        %1442 = vmatpush1.bf16.msra.mxu0 0
        %1443 = vmatprep.subr.bf16.mxu0 0
        %1444 = vmatpush1.bf16.msra.mxu0 0
        %1445 = vmatprep.subr.bf16.mxu0 0
        %1446 = vmatpush1.bf16.msra.mxu0 0
        %1447 = vmatprep.subr.bf16.mxu0 0
        %1448 = vmatpush1.bf16.msra.mxu0 0
        %1449 = vmatprep.mubr.bf16.mxu0 0
        %1450 = vmatmul.mubr.bf16.gmra.mrb[0].mxu0 %v1391
        %v1451 = vpop.f32.mrb[0].mxu0
        %v1452 = vadd.f32 0.0, %v1451
        %v1453 = vpop.f32.mrb[0].mxu0
        %v1454 = vpop.f32.mrb[0].mxu0
        %v1455 = vadd.f32 0.0, %v1454
        %v1456 = vpop.f32.mrb[0].mxu0
        %1457 = vmatprep.mubr.bf16.mxu0 0
        %1458 = vmatmul.mubr.bf16.gmra.mrb[0].mxu0 %v1394
        %v1459 = vpop.f32.mrb[0].mxu0
        %v1460 = vadd.f32 0.0, %v1459
        %v1461 = vpop.f32.mrb[0].mxu0
        %v1462 = vpop.f32.mrb[0].mxu0
        %v1463 = vadd.f32 0.0, %v1462
        %v1464 = vpop.f32.mrb[0].mxu0
        %1465 = vmatprep.mubr.bf16.mxu0 0
        %1466 = vmatmul.mubr.bf16.gmra.mrb[0].mxu0 %v1397
        %v1467 = vpop.f32.mrb[0].mxu0
        %v1468 = vadd.f32 0.0, %v1467
        %v1469 = vpop.f32.mrb[0].mxu0
        %v1470 = vpop.f32.mrb[0].mxu0
        %v1471 = vadd.f32 0.0, %v1470
        %v1472 = vpop.f32.mrb[0].mxu0
        %1473 = vmatprep.mubr.bf16.mxu0 0
        %1474 = vmatmul.mubr.bf16.gmra.mrb[0].mxu0 %v1400
        %v1475 = vpop.f32.mrb[0].mxu0
        %v1476 = vadd.f32 0.0, %v1475
        %v1477 = vpop.f32.mrb[0].mxu0
        %v1478 = vpop.f32.mrb[0].mxu0
        %v1479 = vadd.f32 0.0, %v1478
        %v1480 = vpop.f32.mrb[0].mxu0
        %1481 = vmatprep.mubr.bf16.mxu0 0
        %1482 = vmatmul.mubr.bf16.gmra.mrb[0].mxu0 %v1403
        %v1483 = vpop.f32.mrb[0].mxu0
        %v1484 = vadd.f32 0.0, %v1483
        %v1485 = vpop.f32.mrb[0].mxu0
        %v1486 = vpop.f32.mrb[0].mxu0
        %v1487 = vadd.f32 0.0, %v1486
        %v1488 = vpop.f32.mrb[0].mxu0
        %1489 = vmatprep.mubr.bf16.mxu0 0
        %1490 = vmatmul.mubr.bf16.gmra.mrb[0].mxu0 %v1406
        %v1491 = vpop.f32.mrb[0].mxu0
        %v1492 = vadd.f32 0.0, %v1491
        %v1493 = vpop.f32.mrb[0].mxu0
        %v1494 = vpop.f32.mrb[0].mxu0
        %v1495 = vadd.f32 0.0, %v1494
        %v1496 = vpop.f32.mrb[0].mxu0
        %1497 = vmatprep.mubr.bf16.mxu0 0
        %1498 = vmatmul.mubr.bf16.gmra.mrb[0].mxu0 %v1409
        %v1499 = vpop.f32.mrb[0].mxu0
        %v1500 = vadd.f32 0.0, %v1499
        %v1501 = vpop.f32.mrb[0].mxu0
        %v1502 = vpop.f32.mrb[0].mxu0
        %v1503 = vadd.f32 0.0, %v1502
        %v1504 = vpop.f32.mrb[0].mxu0
        %1505 = vmatprep.mubr.bf16.mxu0 0
        %1506 = vmatmul.mubr.bf16.gmra.mrb[0].mxu0 %v1412
        %v1507 = vpop.f32.mrb[0].mxu0
        %v1508 = vadd.f32 0.0, %v1507
        %v1509 = vpop.f32.mrb[0].mxu0
        %v1510 = vpop.f32.mrb[0].mxu0
        %v1511 = vadd.f32 0.0, %v1510
        %v1512 = vpop.f32.mrb[0].mxu0
        %1513 = vdwg.mxu0
        %v1514 = vld [vmem:[#allocation2] sm:$0xff]
        %v1515 = vld [vmem:[#allocation2 + $0x8] sm:$0xff]
        %v1516 = vld [vmem:[#allocation2 + $0x10] sm:$0xff]
        %v1517 = vld [vmem:[#allocation2 + $0x18] sm:$0xff]
        %v1518 = vld [vmem:[#allocation2 + $0x20] sm:$0xff]
        %v1519 = vld [vmem:[#allocation2 + $0x28] sm:$0xff]
        %v1520 = vld [vmem:[#allocation2 + $0x30] sm:$0xff]
        %v1521 = vld [vmem:[#allocation2 + $0x38] sm:$0xff]
        %v1522 = vld [vmem:[#allocation2 + $0x40] sm:$0xff]
        %v1523 = vld [vmem:[#allocation2 + $0x48] sm:$0xff]
        %v1524 = vld [vmem:[#allocation2 + $0x50] sm:$0xff]
        %v1525 = vld [vmem:[#allocation2 + $0x58] sm:$0xff]
        %v1526 = vld [vmem:[#allocation2 + $0x60] sm:$0xff]
        %v1527 = vld [vmem:[#allocation2 + $0x68] sm:$0xff]
        %v1528 = vld [vmem:[#allocation2 + $0x70] sm:$0xff]
        %v1529 = vld [vmem:[#allocation2 + $0x78] sm:$0xff]
        %v1530 = vadd.f32 %v1514, %v1452
        %v1531 = vadd.f32 %v1515, %v1455
        %v1532 = vadd.f32 %v1516, %v1460
        %v1533 = vadd.f32 %v1517, %v1463
        %v1534 = vadd.f32 %v1518, %v1468
        %v1535 = vadd.f32 %v1519, %v1471
        %v1536 = vadd.f32 %v1520, %v1476
        %v1537 = vadd.f32 %v1521, %v1479
        %v1538 = vadd.f32 %v1522, %v1484
        %v1539 = vadd.f32 %v1523, %v1487
        %v1540 = vadd.f32 %v1524, %v1492
        %v1541 = vadd.f32 %v1525, %v1495
        %v1542 = vadd.f32 %v1526, %v1500
        %v1543 = vadd.f32 %v1527, %v1503
        %v1544 = vadd.f32 %v1528, %v1508
        %v1545 = vadd.f32 %v1529, %v1511
        %1546 = vst [vmem:[#allocation2] sm:$0xff] %v1530
        %1547 = vst [vmem:[#allocation2 + $0x8] sm:$0xff] %v1531
        %1548 = vst [vmem:[#allocation2 + $0x10] sm:$0xff] %v1532
        %1549 = vst [vmem:[#allocation2 + $0x18] sm:$0xff] %v1533
        %1550 = vst [vmem:[#allocation2 + $0x20] sm:$0xff] %v1534
        %1551 = vst [vmem:[#allocation2 + $0x28] sm:$0xff] %v1535
        %1552 = vst [vmem:[#allocation2 + $0x30] sm:$0xff] %v1536
        %1553 = vst [vmem:[#allocation2 + $0x38] sm:$0xff] %v1537
        %1554 = vst [vmem:[#allocation2 + $0x40] sm:$0xff] %v1538
        %1555 = vst [vmem:[#allocation2 + $0x48] sm:$0xff] %v1539
        %1556 = vst [vmem:[#allocation2 + $0x50] sm:$0xff] %v1540
        %1557 = vst [vmem:[#allocation2 + $0x58] sm:$0xff] %v1541
        %1558 = vst [vmem:[#allocation2 + $0x60] sm:$0xff] %v1542
        %1559 = vst [vmem:[#allocation2 + $0x68] sm:$0xff] %v1543
        %1560 = vst [vmem:[#allocation2 + $0x70] sm:$0xff] %v1544
        %1561 = vst [vmem:[#allocation2 + $0x78] sm:$0xff] %v1545
        %v1562 = vld [vmem:[#allocation3 + $0x20] sm:$0xff]
        %v1563 = vld [vmem:[#allocation3 + $0x28] sm:$0xff]
        %v1564 = vld [vmem:[#allocation3 + $0x30] sm:$0xff]
        %v1565 = vld [vmem:[#allocation3 + $0x38] sm:$0xff]
        %v1566 = vld [vmem:[#allocation3 + $0x40] sm:$0xff]
        %v1567 = vld [vmem:[#allocation3 + $0x48] sm:$0xff]
        %v1568 = vld [vmem:[#allocation3 + $0x50] sm:$0xff]
        %v1569 = vld [vmem:[#allocation3 + $0x58] sm:$0xff]
        %s1570 = scalar_lea.vmem %s1, 12
        %v1571 = vld [vmem:[%s1570] sm:$0x3]
        %v1573 = vsel %vm294, %v1562, 0
        %v1576 = vsel %vm294, %v1563, 0
        %v1579 = vsel %vm294, %v1564, 0
        %v1582 = vsel %vm294, %v1565, 0
        %v1585 = vsel %vm294, %v1566, 0
        %v1588 = vsel %vm294, %v1567, 0
        %v1591 = vsel %vm294, %v1568, 0
        %v1594 = vsel %vm294, %v1569, 0
        %v1597 = vsel %vm341, %v1571, 0
        %1599 = vmatprep.subr.bf16.mxu0 0
        %1600 = vmatpush1.bf16.msra.mxu0 %v1597
        %1601 = vmatprep.subr.bf16.mxu0 0
        %1602 = vmatpush1.bf16.msra.mxu0 0
        %1603 = vmatprep.subr.bf16.mxu0 0
        %1604 = vmatpush1.bf16.msra.mxu0 0
        %1605 = vmatprep.subr.bf16.mxu0 0
        %1606 = vmatpush1.bf16.msra.mxu0 0
        %1607 = vmatprep.subr.bf16.mxu0 0
        %1608 = vmatpush1.bf16.msra.mxu0 0
        %1609 = vmatprep.subr.bf16.mxu0 0
        %1610 = vmatpush1.bf16.msra.mxu0 0
        %1611 = vmatprep.subr.bf16.mxu0 0
        %1612 = vmatpush1.bf16.msra.mxu0 0
        %1613 = vmatprep.subr.bf16.mxu0 0
        %1614 = vmatpush1.bf16.msra.mxu0 0
        %1615 = vmatprep.subr.bf16.mxu0 0
        %1616 = vmatpush1.bf16.msra.mxu0 0
        %1617 = vmatprep.subr.bf16.mxu0 0
        %1618 = vmatpush1.bf16.msra.mxu0 0
        %1619 = vmatprep.subr.bf16.mxu0 0
        %1620 = vmatpush1.bf16.msra.mxu0 0
        %1621 = vmatprep.subr.bf16.mxu0 0
        %1622 = vmatpush1.bf16.msra.mxu0 0
        %1623 = vmatprep.subr.bf16.mxu0 0
        %1624 = vmatpush1.bf16.msra.mxu0 0
        %1625 = vmatprep.subr.bf16.mxu0 0
        %1626 = vmatpush1.bf16.msra.mxu0 0
        %1627 = vmatprep.subr.bf16.mxu0 0
        %1628 = vmatpush1.bf16.msra.mxu0 0
        %1629 = vmatprep.subr.bf16.mxu0 0
        %1630 = vmatpush1.bf16.msra.mxu0 0
        %1631 = vmatprep.mubr.bf16.mxu0 0
        %1632 = vmatmul.mubr.bf16.gmra.mrb[0].mxu0 %v1573
        %v1633 = vpop.f32.mrb[0].mxu0
        %v1634 = vadd.f32 0.0, %v1633
        %v1635 = vpop.f32.mrb[0].mxu0
        %v1636 = vpop.f32.mrb[0].mxu0
        %v1637 = vadd.f32 0.0, %v1636
        %v1638 = vpop.f32.mrb[0].mxu0
        %1639 = vmatprep.mubr.bf16.mxu0 0
        %1640 = vmatmul.mubr.bf16.gmra.mrb[0].mxu0 %v1576
        %v1641 = vpop.f32.mrb[0].mxu0
        %v1642 = vadd.f32 0.0, %v1641
        %v1643 = vpop.f32.mrb[0].mxu0
        %v1644 = vpop.f32.mrb[0].mxu0
        %v1645 = vadd.f32 0.0, %v1644
        %v1646 = vpop.f32.mrb[0].mxu0
        %1647 = vmatprep.mubr.bf16.mxu0 0
        %1648 = vmatmul.mubr.bf16.gmra.mrb[0].mxu0 %v1579
        %v1649 = vpop.f32.mrb[0].mxu0
        %v1650 = vadd.f32 0.0, %v1649
        %v1651 = vpop.f32.mrb[0].mxu0
        %v1652 = vpop.f32.mrb[0].mxu0
        %v1653 = vadd.f32 0.0, %v1652
        %v1654 = vpop.f32.mrb[0].mxu0
        %1655 = vmatprep.mubr.bf16.mxu0 0
        %1656 = vmatmul.mubr.bf16.gmra.mrb[0].mxu0 %v1582
        %v1657 = vpop.f32.mrb[0].mxu0
        %v1658 = vadd.f32 0.0, %v1657
        %v1659 = vpop.f32.mrb[0].mxu0
        %v1660 = vpop.f32.mrb[0].mxu0
        %v1661 = vadd.f32 0.0, %v1660
        %v1662 = vpop.f32.mrb[0].mxu0
        %1663 = vmatprep.mubr.bf16.mxu0 0
        %1664 = vmatmul.mubr.bf16.gmra.mrb[0].mxu0 %v1585
        %v1665 = vpop.f32.mrb[0].mxu0
        %v1666 = vadd.f32 0.0, %v1665
        %v1667 = vpop.f32.mrb[0].mxu0
        %v1668 = vpop.f32.mrb[0].mxu0
        %v1669 = vadd.f32 0.0, %v1668
        %v1670 = vpop.f32.mrb[0].mxu0
        %1671 = vmatprep.mubr.bf16.mxu0 0
        %1672 = vmatmul.mubr.bf16.gmra.mrb[0].mxu0 %v1588
        %v1673 = vpop.f32.mrb[0].mxu0
        %v1674 = vadd.f32 0.0, %v1673
        %v1675 = vpop.f32.mrb[0].mxu0
        %v1676 = vpop.f32.mrb[0].mxu0
        %v1677 = vadd.f32 0.0, %v1676
        %v1678 = vpop.f32.mrb[0].mxu0
        %1679 = vmatprep.mubr.bf16.mxu0 0
        %1680 = vmatmul.mubr.bf16.gmra.mrb[0].mxu0 %v1591
        %v1681 = vpop.f32.mrb[0].mxu0
        %v1682 = vadd.f32 0.0, %v1681
        %v1683 = vpop.f32.mrb[0].mxu0
        %v1684 = vpop.f32.mrb[0].mxu0
        %v1685 = vadd.f32 0.0, %v1684
        %v1686 = vpop.f32.mrb[0].mxu0
        %1687 = vmatprep.mubr.bf16.mxu0 0
        %1688 = vmatmul.mubr.bf16.gmra.mrb[0].mxu0 %v1594
        %v1689 = vpop.f32.mrb[0].mxu0
        %v1690 = vadd.f32 0.0, %v1689
        %v1691 = vpop.f32.mrb[0].mxu0
        %v1692 = vpop.f32.mrb[0].mxu0
        %v1693 = vadd.f32 0.0, %v1692
        %v1694 = vpop.f32.mrb[0].mxu0
        %1695 = vdwg.mxu0
        %v1696 = vld [vmem:[#allocation2] sm:$0xff]
        %v1697 = vld [vmem:[#allocation2 + $0x8] sm:$0xff]
        %v1698 = vld [vmem:[#allocation2 + $0x10] sm:$0xff]
        %v1699 = vld [vmem:[#allocation2 + $0x18] sm:$0xff]
        %v1700 = vld [vmem:[#allocation2 + $0x20] sm:$0xff]
        %v1701 = vld [vmem:[#allocation2 + $0x28] sm:$0xff]
        %v1702 = vld [vmem:[#allocation2 + $0x30] sm:$0xff]
        %v1703 = vld [vmem:[#allocation2 + $0x38] sm:$0xff]
        %v1704 = vld [vmem:[#allocation2 + $0x40] sm:$0xff]
        %v1705 = vld [vmem:[#allocation2 + $0x48] sm:$0xff]
        %v1706 = vld [vmem:[#allocation2 + $0x50] sm:$0xff]
        %v1707 = vld [vmem:[#allocation2 + $0x58] sm:$0xff]
        %v1708 = vld [vmem:[#allocation2 + $0x60] sm:$0xff]
        %v1709 = vld [vmem:[#allocation2 + $0x68] sm:$0xff]
        %v1710 = vld [vmem:[#allocation2 + $0x70] sm:$0xff]
        %v1711 = vld [vmem:[#allocation2 + $0x78] sm:$0xff]
        %v1712 = vadd.f32 %v1696, %v1634
        %v1713 = vadd.f32 %v1697, %v1637
        %v1714 = vadd.f32 %v1698, %v1642
        %v1715 = vadd.f32 %v1699, %v1645
        %v1716 = vadd.f32 %v1700, %v1650
        %v1717 = vadd.f32 %v1701, %v1653
        %v1718 = vadd.f32 %v1702, %v1658
        %v1719 = vadd.f32 %v1703, %v1661
        %v1720 = vadd.f32 %v1704, %v1666
        %v1721 = vadd.f32 %v1705, %v1669
        %v1722 = vadd.f32 %v1706, %v1674
        %v1723 = vadd.f32 %v1707, %v1677
        %v1724 = vadd.f32 %v1708, %v1682
        %v1725 = vadd.f32 %v1709, %v1685
        %v1726 = vadd.f32 %v1710, %v1690
        %v1727 = vadd.f32 %v1711, %v1693
        %1728 = vst [vmem:[#allocation2] sm:$0xff] %v1712
        %1729 = vst [vmem:[#allocation2 + $0x8] sm:$0xff] %v1713
        %1730 = vst [vmem:[#allocation2 + $0x10] sm:$0xff] %v1714
        %1731 = vst [vmem:[#allocation2 + $0x18] sm:$0xff] %v1715
        %1732 = vst [vmem:[#allocation2 + $0x20] sm:$0xff] %v1716
        %1733 = vst [vmem:[#allocation2 + $0x28] sm:$0xff] %v1717
        %1734 = vst [vmem:[#allocation2 + $0x30] sm:$0xff] %v1718
        %1735 = vst [vmem:[#allocation2 + $0x38] sm:$0xff] %v1719
        %1736 = vst [vmem:[#allocation2 + $0x40] sm:$0xff] %v1720
        %1737 = vst [vmem:[#allocation2 + $0x48] sm:$0xff] %v1721
        %1738 = vst [vmem:[#allocation2 + $0x50] sm:$0xff] %v1722
        %1739 = vst [vmem:[#allocation2 + $0x58] sm:$0xff] %v1723
        %1740 = vst [vmem:[#allocation2 + $0x60] sm:$0xff] %v1724
        %1741 = vst [vmem:[#allocation2 + $0x68] sm:$0xff] %v1725
        %1742 = vst [vmem:[#allocation2 + $0x70] sm:$0xff] %v1726
        %1743 = vst [vmem:[#allocation2 + $0x78] sm:$0xff] %v1727
        %v1744 = vld [vmem:[#allocation3 + $0x20] sm:$0xff]
        %v1745 = vld [vmem:[#allocation3 + $0x28] sm:$0xff]
        %v1746 = vld [vmem:[#allocation3 + $0x30] sm:$0xff]
        %v1747 = vld [vmem:[#allocation3 + $0x38] sm:$0xff]
        %v1748 = vld [vmem:[#allocation3 + $0x40] sm:$0xff]
        %v1749 = vld [vmem:[#allocation3 + $0x48] sm:$0xff]
        %v1750 = vld [vmem:[#allocation3 + $0x50] sm:$0xff]
        %v1751 = vld [vmem:[#allocation3 + $0x58] sm:$0xff]
        %v1752 = vld [vmem:[#allocation3 + $0x60] sm:$0x1]
        %s1753 = scalar_lea.vmem %s1, 14
        %v1754 = vld [vmem:[%s1753] sm:$0x3]
        %v1756 = vshrl.u32 %v1744, 16
        %v1758 = vshll.u32 %v1744, 16
        %v1760 = vrot.slane %v1758, 1
        %v1761 = vor.u32 %v1756, %v1760
        %v1763 = vshll.u32 %v1745, 16
        %v1765 = vrot.slane %v1763, 1
        %v1766 = vsel %vm469, %v1761, %v1765
        %v1767 = vshrl.u32 %v1745, 16
        %v1769 = vor.u32 %v1767, %v1765
        %v1771 = vshll.u32 %v1746, 16
        %v1773 = vrot.slane %v1771, 1
        %v1774 = vsel %vm469, %v1769, %v1773
        %v1775 = vshrl.u32 %v1746, 16
        %v1777 = vor.u32 %v1775, %v1773
        %v1779 = vshll.u32 %v1747, 16
        %v1781 = vrot.slane %v1779, 1
        %v1782 = vsel %vm469, %v1777, %v1781
        %v1783 = vshrl.u32 %v1747, 16
        %v1785 = vor.u32 %v1783, %v1781
        %v1787 = vshll.u32 %v1748, 16
        %v1789 = vrot.slane %v1787, 1
        %v1790 = vsel %vm469, %v1785, %v1789
        %v1791 = vshrl.u32 %v1748, 16
        %v1793 = vor.u32 %v1791, %v1789
        %v1795 = vshll.u32 %v1749, 16
        %v1797 = vrot.slane %v1795, 1
        %v1798 = vsel %vm469, %v1793, %v1797
        %v1799 = vshrl.u32 %v1749, 16
        %v1801 = vor.u32 %v1799, %v1797
        %v1803 = vshll.u32 %v1750, 16
        %v1805 = vrot.slane %v1803, 1
        %v1806 = vsel %vm469, %v1801, %v1805
        %v1807 = vshrl.u32 %v1750, 16
        %v1809 = vor.u32 %v1807, %v1805
        %v1811 = vshll.u32 %v1751, 16
        %v1813 = vrot.slane %v1811, 1
        %v1814 = vsel %vm469, %v1809, %v1813
        %v1815 = vshrl.u32 %v1751, 16
        %v1817 = vor.u32 %v1815, %v1813
        %v1819 = vshll.u32 %v1752, 16
        %v1821 = vrot.slane %v1819, 1
        %v1822 = vsel %vm469, %v1817, %v1821
        %v1824 = vsel %vm294, %v1766, 0
        %v1827 = vsel %vm294, %v1774, 0
        %v1830 = vsel %vm294, %v1782, 0
        %v1833 = vsel %vm294, %v1790, 0
        %v1836 = vsel %vm294, %v1798, 0
        %v1839 = vsel %vm294, %v1806, 0
        %v1842 = vsel %vm294, %v1814, 0
        %v1845 = vsel %vm294, %v1822, 0
        %v1848 = vsel %vm341, %v1754, 0
        %1850 = vmatprep.subr.bf16.mxu0 0
        %1851 = vmatpush1.bf16.msra.mxu0 %v1848
        %1852 = vmatprep.subr.bf16.mxu0 0
        %1853 = vmatpush1.bf16.msra.mxu0 0
        %1854 = vmatprep.subr.bf16.mxu0 0
        %1855 = vmatpush1.bf16.msra.mxu0 0
        %1856 = vmatprep.subr.bf16.mxu0 0
        %1857 = vmatpush1.bf16.msra.mxu0 0
        %1858 = vmatprep.subr.bf16.mxu0 0
        %1859 = vmatpush1.bf16.msra.mxu0 0
        %1860 = vmatprep.subr.bf16.mxu0 0
        %1861 = vmatpush1.bf16.msra.mxu0 0
        %1862 = vmatprep.subr.bf16.mxu0 0
        %1863 = vmatpush1.bf16.msra.mxu0 0
        %1864 = vmatprep.subr.bf16.mxu0 0
        %1865 = vmatpush1.bf16.msra.mxu0 0
        %1866 = vmatprep.subr.bf16.mxu0 0
        %1867 = vmatpush1.bf16.msra.mxu0 0
        %1868 = vmatprep.subr.bf16.mxu0 0
        %1869 = vmatpush1.bf16.msra.mxu0 0
        %1870 = vmatprep.subr.bf16.mxu0 0
        %1871 = vmatpush1.bf16.msra.mxu0 0
        %1872 = vmatprep.subr.bf16.mxu0 0
        %1873 = vmatpush1.bf16.msra.mxu0 0
        %1874 = vmatprep.subr.bf16.mxu0 0
        %1875 = vmatpush1.bf16.msra.mxu0 0
        %1876 = vmatprep.subr.bf16.mxu0 0
        %1877 = vmatpush1.bf16.msra.mxu0 0
        %1878 = vmatprep.subr.bf16.mxu0 0
        %1879 = vmatpush1.bf16.msra.mxu0 0
        %1880 = vmatprep.subr.bf16.mxu0 0
        %1881 = vmatpush1.bf16.msra.mxu0 0
        %1882 = vmatprep.mubr.bf16.mxu0 0
        %1883 = vmatmul.mubr.bf16.gmra.mrb[0].mxu0 %v1824
        %v1884 = vpop.f32.mrb[0].mxu0
        %v1885 = vadd.f32 0.0, %v1884
        %v1886 = vpop.f32.mrb[0].mxu0
        %v1887 = vpop.f32.mrb[0].mxu0
        %v1888 = vadd.f32 0.0, %v1887
        %v1889 = vpop.f32.mrb[0].mxu0
        %1890 = vmatprep.mubr.bf16.mxu0 0
        %1891 = vmatmul.mubr.bf16.gmra.mrb[0].mxu0 %v1827
        %v1892 = vpop.f32.mrb[0].mxu0
        %v1893 = vadd.f32 0.0, %v1892
        %v1894 = vpop.f32.mrb[0].mxu0
        %v1895 = vpop.f32.mrb[0].mxu0
        %v1896 = vadd.f32 0.0, %v1895
        %v1897 = vpop.f32.mrb[0].mxu0
        %1898 = vmatprep.mubr.bf16.mxu0 0
        %1899 = vmatmul.mubr.bf16.gmra.mrb[0].mxu0 %v1830
        %v1900 = vpop.f32.mrb[0].mxu0
        %v1901 = vadd.f32 0.0, %v1900
        %v1902 = vpop.f32.mrb[0].mxu0
        %v1903 = vpop.f32.mrb[0].mxu0
        %v1904 = vadd.f32 0.0, %v1903
        %v1905 = vpop.f32.mrb[0].mxu0
        %1906 = vmatprep.mubr.bf16.mxu0 0
        %1907 = vmatmul.mubr.bf16.gmra.mrb[0].mxu0 %v1833
        %v1908 = vpop.f32.mrb[0].mxu0
        %v1909 = vadd.f32 0.0, %v1908
        %v1910 = vpop.f32.mrb[0].mxu0
        %v1911 = vpop.f32.mrb[0].mxu0
        %v1912 = vadd.f32 0.0, %v1911
        %v1913 = vpop.f32.mrb[0].mxu0
        %1914 = vmatprep.mubr.bf16.mxu0 0
        %1915 = vmatmul.mubr.bf16.gmra.mrb[0].mxu0 %v1836
        %v1916 = vpop.f32.mrb[0].mxu0
        %v1917 = vadd.f32 0.0, %v1916
        %v1918 = vpop.f32.mrb[0].mxu0
        %v1919 = vpop.f32.mrb[0].mxu0
        %v1920 = vadd.f32 0.0, %v1919
        %v1921 = vpop.f32.mrb[0].mxu0
        %1922 = vmatprep.mubr.bf16.mxu0 0
        %1923 = vmatmul.mubr.bf16.gmra.mrb[0].mxu0 %v1839
        %v1924 = vpop.f32.mrb[0].mxu0
        %v1925 = vadd.f32 0.0, %v1924
        %v1926 = vpop.f32.mrb[0].mxu0
        %v1927 = vpop.f32.mrb[0].mxu0
        %v1928 = vadd.f32 0.0, %v1927
        %v1929 = vpop.f32.mrb[0].mxu0
        %1930 = vmatprep.mubr.bf16.mxu0 0
        %1931 = vmatmul.mubr.bf16.gmra.mrb[0].mxu0 %v1842
        %v1932 = vpop.f32.mrb[0].mxu0
        %v1933 = vadd.f32 0.0, %v1932
        %v1934 = vpop.f32.mrb[0].mxu0
        %v1935 = vpop.f32.mrb[0].mxu0
        %v1936 = vadd.f32 0.0, %v1935
        %v1937 = vpop.f32.mrb[0].mxu0
        %1938 = vmatprep.mubr.bf16.mxu0 0
        %1939 = vmatmul.mubr.bf16.gmra.mrb[0].mxu0 %v1845
        %v1940 = vpop.f32.mrb[0].mxu0
        %v1941 = vadd.f32 0.0, %v1940
        %v1942 = vpop.f32.mrb[0].mxu0
        %v1943 = vpop.f32.mrb[0].mxu0
        %v1944 = vadd.f32 0.0, %v1943
        %v1945 = vpop.f32.mrb[0].mxu0
        %1946 = vdwg.mxu0
        %v1947 = vld [vmem:[#allocation2] sm:$0xff]
        %v1948 = vld [vmem:[#allocation2 + $0x8] sm:$0xff]
        %v1949 = vld [vmem:[#allocation2 + $0x10] sm:$0xff]
        %v1950 = vld [vmem:[#allocation2 + $0x18] sm:$0xff]
        %v1951 = vld [vmem:[#allocation2 + $0x20] sm:$0xff]
        %v1952 = vld [vmem:[#allocation2 + $0x28] sm:$0xff]
        %v1953 = vld [vmem:[#allocation2 + $0x30] sm:$0xff]
        %v1954 = vld [vmem:[#allocation2 + $0x38] sm:$0xff]
        %v1955 = vld [vmem:[#allocation2 + $0x40] sm:$0xff]
        %v1956 = vld [vmem:[#allocation2 + $0x48] sm:$0xff]
        %v1957 = vld [vmem:[#allocation2 + $0x50] sm:$0xff]
        %v1958 = vld [vmem:[#allocation2 + $0x58] sm:$0xff]
        %v1959 = vld [vmem:[#allocation2 + $0x60] sm:$0xff]
        %v1960 = vld [vmem:[#allocation2 + $0x68] sm:$0xff]
        %v1961 = vld [vmem:[#allocation2 + $0x70] sm:$0xff]
        %v1962 = vld [vmem:[#allocation2 + $0x78] sm:$0xff]
        %v1963 = vadd.f32 %v1947, %v1885
        %v1964 = vadd.f32 %v1948, %v1888
        %v1965 = vadd.f32 %v1949, %v1893
        %v1966 = vadd.f32 %v1950, %v1896
        %v1967 = vadd.f32 %v1951, %v1901
        %v1968 = vadd.f32 %v1952, %v1904
        %v1969 = vadd.f32 %v1953, %v1909
        %v1970 = vadd.f32 %v1954, %v1912
        %v1971 = vadd.f32 %v1955, %v1917
        %v1972 = vadd.f32 %v1956, %v1920
        %v1973 = vadd.f32 %v1957, %v1925
        %v1974 = vadd.f32 %v1958, %v1928
        %v1975 = vadd.f32 %v1959, %v1933
        %v1976 = vadd.f32 %v1960, %v1936
        %v1977 = vadd.f32 %v1961, %v1941
        %v1978 = vadd.f32 %v1962, %v1944
        %1979 = vst [vmem:[#allocation2] sm:$0xff] %v1963
        %1980 = vst [vmem:[#allocation2 + $0x8] sm:$0xff] %v1964
        %1981 = vst [vmem:[#allocation2 + $0x10] sm:$0xff] %v1965
        %1982 = vst [vmem:[#allocation2 + $0x18] sm:$0xff] %v1966
        %1983 = vst [vmem:[#allocation2 + $0x20] sm:$0xff] %v1967
        %1984 = vst [vmem:[#allocation2 + $0x28] sm:$0xff] %v1968
        %1985 = vst [vmem:[#allocation2 + $0x30] sm:$0xff] %v1969
        %1986 = vst [vmem:[#allocation2 + $0x38] sm:$0xff] %v1970
        %1987 = vst [vmem:[#allocation2 + $0x40] sm:$0xff] %v1971
        %1988 = vst [vmem:[#allocation2 + $0x48] sm:$0xff] %v1972
        %1989 = vst [vmem:[#allocation2 + $0x50] sm:$0xff] %v1973
        %1990 = vst [vmem:[#allocation2 + $0x58] sm:$0xff] %v1974
        %1991 = vst [vmem:[#allocation2 + $0x60] sm:$0xff] %v1975
        %1992 = vst [vmem:[#allocation2 + $0x68] sm:$0xff] %v1976
        %1993 = vst [vmem:[#allocation2 + $0x70] sm:$0xff] %v1977
        %1994 = vst [vmem:[#allocation2 + $0x78] sm:$0xff] %v1978
        %v1995 = vld [vmem:[#allocation3 + $0x20] sm:$0xfe]
        %v1996 = vld [vmem:[#allocation3 + $0x28] sm:$0xff]
        %v1997 = vld [vmem:[#allocation3 + $0x30] sm:$0xff]
        %v1998 = vld [vmem:[#allocation3 + $0x38] sm:$0xff]
        %v1999 = vld [vmem:[#allocation3 + $0x40] sm:$0xff]
        %v2000 = vld [vmem:[#allocation3 + $0x48] sm:$0xff]
        %v2001 = vld [vmem:[#allocation3 + $0x50] sm:$0xff]
        %v2002 = vld [vmem:[#allocation3 + $0x58] sm:$0xff]
        %v2003 = vld [vmem:[#allocation3 + $0x60] sm:$0x1]
        %s2004 = scalar_lea.vmem %s1, 16
        %v2005 = vld [vmem:[%s2004] sm:$0x3]
        %v2015 = vrot.slane %v1995, 1
        %v2016 = vrot.slane %v1996, 1
        %v2017 = vsel %vm730, %v2015, %v2016
        %v2018 = vrot.slane %v1997, 1
        %v2019 = vsel %vm730, %v2016, %v2018
        %v2020 = vrot.slane %v1998, 1
        %v2021 = vsel %vm730, %v2018, %v2020
        %v2022 = vrot.slane %v1999, 1
        %v2023 = vsel %vm730, %v2020, %v2022
        %v2024 = vrot.slane %v2000, 1
        %v2025 = vsel %vm730, %v2022, %v2024
        %v2026 = vrot.slane %v2001, 1
        %v2027 = vsel %vm730, %v2024, %v2026
        %v2028 = vrot.slane %v2002, 1
        %v2029 = vsel %vm730, %v2026, %v2028
        %v2030 = vrot.slane %v2003, 1
        %v2031 = vsel %vm730, %v2028, %v2030
        %v2033 = vsel %vm294, %v2017, 0
        %v2036 = vsel %vm294, %v2019, 0
        %v2039 = vsel %vm294, %v2021, 0
        %v2042 = vsel %vm294, %v2023, 0
        %v2045 = vsel %vm294, %v2025, 0
        %v2048 = vsel %vm294, %v2027, 0
        %v2051 = vsel %vm294, %v2029, 0
        %v2054 = vsel %vm294, %v2031, 0
        %v2057 = vsel %vm341, %v2005, 0
        %2059 = vmatprep.subr.bf16.mxu0 0
        %2060 = vmatpush1.bf16.msra.mxu0 %v2057
        %2061 = vmatprep.subr.bf16.mxu0 0
        %2062 = vmatpush1.bf16.msra.mxu0 0
        %2063 = vmatprep.subr.bf16.mxu0 0
        %2064 = vmatpush1.bf16.msra.mxu0 0
        %2065 = vmatprep.subr.bf16.mxu0 0
        %2066 = vmatpush1.bf16.msra.mxu0 0
        %2067 = vmatprep.subr.bf16.mxu0 0
        %2068 = vmatpush1.bf16.msra.mxu0 0
        %2069 = vmatprep.subr.bf16.mxu0 0
        %2070 = vmatpush1.bf16.msra.mxu0 0
        %2071 = vmatprep.subr.bf16.mxu0 0
        %2072 = vmatpush1.bf16.msra.mxu0 0
        %2073 = vmatprep.subr.bf16.mxu0 0
        %2074 = vmatpush1.bf16.msra.mxu0 0
        %2075 = vmatprep.subr.bf16.mxu0 0
        %2076 = vmatpush1.bf16.msra.mxu0 0
        %2077 = vmatprep.subr.bf16.mxu0 0
        %2078 = vmatpush1.bf16.msra.mxu0 0
        %2079 = vmatprep.subr.bf16.mxu0 0
        %2080 = vmatpush1.bf16.msra.mxu0 0
        %2081 = vmatprep.subr.bf16.mxu0 0
        %2082 = vmatpush1.bf16.msra.mxu0 0
        %2083 = vmatprep.subr.bf16.mxu0 0
        %2084 = vmatpush1.bf16.msra.mxu0 0
        %2085 = vmatprep.subr.bf16.mxu0 0
        %2086 = vmatpush1.bf16.msra.mxu0 0
        %2087 = vmatprep.subr.bf16.mxu0 0
        %2088 = vmatpush1.bf16.msra.mxu0 0
        %2089 = vmatprep.subr.bf16.mxu0 0
        %2090 = vmatpush1.bf16.msra.mxu0 0
        %2091 = vmatprep.mubr.bf16.mxu0 0
        %2092 = vmatmul.mubr.bf16.gmra.mrb[0].mxu0 %v2033
        %v2093 = vpop.f32.mrb[0].mxu0
        %v2094 = vadd.f32 0.0, %v2093
        %v2095 = vpop.f32.mrb[0].mxu0
        %v2096 = vpop.f32.mrb[0].mxu0
        %v2097 = vadd.f32 0.0, %v2096
        %v2098 = vpop.f32.mrb[0].mxu0
        %2099 = vmatprep.mubr.bf16.mxu0 0
        %2100 = vmatmul.mubr.bf16.gmra.mrb[0].mxu0 %v2036
        %v2101 = vpop.f32.mrb[0].mxu0
        %v2102 = vadd.f32 0.0, %v2101
        %v2103 = vpop.f32.mrb[0].mxu0
        %v2104 = vpop.f32.mrb[0].mxu0
        %v2105 = vadd.f32 0.0, %v2104
        %v2106 = vpop.f32.mrb[0].mxu0
        %2107 = vmatprep.mubr.bf16.mxu0 0
        %2108 = vmatmul.mubr.bf16.gmra.mrb[0].mxu0 %v2039
        %v2109 = vpop.f32.mrb[0].mxu0
        %v2110 = vadd.f32 0.0, %v2109
        %v2111 = vpop.f32.mrb[0].mxu0
        %v2112 = vpop.f32.mrb[0].mxu0
        %v2113 = vadd.f32 0.0, %v2112
        %v2114 = vpop.f32.mrb[0].mxu0
        %2115 = vmatprep.mubr.bf16.mxu0 0
        %2116 = vmatmul.mubr.bf16.gmra.mrb[0].mxu0 %v2042
        %v2117 = vpop.f32.mrb[0].mxu0
        %v2118 = vadd.f32 0.0, %v2117
        %v2119 = vpop.f32.mrb[0].mxu0
        %v2120 = vpop.f32.mrb[0].mxu0
        %v2121 = vadd.f32 0.0, %v2120
        %v2122 = vpop.f32.mrb[0].mxu0
        %2123 = vmatprep.mubr.bf16.mxu0 0
        %2124 = vmatmul.mubr.bf16.gmra.mrb[0].mxu0 %v2045
        %v2125 = vpop.f32.mrb[0].mxu0
        %v2126 = vadd.f32 0.0, %v2125
        %v2127 = vpop.f32.mrb[0].mxu0
        %v2128 = vpop.f32.mrb[0].mxu0
        %v2129 = vadd.f32 0.0, %v2128
        %v2130 = vpop.f32.mrb[0].mxu0
        %2131 = vmatprep.mubr.bf16.mxu0 0
        %2132 = vmatmul.mubr.bf16.gmra.mrb[0].mxu0 %v2048
        %v2133 = vpop.f32.mrb[0].mxu0
        %v2134 = vadd.f32 0.0, %v2133
        %v2135 = vpop.f32.mrb[0].mxu0
        %v2136 = vpop.f32.mrb[0].mxu0
        %v2137 = vadd.f32 0.0, %v2136
        %v2138 = vpop.f32.mrb[0].mxu0
        %2139 = vmatprep.mubr.bf16.mxu0 0
        %2140 = vmatmul.mubr.bf16.gmra.mrb[0].mxu0 %v2051
        %v2141 = vpop.f32.mrb[0].mxu0
        %v2142 = vadd.f32 0.0, %v2141
        %v2143 = vpop.f32.mrb[0].mxu0
        %v2144 = vpop.f32.mrb[0].mxu0
        %v2145 = vadd.f32 0.0, %v2144
        %v2146 = vpop.f32.mrb[0].mxu0
        %2147 = vmatprep.mubr.bf16.mxu0 0
        %2148 = vmatmul.mubr.bf16.gmra.mrb[0].mxu0 %v2054
        %v2149 = vpop.f32.mrb[0].mxu0
        %v2150 = vadd.f32 0.0, %v2149
        %v2151 = vpop.f32.mrb[0].mxu0
        %v2152 = vpop.f32.mrb[0].mxu0
        %v2153 = vadd.f32 0.0, %v2152
        %v2154 = vpop.f32.mrb[0].mxu0
        %2155 = vdwg.mxu0
        %v2156 = vld [vmem:[#allocation2] sm:$0xff]
        %v2157 = vld [vmem:[#allocation2 + $0x8] sm:$0xff]
        %v2158 = vld [vmem:[#allocation2 + $0x10] sm:$0xff]
        %v2159 = vld [vmem:[#allocation2 + $0x18] sm:$0xff]
        %v2160 = vld [vmem:[#allocation2 + $0x20] sm:$0xff]
        %v2161 = vld [vmem:[#allocation2 + $0x28] sm:$0xff]
        %v2162 = vld [vmem:[#allocation2 + $0x30] sm:$0xff]
        %v2163 = vld [vmem:[#allocation2 + $0x38] sm:$0xff]
        %v2164 = vld [vmem:[#allocation2 + $0x40] sm:$0xff]
        %v2165 = vld [vmem:[#allocation2 + $0x48] sm:$0xff]
        %v2166 = vld [vmem:[#allocation2 + $0x50] sm:$0xff]
        %v2167 = vld [vmem:[#allocation2 + $0x58] sm:$0xff]
        %v2168 = vld [vmem:[#allocation2 + $0x60] sm:$0xff]
        %v2169 = vld [vmem:[#allocation2 + $0x68] sm:$0xff]
        %v2170 = vld [vmem:[#allocation2 + $0x70] sm:$0xff]
        %v2171 = vld [vmem:[#allocation2 + $0x78] sm:$0xff]
        %v2172 = vadd.f32 %v2156, %v2094
        %v2173 = vadd.f32 %v2157, %v2097
        %v2174 = vadd.f32 %v2158, %v2102
        %v2175 = vadd.f32 %v2159, %v2105
        %v2176 = vadd.f32 %v2160, %v2110
        %v2177 = vadd.f32 %v2161, %v2113
        %v2178 = vadd.f32 %v2162, %v2118
        %v2179 = vadd.f32 %v2163, %v2121
        %v2180 = vadd.f32 %v2164, %v2126
        %v2181 = vadd.f32 %v2165, %v2129
        %v2182 = vadd.f32 %v2166, %v2134
        %v2183 = vadd.f32 %v2167, %v2137
        %v2184 = vadd.f32 %v2168, %v2142
        %v2185 = vadd.f32 %v2169, %v2145
        %v2186 = vadd.f32 %v2170, %v2150
        %v2187 = vadd.f32 %v2171, %v2153
        %2188 = vst [vmem:[#allocation2] sm:$0xff] %v2172
        %2189 = vst [vmem:[#allocation2 + $0x8] sm:$0xff] %v2173
        %2190 = vst [vmem:[#allocation2 + $0x10] sm:$0xff] %v2174
        %2191 = vst [vmem:[#allocation2 + $0x18] sm:$0xff] %v2175
        %2192 = vst [vmem:[#allocation2 + $0x20] sm:$0xff] %v2176
        %2193 = vst [vmem:[#allocation2 + $0x28] sm:$0xff] %v2177
        %2194 = vst [vmem:[#allocation2 + $0x30] sm:$0xff] %v2178
        %2195 = vst [vmem:[#allocation2 + $0x38] sm:$0xff] %v2179
        %2196 = vst [vmem:[#allocation2 + $0x40] sm:$0xff] %v2180
        %2197 = vst [vmem:[#allocation2 + $0x48] sm:$0xff] %v2181
        %2198 = vst [vmem:[#allocation2 + $0x50] sm:$0xff] %v2182
        %2199 = vst [vmem:[#allocation2 + $0x58] sm:$0xff] %v2183
        %2200 = vst [vmem:[#allocation2 + $0x60] sm:$0xff] %v2184
        %2201 = vst [vmem:[#allocation2 + $0x68] sm:$0xff] %v2185
        %2202 = vst [vmem:[#allocation2 + $0x70] sm:$0xff] %v2186
        %2203 = vst [vmem:[#allocation2 + $0x78] sm:$0xff] %v2187
        %v2204 = vld [vmem:[#allocation2] sm:$0xff]
        %v2205 = vld [vmem:[#allocation2 + $0x8] sm:$0xff]
        %v2206 = vld [vmem:[#allocation2 + $0x10] sm:$0xff]
        %v2207 = vld [vmem:[#allocation2 + $0x18] sm:$0xff]
        %v2208 = vld [vmem:[#allocation2 + $0x20] sm:$0xff]
        %v2209 = vld [vmem:[#allocation2 + $0x28] sm:$0xff]
        %v2210 = vld [vmem:[#allocation2 + $0x30] sm:$0xff]
        %v2211 = vld [vmem:[#allocation2 + $0x38] sm:$0xff]
        %v2212 = vld [vmem:[#allocation2 + $0x40] sm:$0xff]
        %v2213 = vld [vmem:[#allocation2 + $0x48] sm:$0xff]
        %v2214 = vld [vmem:[#allocation2 + $0x50] sm:$0xff]
        %v2215 = vld [vmem:[#allocation2 + $0x58] sm:$0xff]
        %v2216 = vld [vmem:[#allocation2 + $0x60] sm:$0xff]
        %v2217 = vld [vmem:[#allocation2 + $0x68] sm:$0xff]
        %v2218 = vld [vmem:[#allocation2 + $0x70] sm:$0xff]
        %v2219 = vld [vmem:[#allocation2 + $0x78] sm:$0xff]
        %v2220 = vld [vmem:[%s2] sm:$0x1]
        %v2222 = vlaneseq
        %v2223 = vshrl.u32 %v2222, 7
        %v2224 = vsub.s32 0, %v2223
        %v2225 = vrot.slane %v2220, %v2224
        %v2227 = vadd.f32 %v2204, %v2225
        %v2228 = vadd.f32 %v2205, %v2225
        %v2229 = vadd.f32 %v2206, %v2225
        %v2230 = vadd.f32 %v2207, %v2225
        %v2231 = vadd.f32 %v2208, %v2225
        %v2232 = vadd.f32 %v2209, %v2225
        %v2233 = vadd.f32 %v2210, %v2225
        %v2234 = vadd.f32 %v2211, %v2225
        %v2235 = vadd.f32 %v2212, %v2225
        %v2236 = vadd.f32 %v2213, %v2225
        %v2237 = vadd.f32 %v2214, %v2225
        %v2238 = vadd.f32 %v2215, %v2225
        %v2239 = vadd.f32 %v2216, %v2225
        %v2240 = vadd.f32 %v2217, %v2225
        %v2241 = vadd.f32 %v2218, %v2225
        %v2242 = vadd.f32 %v2219, %v2225
        %v2243 = vmax.f32 %v2227, 0.0
        %v2244 = vmax.f32 %v2228, 0.0
        %v2245 = vmax.f32 %v2229, 0.0
        %v2246 = vmax.f32 %v2230, 0.0
        %v2247 = vmax.f32 %v2231, 0.0
        %v2248 = vmax.f32 %v2232, 0.0
        %v2249 = vmax.f32 %v2233, 0.0
        %v2250 = vmax.f32 %v2234, 0.0
        %v2251 = vmax.f32 %v2235, 0.0
        %v2252 = vmax.f32 %v2236, 0.0
        %v2253 = vmax.f32 %v2237, 0.0
        %v2254 = vmax.f32 %v2238, 0.0
        %v2255 = vmax.f32 %v2239, 0.0
        %v2256 = vmax.f32 %v2240, 0.0
        %v2257 = vmax.f32 %v2241, 0.0
        %v2258 = vmax.f32 %v2242, 0.0
        %v2259 = vpack.c.bf16 %v2244, %v2243
        %v2260 = vpack.c.bf16 %v2246, %v2245
        %v2261 = vpack.c.bf16 %v2248, %v2247
        %v2262 = vpack.c.bf16 %v2250, %v2249
        %v2263 = vpack.c.bf16 %v2252, %v2251
        %v2264 = vpack.c.bf16 %v2254, %v2253
        %v2265 = vpack.c.bf16 %v2256, %v2255
        %v2266 = vpack.c.bf16 %v2258, %v2257
        %v2275 = vunpack.c.l.b16 %v2259
        %v2276 = vunpack.c.h.b16 %v2259
        %v2277 = vunpack.c.l.b16 %v2260
        %v2278 = vunpack.c.h.b16 %v2260
        %v2279 = vunpack.c.l.b16 %v2261
        %v2280 = vunpack.c.h.b16 %v2261
        %v2281 = vunpack.c.l.b16 %v2262
        %v2282 = vunpack.c.h.b16 %v2262
        %v2283 = vunpack.c.l.b16 %v2263
        %v2284 = vunpack.c.h.b16 %v2263
        %v2285 = vunpack.c.l.b16 %v2264
        %v2286 = vunpack.c.h.b16 %v2264
        %v2287 = vunpack.c.l.b16 %v2265
        %v2288 = vunpack.c.h.b16 %v2265
        %v2289 = vunpack.c.l.b16 %v2266
        %v2290 = vunpack.c.h.b16 %v2266
        %v2291 = vpack.c.b16 %v2275, %v2275
        %v2292 = vpack.c.b16 %v2276, %v2276
        %v2293 = vpack.c.b16 %v2277, %v2277
        %v2294 = vpack.c.b16 %v2278, %v2278
        %v2295 = vpack.c.b16 %v2279, %v2279
        %v2296 = vpack.c.b16 %v2280, %v2280
        %v2297 = vpack.c.b16 %v2281, %v2281
        %v2298 = vpack.c.b16 %v2282, %v2282
        %v2299 = vpack.c.b16 %v2283, %v2283
        %v2300 = vpack.c.b16 %v2284, %v2284
        %v2301 = vpack.c.b16 %v2285, %v2285
        %v2302 = vpack.c.b16 %v2286, %v2286
        %v2303 = vpack.c.b16 %v2287, %v2287
        %v2304 = vpack.c.b16 %v2288, %v2288
        %v2305 = vpack.c.b16 %v2289, %v2289
        %v2306 = vpack.c.b16 %v2290, %v2290
        %2323 = vst [vmem:[%s177] sm:$0xf] %v2291
        %2324 = vst [vmem:[%s177 + $0x4] sm:$0xf] %v2292
        %2325 = vst [vmem:[%s177 + $0x8] sm:$0xf] %v2293
        %2326 = vst [vmem:[%s177 + $0xc] sm:$0xf] %v2294
        %2327 = vst [vmem:[%s177 + $0x10] sm:$0xf] %v2295
        %2328 = vst [vmem:[%s177 + $0x14] sm:$0xf] %v2296
        %2329 = vst [vmem:[%s177 + $0x18] sm:$0xf] %v2297
        %2330 = vst [vmem:[%s177 + $0x1c] sm:$0xf] %v2298
        %2331 = vst [vmem:[%s177 + $0x20] sm:$0xf] %v2299
        %2332 = vst [vmem:[%s177 + $0x24] sm:$0xf] %v2300
        %2333 = vst [vmem:[%s177 + $0x28] sm:$0xf] %v2301
        %2334 = vst [vmem:[%s177 + $0x2c] sm:$0xf] %v2302
        %2335 = vst [vmem:[%s177 + $0x30] sm:$0xf] %v2303
        %2336 = vst [vmem:[%s177 + $0x34] sm:$0xf] %v2304
        %2337 = vst [vmem:[%s177 + $0x38] sm:$0xf] %v2305
        %2338 = vst [vmem:[%s177 + $0x3c] sm:$0xf] %v2306
        %s2339 = sand.u32 %s107, 1
        %s2340 = scalar_lea.sflag [#allocation5], %s2339
        %s2341 = sand.u32 %s107, 1
        %s2342 = smul.addr %s2341, 64
        %s2343 = scalar_lea.vmem [#allocation4], %s2342
        // Predicated region
        $region33: #{tpu_custom_call.1} parent=31 // pred_check
          %p2344 = pneg %p117
        $region34: #{tpu_custom_call.1} parent=31 // pred_check_branch
          %2346 = sbr.rel (%p2344) target = $region36
        $region35: #{tpu_custom_call.1} parent=31 // pred_region
          %s2347 = smul.u32 16, %s22
          %s2349 = ssub.s32 1024, 1024
          %2350 = vsyncadd %s2340, %s2349
          %s2351 = smul.addr %s21, 64
          %s2352 = sadd.s32 %s2347, %s2351
          %s2353 = smul.addr %s2352, 64
          %s2354 = scalar_lea.hbm %s3, %s2353
          %s2355 = sshll.u32 %s2343, 4
          %s2356 = int_to_ptr.vmem [resolvable:$true] %s2355
          %2361 = dma.vmem_to_hbm [thread:$0]  %s2356, 1024, %s2354, %s2340, 64, 64, 4
        $region36: #{tpu_custom_call.1} parent=31 // pred_fallthru
          _
      $region32: #{tpu_custom_call.1} parent=5 // pred_fallthru
        _
      %p2362 = scmp.le.s32.totalorder 2, %s12
      // Predicated region
      $region37: #{tpu_custom_call.1} parent=5 // pred_check
        %p2363 = pneg %p2362
      $region38: #{tpu_custom_call.1} parent=5 // pred_check_branch
        %2365 = sbr.rel (%p2363) target = $region40
      $region39: #{tpu_custom_call.1} parent=5 // pred_region
        %s2366 = ssub.s32 %s12, 2
        // Predicated region
        $region41: #{tpu_custom_call.1} parent=39 // pred_check
          %p2367 = pneg %p123
        $region42: #{tpu_custom_call.1} parent=39 // pred_check_branch
          %2369 = sbr.rel (%p2367) target = $region44
        $region43: #{tpu_custom_call.1} parent=39 // pred_region
          %s2370 = sand.u32 %s108, 1
          %s2371 = scalar_lea.sflag [#allocation5], %s2370
          %s2372 = sand.u32 %s108, 1
          %s2373 = smul.addr %s2372, 64
          %s2374 = scalar_lea.vmem [#allocation4], %s2373
          %2375 = dma.done %s2371, 1024
        $region44: #{tpu_custom_call.1} parent=39 // pred_fallthru
          _
      $region40: #{tpu_custom_call.1} parent=5 // pred_fallthru
        _
    $region6: #{tpu_custom_call.1} parent=1 // loop_footer
      %s16 = sadd.s32 1, %s12
    $region7: #{tpu_custom_call.1} parent=1 // loop_footer_branch
      %11 = sbr.rel target = $region3
    $region8: #{tpu_custom_call.1} parent=1 // loop_exit
      _
    %2376 = vsyncpa [#allocation5], 1
    %s2377 = scalar_lea.sflag [#allocation5], 1
    %2378 = vsyncpa %s2377, 1

</llo_original>
